<compile_context>
chip_gen: v5e
topology: v5e:2x2
jax: 0.10.0
libtpu: 0.0.40
codegen_flags: <defaults>
</compile_context>

<pallas_src>
import functools

import jax
import jax.numpy as jnp
import numpy as np
from jax.experimental import pallas as pl
from jax.experimental.pallas import tpu as pltpu


# ----------------------------------------------------------------------------
# Fused kernel: cross-attention + GRU over time + FC head
# ----------------------------------------------------------------------------
def _fused_kernel(x1_ref, x2_ref, wq_ref, wk_ref, wv_ref, wo_ref, bo_ref,
                  wih_ref, bih_ref, whh_ref, bhh_ref, wfc_ref, bfc_ref,
                  out_ref, *, batch_block, seq1, seq2, num_heads, k_dim,
                  v_dim, hidden_size):
    Bb, S1, S2, H = batch_block, seq1, seq2, hidden_size
    f32 = jnp.float32
    bf16 = jnp.bfloat16
    d_model = bo_ref.shape[-1]

    x1 = x1_ref[...]                       # (Bb*S1, D1) bf16, batch folded into M
    x2 = x2_ref[...]                       # (Bb*S2, D2) bf16

    # ---------------- merged Q/K/V projections (one wide matmul each) --------
    # 1/sqrt(k_dim) is folded into wq in the wrapper; bf16 operands, f32 acc.
    q_all = jnp.dot(x1, wq_ref[...], preferred_element_type=f32)  # (Bb*S1, nh*k)
    k_all = jnp.dot(x2, wk_ref[...], preferred_element_type=f32)  # (Bb*S2, nh*k)
    v_all = jnp.dot(x2, wv_ref[...], preferred_element_type=f32)  # (Bb*S2, nh*v)

    # Leading-dim-only reshapes: layout no-ops because S1 % 8 == 0, S2 % 8 == 0.
    q_all = q_all.reshape(Bb, S1, num_heads * k_dim)
    k_all = k_all.reshape(Bb, S2, num_heads * k_dim)
    v_all = v_all.reshape(Bb, S2, num_heads * v_dim)

    # ---------------- per-head attention (static loop over small nh) ---------
    # Head outputs are accumulated through the output projection (wo stored
    # per head on the leading axis), so no concat of narrow head slivers.
    attn = jnp.zeros((Bb * S1, d_model), dtype=f32)
    for h in range(num_heads):
        q_h = q_all[:, :, h * k_dim:(h + 1) * k_dim]      # (Bb, S1, k)
        k_h = k_all[:, :, h * k_dim:(h + 1) * k_dim]      # (Bb, S2, k)
        v_h = v_all[:, :, h * v_dim:(h + 1) * v_dim]      # (Bb, S2, v)
        s = jnp.einsum('bqk,bsk->bqs', q_h, k_h,
                       preferred_element_type=f32)        # (Bb, S1, S2)
        m = jnp.max(s, axis=-1, keepdims=True)
        e = jnp.exp(s - m)
        p = e / jnp.sum(e, axis=-1, keepdims=True)        # exact softmax (parity)
        o_h = jnp.einsum('bqs,bsv->bqv', p, v_h,
                         preferred_element_type=f32)      # (Bb, S1, v)
        o_h = o_h.reshape(Bb * S1, v_dim).astype(bf16)
        attn = attn + jnp.dot(o_h, wo_ref[h], preferred_element_type=f32)
    attn = attn + bo_ref[...]                             # (Bb*S1, D1) f32

    # ---------------- GRU: single fused input projection, hoisted ------------
    gx = (jnp.dot(attn.astype(bf16), wih_ref[...],
                  preferred_element_type=f32) + bih_ref[...])   # (Bb*S1, 3H)
    gx = gx.reshape(Bb, S1, 3 * H)                        # free: S1 % 8 == 0

    whh3 = whh_ref[...]                                   # (H, 3H) f32, loaded once
    bhh3 = bhh_ref[...]                                   # (1, 3H)

    h_state = jnp.zeros((Bb, H), dtype=f32)
    # TODO(synk): if S1 grows beyond ~32, switch to lax.fori_loop(..., unroll=2..4)
    # indexing gx with pl.ds(t, 1) to bound live ranges (avoid vreg spills).
    for t in range(S1):                                   # fully unrolled, static
        gh = jnp.dot(h_state, whh3, preferred_element_type=f32) + bhh3  # (Bb, 3H)
        gx_t = gx[:, t, :]                                # (Bb, 3H)
        r = jax.nn.sigmoid(gx_t[:, :H] + gh[:, :H])
        z = jax.nn.sigmoid(gx_t[:, H:2 * H] + gh[:, H:2 * H])
        n = jnp.tanh(gx_t[:, 2 * H:] + r * gh[:, 2 * H:])   # b_hh inside r*(...) (PyTorch)
        h_state = (1.0 - z) * n + z * h_state

    # ---------------- FC head ------------------------------------------------
    O = out_ref.shape[-1]
    if O == 1:
        # VPU multiply + lane reduce: avoids a tail MXU push/pop for (Bb,H)@(H,1).
        logits = (jnp.sum(h_state * wfc_ref[...], axis=-1, keepdims=True)
                  + bfc_ref[...])
    else:
        logits = jax.lax.dot_general(h_state, wfc_ref[...],
                                     (((1,), (1,)), ((), ())),
                                     preferred_element_type=f32) + bfc_ref[...]
    out_ref[...] = logits.astype(out_ref.dtype)


# ----------------------------------------------------------------------------
# Wrapper: pack weights into kernel layout, pad batch, launch one pallas_call
# ----------------------------------------------------------------------------
def cross_attention_gru_forward(x1, x2, params, *, num_heads, k_dim, v_dim,
                                hidden_size, batch_block=None,
                                vmem_limit_bytes=None):
    if x1.ndim == 2:
        x1 = x1[:, None, :]
    if x2.ndim == 2:
        x2 = x2[:, None, :]
    B, S1, D1 = x1.shape
    _, S2, D2 = x2.shape
    H = hidden_size
    O = params["w_fc"].shape[1]

    # ---- pack weights into the fused-kernel layout (pre-pack once in prod) ----
    scale = 1.0 / float(np.sqrt(k_dim))
    wq_all = (jnp.transpose(params["wq"], (1, 0, 2))
              .reshape(D1, num_heads * k_dim) * scale).astype(jnp.bfloat16)
    wk_all = (jnp.transpose(params["wk"], (1, 0, 2))
              .reshape(D2, num_heads * k_dim)).astype(jnp.bfloat16)
    wv_all = (jnp.transpose(params["wv"], (1, 0, 2))
              .reshape(D2, num_heads * v_dim)).astype(jnp.bfloat16)
    wo_h = params["wo"].reshape(num_heads, v_dim, D1).astype(jnp.bfloat16)
    bo = params["bo"].astype(jnp.float32)                               # (1, D1)
    wih3 = (jnp.transpose(params["w_ih"], (1, 0, 2))
            .reshape(D1, 3 * H)).astype(jnp.bfloat16)                   # (D1, 3H)
    bih3 = params["b_ih"].reshape(1, 3 * H).astype(jnp.float32)
    whh3 = (jnp.transpose(params["w_hh"], (1, 0, 2))
            .reshape(H, 3 * H)).astype(jnp.float32)                     # (H, 3H)
    bhh3 = params["b_hh"].reshape(1, 3 * H).astype(jnp.float32)
    wfc = params["w_fc"].T.astype(jnp.float32)                          # (O, H)
    bfc = params["b_fc"].astype(jnp.float32)                            # (1, O)

    # ---- pad batch so recurrence vregs use all 8 sublanes (and block rule) ----
    B_pad = max(8, ((B + 7) // 8) * 8)
    if B_pad != B:
        x1 = jnp.pad(x1, ((0, B_pad - B), (0, 0), (0, 0)))
        x2 = jnp.pad(x2, ((0, B_pad - B), (0, 0), (0, 0)))

    # Single block by default (right call for v5e/v6e); on v7x at large B pass
    # batch_block = B_pad // 2 so the "parallel" axis feeds both TensorCores.
    if batch_block is None:
        batch_block = B_pad
    assert B_pad % batch_block == 0 and batch_block % 8 == 0
    n_blocks = B_pad // batch_block

    # Batch folded into the matmul M dimension; bf16 halves DMA + MXU passes.
    x1_flat = x1.reshape(B_pad * S1, D1).astype(jnp.bfloat16)
    x2_flat = x2.reshape(B_pad * S2, D2).astype(jnp.bfloat16)

    kernel = functools.partial(
        _fused_kernel, batch_block=batch_block, seq1=S1, seq2=S2,
        num_heads=num_heads, k_dim=k_dim, v_dim=v_dim, hidden_size=H)

    def full(a):
        return pl.BlockSpec(a.shape, lambda i, _n=a.ndim: (0,) * _n)

    in_specs = [
        pl.BlockSpec((batch_block * S1, D1), lambda i: (i, 0)),
        pl.BlockSpec((batch_block * S2, D2), lambda i: (i, 0)),
        full(wq_all), full(wk_all), full(wv_all), full(wo_h), full(bo),
        full(wih3), full(bih3), full(whh3), full(bhh3), full(wfc), full(bfc),
    ]
    out_specs = pl.BlockSpec((batch_block, O), lambda i: (i, 0))

    out = pl.pallas_call(
        kernel,
        out_shape=jax.ShapeDtypeStruct((B_pad, O), jnp.float32),
        grid=(n_blocks,),
        in_specs=in_specs,
        out_specs=out_specs,
        compiler_params=pltpu.CompilerParams(
            dimension_semantics=("parallel",),
            vmem_limit_bytes=vmem_limit_bytes),
    )(x1_flat, x2_flat, wq_all, wk_all, wv_all, wo_h, bo, wih3, bih3, whh3,
      bhh3, wfc, bfc)
    return out[:B]


# ----------------------------------------------------------------------------
# Pure-JAX reference (mirrors the PyTorch forward exactly, all f32)
# ----------------------------------------------------------------------------
def reference_forward(x1, x2, params, *, num_heads, k_dim, v_dim, hidden_size):
    B, S1, _ = x1.shape
    head_outs = []
    for h in range(num_heads):
        q = x1 @ params["wq"][h]
        k = x2 @ params["wk"][h]
        v = x2 @ params["wv"][h]
        scores = jnp.einsum('bqk,bsk->bqs', q, k) / (k_dim ** 0.5)
        p = jax.nn.softmax(scores, axis=-1)
        head_outs.append(jnp.einsum('bqs,bsv->bqv', p, v))
    out = jnp.concatenate(head_outs, axis=-1) @ params["wo"] + params["bo"]

    H = hidden_size
    h_state = jnp.zeros((B, H), jnp.float32)
    for t in range(S1):
        x_t = out[:, t, :]
        r = jax.nn.sigmoid(x_t @ params["w_ih"][0] + params["b_ih"][0]
                           + h_state @ params["w_hh"][0] + params["b_hh"][0])
        z = jax.nn.sigmoid(x_t @ params["w_ih"][1] + params["b_ih"][1]
                           + h_state @ params["w_hh"][1] + params["b_hh"][1])
        n = jnp.tanh(x_t @ params["w_ih"][2] + params["b_ih"][2]
                     + r * (h_state @ params["w_hh"][2] + params["b_hh"][2]))
        h_state = (1.0 - z) * n + z * h_state
    return h_state @ params["w_fc"] + params["b_fc"]


def init_params(key, in_dim1, in_dim2, k_dim, v_dim, num_heads, hidden_size,
                output_dim):
    ks = jax.random.split(key, 11)

    def u(k, shape, fan):
        lim = 1.0 / np.sqrt(fan)
        return jax.random.uniform(k, shape, jnp.float32, -lim, lim)

    return {
        # CrossAttention: per-head projection slabs (no bias on q/k/v).
        "wq": u(ks[0], (num_heads, in_dim1, k_dim), in_dim1),
        "wk": u(ks[1], (num_heads, in_dim2, k_dim), in_dim2),
        "wv": u(ks[2], (num_heads, in_dim2, v_dim), in_dim2),
        "wo": u(ks[3], (num_heads * v_dim, in_dim1), num_heads * v_dim),
        "bo": u(ks[4], (1, in_dim1), num_heads * v_dim),
        # GRUCell, per-gate slabs in PyTorch gate order [r, z, n].
        "w_ih": u(ks[5], (3, in_dim1, hidden_size), hidden_size),
        "w_hh": u(ks[6], (3, hidden_size, hidden_size), hidden_size),
        "b_ih": u(ks[7], (3, 1, hidden_size), hidden_size),
        "b_hh": u(ks[8], (3, 1, hidden_size), hidden_size),
        # fc head
        "w_fc": u(ks[9], (hidden_size, output_dim), hidden_size),
        "b_fc": u(ks[10], (1, output_dim), hidden_size),
    }


if __name__ == "__main__":
    B, S1, S2 = 2, 8, 8
    in_dim1, in_dim2 = 16, 12
    k_dim, v_dim, num_heads = 8, 8, 2
    hidden_size, output_dim = 32, 1

    key = jax.random.PRNGKey(0)
    kx1, kx2, kp = jax.random.split(key, 3)
    x1 = jax.random.normal(kx1, (B, S1, in_dim1), jnp.float32)
    x2 = jax.random.normal(kx2, (B, S2, in_dim2), jnp.float32)
    params = init_params(kp, in_dim1, in_dim2, k_dim, v_dim, num_heads,
                         hidden_size, output_dim)

    fwd = jax.jit(functools.partial(
        cross_attention_gru_forward, num_heads=num_heads, k_dim=k_dim,
        v_dim=v_dim, hidden_size=hidden_size))
    logits = jax.block_until_ready(fwd(x1, x2, params))

    ref = reference_forward(x1, x2, params, num_heads=num_heads, k_dim=k_dim,
                            v_dim=v_dim, hidden_size=hidden_size)

    assert logits.shape == (B, output_dim), logits.shape
    # bf16 matmul operands (f32 accumulation) -> tolerance kept at 5e-2.
    np.testing.assert_allclose(np.asarray(logits), np.asarray(ref),
                               rtol=5e-2, atol=5e-2)
    print("KERNEL_OK")
</pallas_src>

<mosaic_0001>
module attributes {stable_mosaic.version = 11 : i64} {
  func.func @_fused_kernel(%arg0: i32, %arg1: memref<64x16xbf16, #tpu.memory_space<vmem>>, %arg2: memref<64x12xbf16, #tpu.memory_space<vmem>>, %arg3: memref<16x16xbf16, #tpu.memory_space<vmem>>, %arg4: memref<12x16xbf16, #tpu.memory_space<vmem>>, %arg5: memref<12x16xbf16, #tpu.memory_space<vmem>>, %arg6: memref<2x8x16xbf16, #tpu.memory_space<vmem>>, %arg7: memref<1x16xf32, #tpu.memory_space<vmem>>, %arg8: memref<16x96xbf16, #tpu.memory_space<vmem>>, %arg9: memref<1x96xf32, #tpu.memory_space<vmem>>, %arg10: memref<32x96xf32, #tpu.memory_space<vmem>>, %arg11: memref<1x96xf32, #tpu.memory_space<vmem>>, %arg12: memref<1x32xf32, #tpu.memory_space<vmem>>, %arg13: memref<1x1xf32, #tpu.memory_space<vmem>>, %arg14: memref<8x1xf32, #tpu.memory_space<vmem>>) attributes {dimension_semantics = [#tpu.dimension_semantics<parallel>], iteration_bounds = array<i64: 1>, scalar_prefetch = 0 : i64, scratch_operands = 0 : i64, tpu.core_type = #tpu.core_type<tc>, window_params = [{transform_indices = @transform_0, window_bounds = array<i64: 64, 16>}, {transform_indices = @transform_1, window_bounds = array<i64: 64, 12>}, {pipeline_mode = #tpu.pipeline_mode<synchronous>, transform_indices = @transform_2, window_bounds = array<i64: 16, 16>}, {pipeline_mode = #tpu.pipeline_mode<synchronous>, transform_indices = @transform_3, window_bounds = array<i64: 12, 16>}, {pipeline_mode = #tpu.pipeline_mode<synchronous>, transform_indices = @transform_4, window_bounds = array<i64: 12, 16>}, {pipeline_mode = #tpu.pipeline_mode<synchronous>, transform_indices = @transform_5, window_bounds = array<i64: 2, 8, 16>}, {pipeline_mode = #tpu.pipeline_mode<synchronous>, transform_indices = @transform_6, window_bounds = array<i64: 1, 16>}, {pipeline_mode = #tpu.pipeline_mode<synchronous>, transform_indices = @transform_7, window_bounds = array<i64: 16, 96>}, {pipeline_mode = #tpu.pipeline_mode<synchronous>, transform_indices = @transform_8, window_bounds = array<i64: 1, 96>}, {pipeline_mode = #tpu.pipeline_mode<synchronous>, transform_indices = @transform_9, window_bounds = array<i64: 32, 96>}, {pipeline_mode = #tpu.pipeline_mode<synchronous>, transform_indices = @transform_10, window_bounds = array<i64: 1, 96>}, {pipeline_mode = #tpu.pipeline_mode<synchronous>, transform_indices = @transform_11, window_bounds = array<i64: 1, 32>}, {pipeline_mode = #tpu.pipeline_mode<synchronous>, transform_indices = @transform_12, window_bounds = array<i64: 1, 1>}, {transform_indices = @transform_13, window_bounds = array<i64: 8, 1>}]} {
    %c0 = arith.constant 0 : index
    %c0_0 = arith.constant 0 : index
    %0 = vector.load %arg1[%c0, %c0_0] : memref<64x16xbf16, #tpu.memory_space<vmem>>, vector<64x16xbf16>
    %c0_1 = arith.constant 0 : index
    %c0_2 = arith.constant 0 : index
    %1 = vector.load %arg2[%c0_1, %c0_2] : memref<64x12xbf16, #tpu.memory_space<vmem>>, vector<64x12xbf16>
    %c0_3 = arith.constant 0 : index
    %c0_4 = arith.constant 0 : index
    %2 = vector.load %arg3[%c0_3, %c0_4] : memref<16x16xbf16, #tpu.memory_space<vmem>>, vector<16x16xbf16>
    %cst = arith.constant dense<0.000000e+00> : vector<64x16xf32>
    %3 = tpu.matmul %0, %2, %cst {dimension_numbers = #tpu.dot_dimension_numbers<[1], [0], [0], [1], [0, 0, 1, 1], [], []>} : vector<64x16xbf16>, vector<16x16xbf16>, vector<64x16xf32> -> vector<64x16xf32>
    %c0_5 = arith.constant 0 : index
    %c0_6 = arith.constant 0 : index
    %4 = vector.load %arg4[%c0_5, %c0_6] : memref<12x16xbf16, #tpu.memory_space<vmem>>, vector<12x16xbf16>
    %cst_7 = arith.constant dense<0.000000e+00> : vector<64x16xf32>
    %5 = tpu.matmul %1, %4, %cst_7 {dimension_numbers = #tpu.dot_dimension_numbers<[1], [0], [0], [1], [0, 0, 1, 1], [], []>} : vector<64x12xbf16>, vector<12x16xbf16>, vector<64x16xf32> -> vector<64x16xf32>
    %c0_8 = arith.constant 0 : index
    %c0_9 = arith.constant 0 : index
    %6 = vector.load %arg5[%c0_8, %c0_9] : memref<12x16xbf16, #tpu.memory_space<vmem>>, vector<12x16xbf16>
    %cst_10 = arith.constant dense<0.000000e+00> : vector<64x16xf32>
    %7 = tpu.matmul %1, %6, %cst_10 {dimension_numbers = #tpu.dot_dimension_numbers<[1], [0], [0], [1], [0, 0, 1, 1], [], []>} : vector<64x12xbf16>, vector<12x16xbf16>, vector<64x16xf32> -> vector<64x16xf32>
    %8 = vector.shape_cast %3 : vector<64x16xf32> to vector<8x8x16xf32>
    %9 = vector.shape_cast %5 : vector<64x16xf32> to vector<8x8x16xf32>
    %10 = vector.shape_cast %7 : vector<64x16xf32> to vector<8x8x16xf32>
    %cst_11 = arith.constant 0.000000e+00 : f32
    %11 = vector.broadcast %cst_11 : f32 to vector<64x16xf32>
    %12 = vector.extract_strided_slice %8 {offsets = [0, 0, 0], sizes = [8, 8, 8], strides = [1, 1, 1]} : vector<8x8x16xf32> to vector<8x8x8xf32>
    %13 = vector.extract_strided_slice %9 {offsets = [0, 0, 0], sizes = [8, 8, 8], strides = [1, 1, 1]} : vector<8x8x16xf32> to vector<8x8x8xf32>
    %14 = vector.extract_strided_slice %10 {offsets = [0, 0, 0], sizes = [8, 8, 8], strides = [1, 1, 1]} : vector<8x8x16xf32> to vector<8x8x8xf32>
    "tpu.trace_start"() <{level = 10 : i32, message = "bqk,bsk->bqs"}> : () -> ()
    %cst_12 = arith.constant dense<0.000000e+00> : vector<8x8x8xf32>
    %15 = tpu.matmul %12, %13, %cst_12 {dimension_numbers = #tpu.dot_dimension_numbers<[2], [2], [1], [1], [0, 0, 0, 1, 1, 1], [0], [0]>} : vector<8x8x8xf32>, vector<8x8x8xf32>, vector<8x8x8xf32> -> vector<8x8x8xf32>
    "tpu.trace_stop"() : () -> ()
    %cst_13 = arith.constant dense<0xFF800000> : vector<8x8xf32>
    %16 = vector.multi_reduction <maximumf>, %15, %cst_13 [2] : vector<8x8x8xf32> to vector<8x8xf32>
    %17 = vector.shape_cast %16 : vector<8x8xf32> to vector<8x8x1xf32>
    %18 = vector.broadcast %17 : vector<8x8x1xf32> to vector<8x8x8xf32>
    %19 = arith.subf %15, %18 : vector<8x8x8xf32>
    %20 = math.exp %19 : vector<8x8x8xf32>
    %cst_14 = arith.constant dense<0.000000e+00> : vector<8x8xf32>
    %21 = vector.multi_reduction <add>, %20, %cst_14 [2] : vector<8x8x8xf32> to vector<8x8xf32>
    %22 = vector.shape_cast %21 : vector<8x8xf32> to vector<8x8x1xf32>
    %23 = vector.broadcast %22 : vector<8x8x1xf32> to vector<8x8x8xf32>
    %24 = arith.divf %20, %23 : vector<8x8x8xf32>
    "tpu.trace_start"() <{level = 10 : i32, message = "bqs,bsv->bqv"}> : () -> ()
    %cst_15 = arith.constant dense<0.000000e+00> : vector<8x8x8xf32>
    %25 = tpu.matmul %24, %14, %cst_15 {dimension_numbers = #tpu.dot_dimension_numbers<[2], [1], [1], [2], [0, 0, 0, 1, 1, 2], [0], [0]>} : vector<8x8x8xf32>, vector<8x8x8xf32>, vector<8x8x8xf32> -> vector<8x8x8xf32>
    "tpu.trace_stop"() : () -> ()
    %26 = vector.shape_cast %25 : vector<8x8x8xf32> to vector<64x8xf32>
    %27 = arith.truncf %26 : vector<64x8xf32> to vector<64x8xbf16>
    %c0_16 = arith.constant 0 : index
    %c0_17 = arith.constant 0 : index
    %c0_18 = arith.constant 0 : index
    %28 = vector.load %arg6[%c0_16, %c0_17, %c0_18] : memref<2x8x16xbf16, #tpu.memory_space<vmem>>, vector<1x8x16xbf16>
    %29 = vector.shape_cast %28 : vector<1x8x16xbf16> to vector<8x16xbf16>
    %cst_19 = arith.constant dense<0.000000e+00> : vector<64x16xf32>
    %30 = tpu.matmul %27, %29, %cst_19 {dimension_numbers = #tpu.dot_dimension_numbers<[1], [0], [0], [1], [0, 0, 1, 1], [], []>} : vector<64x8xbf16>, vector<8x16xbf16>, vector<64x16xf32> -> vector<64x16xf32>
    %31 = arith.addf %11, %30 : vector<64x16xf32>
    %32 = vector.extract_strided_slice %8 {offsets = [0, 0, 8], sizes = [8, 8, 8], strides = [1, 1, 1]} : vector<8x8x16xf32> to vector<8x8x8xf32>
    %33 = vector.extract_strided_slice %9 {offsets = [0, 0, 8], sizes = [8, 8, 8], strides = [1, 1, 1]} : vector<8x8x16xf32> to vector<8x8x8xf32>
    %34 = vector.extract_strided_slice %10 {offsets = [0, 0, 8], sizes = [8, 8, 8], strides = [1, 1, 1]} : vector<8x8x16xf32> to vector<8x8x8xf32>
    "tpu.trace_start"() <{level = 10 : i32, message = "bqk,bsk->bqs"}> : () -> ()
    %cst_20 = arith.constant dense<0.000000e+00> : vector<8x8x8xf32>
    %35 = tpu.matmul %32, %33, %cst_20 {dimension_numbers = #tpu.dot_dimension_numbers<[2], [2], [1], [1], [0, 0, 0, 1, 1, 1], [0], [0]>} : vector<8x8x8xf32>, vector<8x8x8xf32>, vector<8x8x8xf32> -> vector<8x8x8xf32>
    "tpu.trace_stop"() : () -> ()
    %cst_21 = arith.constant dense<0xFF800000> : vector<8x8xf32>
    %36 = vector.multi_reduction <maximumf>, %35, %cst_21 [2] : vector<8x8x8xf32> to vector<8x8xf32>
    %37 = vector.shape_cast %36 : vector<8x8xf32> to vector<8x8x1xf32>
    %38 = vector.broadcast %37 : vector<8x8x1xf32> to vector<8x8x8xf32>
    %39 = arith.subf %35, %38 : vector<8x8x8xf32>
    %40 = math.exp %39 : vector<8x8x8xf32>
    %cst_22 = arith.constant dense<0.000000e+00> : vector<8x8xf32>
    %41 = vector.multi_reduction <add>, %40, %cst_22 [2] : vector<8x8x8xf32> to vector<8x8xf32>
    %42 = vector.shape_cast %41 : vector<8x8xf32> to vector<8x8x1xf32>
    %43 = vector.broadcast %42 : vector<8x8x1xf32> to vector<8x8x8xf32>
    %44 = arith.divf %40, %43 : vector<8x8x8xf32>
    "tpu.trace_start"() <{level = 10 : i32, message = "bqs,bsv->bqv"}> : () -> ()
    %cst_23 = arith.constant dense<0.000000e+00> : vector<8x8x8xf32>
    %45 = tpu.matmul %44, %34, %cst_23 {dimension_numbers = #tpu.dot_dimension_numbers<[2], [1], [1], [2], [0, 0, 0, 1, 1, 2], [0], [0]>} : vector<8x8x8xf32>, vector<8x8x8xf32>, vector<8x8x8xf32> -> vector<8x8x8xf32>
    "tpu.trace_stop"() : () -> ()
    %46 = vector.shape_cast %45 : vector<8x8x8xf32> to vector<64x8xf32>
    %47 = arith.truncf %46 : vector<64x8xf32> to vector<64x8xbf16>
    %c1 = arith.constant 1 : index
    %c0_24 = arith.constant 0 : index
    %c0_25 = arith.constant 0 : index
    %48 = vector.load %arg6[%c1, %c0_24, %c0_25] : memref<2x8x16xbf16, #tpu.memory_space<vmem>>, vector<1x8x16xbf16>
    %49 = vector.shape_cast %48 : vector<1x8x16xbf16> to vector<8x16xbf16>
    %cst_26 = arith.constant dense<0.000000e+00> : vector<64x16xf32>
    %50 = tpu.matmul %47, %49, %cst_26 {dimension_numbers = #tpu.dot_dimension_numbers<[1], [0], [0], [1], [0, 0, 1, 1], [], []>} : vector<64x8xbf16>, vector<8x16xbf16>, vector<64x16xf32> -> vector<64x16xf32>
    %51 = arith.addf %31, %50 : vector<64x16xf32>
    %c0_27 = arith.constant 0 : index
    %c0_28 = arith.constant 0 : index
    %52 = vector.load %arg7[%c0_27, %c0_28] : memref<1x16xf32, #tpu.memory_space<vmem>>, vector<1x16xf32>
    %53 = vector.broadcast %52 : vector<1x16xf32> to vector<64x16xf32>
    %54 = arith.addf %51, %53 : vector<64x16xf32>
    %55 = arith.truncf %54 : vector<64x16xf32> to vector<64x16xbf16>
    %c0_29 = arith.constant 0 : index
    %c0_30 = arith.constant 0 : index
    %56 = vector.load %arg8[%c0_29, %c0_30] : memref<16x96xbf16, #tpu.memory_space<vmem>>, vector<16x96xbf16>
    %cst_31 = arith.constant dense<0.000000e+00> : vector<64x96xf32>
    %57 = tpu.matmul %55, %56, %cst_31 {dimension_numbers = #tpu.dot_dimension_numbers<[1], [0], [0], [1], [0, 0, 1, 1], [], []>} : vector<64x16xbf16>, vector<16x96xbf16>, vector<64x96xf32> -> vector<64x96xf32>
    %c0_32 = arith.constant 0 : index
    %c0_33 = arith.constant 0 : index
    %58 = vector.load %arg9[%c0_32, %c0_33] : memref<1x96xf32, #tpu.memory_space<vmem>>, vector<1x96xf32>
    %59 = vector.broadcast %58 : vector<1x96xf32> to vector<64x96xf32>
    %60 = arith.addf %57, %59 : vector<64x96xf32>
    %61 = vector.shape_cast %60 : vector<64x96xf32> to vector<8x8x96xf32>
    %c0_34 = arith.constant 0 : index
    %c0_35 = arith.constant 0 : index
    %62 = vector.load %arg10[%c0_34, %c0_35] : memref<32x96xf32, #tpu.memory_space<vmem>>, vector<32x96xf32>
    %c0_36 = arith.constant 0 : index
    %c0_37 = arith.constant 0 : index
    %63 = vector.load %arg11[%c0_36, %c0_37] : memref<1x96xf32, #tpu.memory_space<vmem>>, vector<1x96xf32>
    %cst_38 = arith.constant 0.000000e+00 : f32
    %64 = vector.broadcast %cst_38 : f32 to vector<8x32xf32>
    %cst_39 = arith.constant dense<0.000000e+00> : vector<8x96xf32>
    %65 = tpu.matmul %64, %62, %cst_39 {dimension_numbers = #tpu.dot_dimension_numbers<[1], [0], [0], [1], [0, 0, 1, 1], [], []>} : vector<8x32xf32>, vector<32x96xf32>, vector<8x96xf32> -> vector<8x96xf32>
    %66 = vector.broadcast %63 : vector<1x96xf32> to vector<8x96xf32>
    %67 = arith.addf %65, %66 : vector<8x96xf32>
    %68 = vector.extract_strided_slice %61 {offsets = [0, 0, 0], sizes = [8, 1, 96], strides = [1, 1, 1]} : vector<8x8x96xf32> to vector<8x1x96xf32>
    %69 = vector.shape_cast %68 : vector<8x1x96xf32> to vector<8x96xf32>
    %70 = vector.extract_strided_slice %69 {offsets = [0, 0], sizes = [8, 32], strides = [1, 1]} : vector<8x96xf32> to vector<8x32xf32>
    %71 = vector.extract_strided_slice %67 {offsets = [0, 0], sizes = [8, 32], strides = [1, 1]} : vector<8x96xf32> to vector<8x32xf32>
    %72 = arith.addf %70, %71 : vector<8x32xf32>
    %73 = arith.negf %72 : vector<8x32xf32>
    %74 = math.exp %73 : vector<8x32xf32>
    %cst_40 = arith.constant 1.000000e+00 : f32
    %75 = vector.broadcast %cst_40 : f32 to vector<8x32xf32>
    %76 = arith.addf %75, %74 : vector<8x32xf32>
    %77 = arith.divf %75, %76 : vector<8x32xf32>
    %78 = vector.extract_strided_slice %69 {offsets = [0, 32], sizes = [8, 32], strides = [1, 1]} : vector<8x96xf32> to vector<8x32xf32>
    %79 = vector.extract_strided_slice %67 {offsets = [0, 32], sizes = [8, 32], strides = [1, 1]} : vector<8x96xf32> to vector<8x32xf32>
    %80 = arith.addf %78, %79 : vector<8x32xf32>
    %81 = arith.negf %80 : vector<8x32xf32>
    %82 = math.exp %81 : vector<8x32xf32>
    %cst_41 = arith.constant 1.000000e+00 : f32
    %83 = vector.broadcast %cst_41 : f32 to vector<8x32xf32>
    %84 = arith.addf %83, %82 : vector<8x32xf32>
    %85 = arith.divf %83, %84 : vector<8x32xf32>
    %86 = vector.extract_strided_slice %69 {offsets = [0, 64], sizes = [8, 32], strides = [1, 1]} : vector<8x96xf32> to vector<8x32xf32>
    %87 = vector.extract_strided_slice %67 {offsets = [0, 64], sizes = [8, 32], strides = [1, 1]} : vector<8x96xf32> to vector<8x32xf32>
    %88 = arith.mulf %77, %87 : vector<8x32xf32>
    %89 = arith.addf %86, %88 : vector<8x32xf32>
    %90 = math.tanh %89 : vector<8x32xf32>
    %cst_42 = arith.constant 1.000000e+00 : f32
    %91 = vector.broadcast %cst_42 : f32 to vector<8x32xf32>
    %92 = arith.subf %91, %85 : vector<8x32xf32>
    %93 = arith.mulf %92, %90 : vector<8x32xf32>
    %94 = arith.mulf %85, %64 : vector<8x32xf32>
    %95 = arith.addf %93, %94 : vector<8x32xf32>
    %cst_43 = arith.constant dense<0.000000e+00> : vector<8x96xf32>
    %96 = tpu.matmul %95, %62, %cst_43 {dimension_numbers = #tpu.dot_dimension_numbers<[1], [0], [0], [1], [0, 0, 1, 1], [], []>} : vector<8x32xf32>, vector<32x96xf32>, vector<8x96xf32> -> vector<8x96xf32>
    %97 = vector.broadcast %63 : vector<1x96xf32> to vector<8x96xf32>
    %98 = arith.addf %96, %97 : vector<8x96xf32>
    %99 = vector.extract_strided_slice %61 {offsets = [0, 1, 0], sizes = [8, 1, 96], strides = [1, 1, 1]} : vector<8x8x96xf32> to vector<8x1x96xf32>
    %100 = vector.shape_cast %99 : vector<8x1x96xf32> to vector<8x96xf32>
    %101 = vector.extract_strided_slice %100 {offsets = [0, 0], sizes = [8, 32], strides = [1, 1]} : vector<8x96xf32> to vector<8x32xf32>
    %102 = vector.extract_strided_slice %98 {offsets = [0, 0], sizes = [8, 32], strides = [1, 1]} : vector<8x96xf32> to vector<8x32xf32>
    %103 = arith.addf %101, %102 : vector<8x32xf32>
    %104 = arith.negf %103 : vector<8x32xf32>
    %105 = math.exp %104 : vector<8x32xf32>
    %cst_44 = arith.constant 1.000000e+00 : f32
    %106 = vector.broadcast %cst_44 : f32 to vector<8x32xf32>
    %107 = arith.addf %106, %105 : vector<8x32xf32>
    %108 = arith.divf %106, %107 : vector<8x32xf32>
    %109 = vector.extract_strided_slice %100 {offsets = [0, 32], sizes = [8, 32], strides = [1, 1]} : vector<8x96xf32> to vector<8x32xf32>
    %110 = vector.extract_strided_slice %98 {offsets = [0, 32], sizes = [8, 32], strides = [1, 1]} : vector<8x96xf32> to vector<8x32xf32>
    %111 = arith.addf %109, %110 : vector<8x32xf32>
    %112 = arith.negf %111 : vector<8x32xf32>
    %113 = math.exp %112 : vector<8x32xf32>
    %cst_45 = arith.constant 1.000000e+00 : f32
    %114 = vector.broadcast %cst_45 : f32 to vector<8x32xf32>
    %115 = arith.addf %114, %113 : vector<8x32xf32>
    %116 = arith.divf %114, %115 : vector<8x32xf32>
    %117 = vector.extract_strided_slice %100 {offsets = [0, 64], sizes = [8, 32], strides = [1, 1]} : vector<8x96xf32> to vector<8x32xf32>
    %118 = vector.extract_strided_slice %98 {offsets = [0, 64], sizes = [8, 32], strides = [1, 1]} : vector<8x96xf32> to vector<8x32xf32>
    %119 = arith.mulf %108, %118 : vector<8x32xf32>
    %120 = arith.addf %117, %119 : vector<8x32xf32>
    %121 = math.tanh %120 : vector<8x32xf32>
    %cst_46 = arith.constant 1.000000e+00 : f32
    %122 = vector.broadcast %cst_46 : f32 to vector<8x32xf32>
    %123 = arith.subf %122, %116 : vector<8x32xf32>
    %124 = arith.mulf %123, %121 : vector<8x32xf32>
    %125 = arith.mulf %116, %95 : vector<8x32xf32>
    %126 = arith.addf %124, %125 : vector<8x32xf32>
    %cst_47 = arith.constant dense<0.000000e+00> : vector<8x96xf32>
    %127 = tpu.matmul %126, %62, %cst_47 {dimension_numbers = #tpu.dot_dimension_numbers<[1], [0], [0], [1], [0, 0, 1, 1], [], []>} : vector<8x32xf32>, vector<32x96xf32>, vector<8x96xf32> -> vector<8x96xf32>
    %128 = vector.broadcast %63 : vector<1x96xf32> to vector<8x96xf32>
    %129 = arith.addf %127, %128 : vector<8x96xf32>
    %130 = vector.extract_strided_slice %61 {offsets = [0, 2, 0], sizes = [8, 1, 96], strides = [1, 1, 1]} : vector<8x8x96xf32> to vector<8x1x96xf32>
    %131 = vector.shape_cast %130 : vector<8x1x96xf32> to vector<8x96xf32>
    %132 = vector.extract_strided_slice %131 {offsets = [0, 0], sizes = [8, 32], strides = [1, 1]} : vector<8x96xf32> to vector<8x32xf32>
    %133 = vector.extract_strided_slice %129 {offsets = [0, 0], sizes = [8, 32], strides = [1, 1]} : vector<8x96xf32> to vector<8x32xf32>
    %134 = arith.addf %132, %133 : vector<8x32xf32>
    %135 = arith.negf %134 : vector<8x32xf32>
    %136 = math.exp %135 : vector<8x32xf32>
    %cst_48 = arith.constant 1.000000e+00 : f32
    %137 = vector.broadcast %cst_48 : f32 to vector<8x32xf32>
    %138 = arith.addf %137, %136 : vector<8x32xf32>
    %139 = arith.divf %137, %138 : vector<8x32xf32>
    %140 = vector.extract_strided_slice %131 {offsets = [0, 32], sizes = [8, 32], strides = [1, 1]} : vector<8x96xf32> to vector<8x32xf32>
    %141 = vector.extract_strided_slice %129 {offsets = [0, 32], sizes = [8, 32], strides = [1, 1]} : vector<8x96xf32> to vector<8x32xf32>
    %142 = arith.addf %140, %141 : vector<8x32xf32>
    %143 = arith.negf %142 : vector<8x32xf32>
    %144 = math.exp %143 : vector<8x32xf32>
    %cst_49 = arith.constant 1.000000e+00 : f32
    %145 = vector.broadcast %cst_49 : f32 to vector<8x32xf32>
    %146 = arith.addf %145, %144 : vector<8x32xf32>
    %147 = arith.divf %145, %146 : vector<8x32xf32>
    %148 = vector.extract_strided_slice %131 {offsets = [0, 64], sizes = [8, 32], strides = [1, 1]} : vector<8x96xf32> to vector<8x32xf32>
    %149 = vector.extract_strided_slice %129 {offsets = [0, 64], sizes = [8, 32], strides = [1, 1]} : vector<8x96xf32> to vector<8x32xf32>
    %150 = arith.mulf %139, %149 : vector<8x32xf32>
    %151 = arith.addf %148, %150 : vector<8x32xf32>
    %152 = math.tanh %151 : vector<8x32xf32>
    %cst_50 = arith.constant 1.000000e+00 : f32
    %153 = vector.broadcast %cst_50 : f32 to vector<8x32xf32>
    %154 = arith.subf %153, %147 : vector<8x32xf32>
    %155 = arith.mulf %154, %152 : vector<8x32xf32>
    %156 = arith.mulf %147, %126 : vector<8x32xf32>
    %157 = arith.addf %155, %156 : vector<8x32xf32>
    %cst_51 = arith.constant dense<0.000000e+00> : vector<8x96xf32>
    %158 = tpu.matmul %157, %62, %cst_51 {dimension_numbers = #tpu.dot_dimension_numbers<[1], [0], [0], [1], [0, 0, 1, 1], [], []>} : vector<8x32xf32>, vector<32x96xf32>, vector<8x96xf32> -> vector<8x96xf32>
    %159 = vector.broadcast %63 : vector<1x96xf32> to vector<8x96xf32>
    %160 = arith.addf %158, %159 : vector<8x96xf32>
    %161 = vector.extract_strided_slice %61 {offsets = [0, 3, 0], sizes = [8, 1, 96], strides = [1, 1, 1]} : vector<8x8x96xf32> to vector<8x1x96xf32>
    %162 = vector.shape_cast %161 : vector<8x1x96xf32> to vector<8x96xf32>
    %163 = vector.extract_strided_slice %162 {offsets = [0, 0], sizes = [8, 32], strides = [1, 1]} : vector<8x96xf32> to vector<8x32xf32>
    %164 = vector.extract_strided_slice %160 {offsets = [0, 0], sizes = [8, 32], strides = [1, 1]} : vector<8x96xf32> to vector<8x32xf32>
    %165 = arith.addf %163, %164 : vector<8x32xf32>
    %166 = arith.negf %165 : vector<8x32xf32>
    %167 = math.exp %166 : vector<8x32xf32>
    %cst_52 = arith.constant 1.000000e+00 : f32
    %168 = vector.broadcast %cst_52 : f32 to vector<8x32xf32>
    %169 = arith.addf %168, %167 : vector<8x32xf32>
    %170 = arith.divf %168, %169 : vector<8x32xf32>
    %171 = vector.extract_strided_slice %162 {offsets = [0, 32], sizes = [8, 32], strides = [1, 1]} : vector<8x96xf32> to vector<8x32xf32>
    %172 = vector.extract_strided_slice %160 {offsets = [0, 32], sizes = [8, 32], strides = [1, 1]} : vector<8x96xf32> to vector<8x32xf32>
    %173 = arith.addf %171, %172 : vector<8x32xf32>
    %174 = arith.negf %173 : vector<8x32xf32>
    %175 = math.exp %174 : vector<8x32xf32>
    %cst_53 = arith.constant 1.000000e+00 : f32
    %176 = vector.broadcast %cst_53 : f32 to vector<8x32xf32>
    %177 = arith.addf %176, %175 : vector<8x32xf32>
    %178 = arith.divf %176, %177 : vector<8x32xf32>
    %179 = vector.extract_strided_slice %162 {offsets = [0, 64], sizes = [8, 32], strides = [1, 1]} : vector<8x96xf32> to vector<8x32xf32>
    %180 = vector.extract_strided_slice %160 {offsets = [0, 64], sizes = [8, 32], strides = [1, 1]} : vector<8x96xf32> to vector<8x32xf32>
    %181 = arith.mulf %170, %180 : vector<8x32xf32>
    %182 = arith.addf %179, %181 : vector<8x32xf32>
    %183 = math.tanh %182 : vector<8x32xf32>
    %cst_54 = arith.constant 1.000000e+00 : f32
    %184 = vector.broadcast %cst_54 : f32 to vector<8x32xf32>
    %185 = arith.subf %184, %178 : vector<8x32xf32>
    %186 = arith.mulf %185, %183 : vector<8x32xf32>
    %187 = arith.mulf %178, %157 : vector<8x32xf32>
    %188 = arith.addf %186, %187 : vector<8x32xf32>
    %cst_55 = arith.constant dense<0.000000e+00> : vector<8x96xf32>
    %189 = tpu.matmul %188, %62, %cst_55 {dimension_numbers = #tpu.dot_dimension_numbers<[1], [0], [0], [1], [0, 0, 1, 1], [], []>} : vector<8x32xf32>, vector<32x96xf32>, vector<8x96xf32> -> vector<8x96xf32>
    %190 = vector.broadcast %63 : vector<1x96xf32> to vector<8x96xf32>
    %191 = arith.addf %189, %190 : vector<8x96xf32>
    %192 = vector.extract_strided_slice %61 {offsets = [0, 4, 0], sizes = [8, 1, 96], strides = [1, 1, 1]} : vector<8x8x96xf32> to vector<8x1x96xf32>
    %193 = vector.shape_cast %192 : vector<8x1x96xf32> to vector<8x96xf32>
    %194 = vector.extract_strided_slice %193 {offsets = [0, 0], sizes = [8, 32], strides = [1, 1]} : vector<8x96xf32> to vector<8x32xf32>
    %195 = vector.extract_strided_slice %191 {offsets = [0, 0], sizes = [8, 32], strides = [1, 1]} : vector<8x96xf32> to vector<8x32xf32>
    %196 = arith.addf %194, %195 : vector<8x32xf32>
    %197 = arith.negf %196 : vector<8x32xf32>
    %198 = math.exp %197 : vector<8x32xf32>
    %cst_56 = arith.constant 1.000000e+00 : f32
    %199 = vector.broadcast %cst_56 : f32 to vector<8x32xf32>
    %200 = arith.addf %199, %198 : vector<8x32xf32>
    %201 = arith.divf %199, %200 : vector<8x32xf32>
    %202 = vector.extract_strided_slice %193 {offsets = [0, 32], sizes = [8, 32], strides = [1, 1]} : vector<8x96xf32> to vector<8x32xf32>
    %203 = vector.extract_strided_slice %191 {offsets = [0, 32], sizes = [8, 32], strides = [1, 1]} : vector<8x96xf32> to vector<8x32xf32>
    %204 = arith.addf %202, %203 : vector<8x32xf32>
    %205 = arith.negf %204 : vector<8x32xf32>
    %206 = math.exp %205 : vector<8x32xf32>
    %cst_57 = arith.constant 1.000000e+00 : f32
    %207 = vector.broadcast %cst_57 : f32 to vector<8x32xf32>
    %208 = arith.addf %207, %206 : vector<8x32xf32>
    %209 = arith.divf %207, %208 : vector<8x32xf32>
    %210 = vector.extract_strided_slice %193 {offsets = [0, 64], sizes = [8, 32], strides = [1, 1]} : vector<8x96xf32> to vector<8x32xf32>
    %211 = vector.extract_strided_slice %191 {offsets = [0, 64], sizes = [8, 32], strides = [1, 1]} : vector<8x96xf32> to vector<8x32xf32>
    %212 = arith.mulf %201, %211 : vector<8x32xf32>
    %213 = arith.addf %210, %212 : vector<8x32xf32>
    %214 = math.tanh %213 : vector<8x32xf32>
    %cst_58 = arith.constant 1.000000e+00 : f32
    %215 = vector.broadcast %cst_58 : f32 to vector<8x32xf32>
    %216 = arith.subf %215, %209 : vector<8x32xf32>
    %217 = arith.mulf %216, %214 : vector<8x32xf32>
    %218 = arith.mulf %209, %188 : vector<8x32xf32>
    %219 = arith.addf %217, %218 : vector<8x32xf32>
    %cst_59 = arith.constant dense<0.000000e+00> : vector<8x96xf32>
    %220 = tpu.matmul %219, %62, %cst_59 {dimension_numbers = #tpu.dot_dimension_numbers<[1], [0], [0], [1], [0, 0, 1, 1], [], []>} : vector<8x32xf32>, vector<32x96xf32>, vector<8x96xf32> -> vector<8x96xf32>
    %221 = vector.broadcast %63 : vector<1x96xf32> to vector<8x96xf32>
    %222 = arith.addf %220, %221 : vector<8x96xf32>
    %223 = vector.extract_strided_slice %61 {offsets = [0, 5, 0], sizes = [8, 1, 96], strides = [1, 1, 1]} : vector<8x8x96xf32> to vector<8x1x96xf32>
    %224 = vector.shape_cast %223 : vector<8x1x96xf32> to vector<8x96xf32>
    %225 = vector.extract_strided_slice %224 {offsets = [0, 0], sizes = [8, 32], strides = [1, 1]} : vector<8x96xf32> to vector<8x32xf32>
    %226 = vector.extract_strided_slice %222 {offsets = [0, 0], sizes = [8, 32], strides = [1, 1]} : vector<8x96xf32> to vector<8x32xf32>
    %227 = arith.addf %225, %226 : vector<8x32xf32>
    %228 = arith.negf %227 : vector<8x32xf32>
    %229 = math.exp %228 : vector<8x32xf32>
    %cst_60 = arith.constant 1.000000e+00 : f32
    %230 = vector.broadcast %cst_60 : f32 to vector<8x32xf32>
    %231 = arith.addf %230, %229 : vector<8x32xf32>
    %232 = arith.divf %230, %231 : vector<8x32xf32>
    %233 = vector.extract_strided_slice %224 {offsets = [0, 32], sizes = [8, 32], strides = [1, 1]} : vector<8x96xf32> to vector<8x32xf32>
    %234 = vector.extract_strided_slice %222 {offsets = [0, 32], sizes = [8, 32], strides = [1, 1]} : vector<8x96xf32> to vector<8x32xf32>
    %235 = arith.addf %233, %234 : vector<8x32xf32>
    %236 = arith.negf %235 : vector<8x32xf32>
    %237 = math.exp %236 : vector<8x32xf32>
    %cst_61 = arith.constant 1.000000e+00 : f32
    %238 = vector.broadcast %cst_61 : f32 to vector<8x32xf32>
    %239 = arith.addf %238, %237 : vector<8x32xf32>
    %240 = arith.divf %238, %239 : vector<8x32xf32>
    %241 = vector.extract_strided_slice %224 {offsets = [0, 64], sizes = [8, 32], strides = [1, 1]} : vector<8x96xf32> to vector<8x32xf32>
    %242 = vector.extract_strided_slice %222 {offsets = [0, 64], sizes = [8, 32], strides = [1, 1]} : vector<8x96xf32> to vector<8x32xf32>
    %243 = arith.mulf %232, %242 : vector<8x32xf32>
    %244 = arith.addf %241, %243 : vector<8x32xf32>
    %245 = math.tanh %244 : vector<8x32xf32>
    %cst_62 = arith.constant 1.000000e+00 : f32
    %246 = vector.broadcast %cst_62 : f32 to vector<8x32xf32>
    %247 = arith.subf %246, %240 : vector<8x32xf32>
    %248 = arith.mulf %247, %245 : vector<8x32xf32>
    %249 = arith.mulf %240, %219 : vector<8x32xf32>
    %250 = arith.addf %248, %249 : vector<8x32xf32>
    %cst_63 = arith.constant dense<0.000000e+00> : vector<8x96xf32>
    %251 = tpu.matmul %250, %62, %cst_63 {dimension_numbers = #tpu.dot_dimension_numbers<[1], [0], [0], [1], [0, 0, 1, 1], [], []>} : vector<8x32xf32>, vector<32x96xf32>, vector<8x96xf32> -> vector<8x96xf32>
    %252 = vector.broadcast %63 : vector<1x96xf32> to vector<8x96xf32>
    %253 = arith.addf %251, %252 : vector<8x96xf32>
    %254 = vector.extract_strided_slice %61 {offsets = [0, 6, 0], sizes = [8, 1, 96], strides = [1, 1, 1]} : vector<8x8x96xf32> to vector<8x1x96xf32>
    %255 = vector.shape_cast %254 : vector<8x1x96xf32> to vector<8x96xf32>
    %256 = vector.extract_strided_slice %255 {offsets = [0, 0], sizes = [8, 32], strides = [1, 1]} : vector<8x96xf32> to vector<8x32xf32>
    %257 = vector.extract_strided_slice %253 {offsets = [0, 0], sizes = [8, 32], strides = [1, 1]} : vector<8x96xf32> to vector<8x32xf32>
    %258 = arith.addf %256, %257 : vector<8x32xf32>
    %259 = arith.negf %258 : vector<8x32xf32>
    %260 = math.exp %259 : vector<8x32xf32>
    %cst_64 = arith.constant 1.000000e+00 : f32
    %261 = vector.broadcast %cst_64 : f32 to vector<8x32xf32>
    %262 = arith.addf %261, %260 : vector<8x32xf32>
    %263 = arith.divf %261, %262 : vector<8x32xf32>
    %264 = vector.extract_strided_slice %255 {offsets = [0, 32], sizes = [8, 32], strides = [1, 1]} : vector<8x96xf32> to vector<8x32xf32>
    %265 = vector.extract_strided_slice %253 {offsets = [0, 32], sizes = [8, 32], strides = [1, 1]} : vector<8x96xf32> to vector<8x32xf32>
    %266 = arith.addf %264, %265 : vector<8x32xf32>
    %267 = arith.negf %266 : vector<8x32xf32>
    %268 = math.exp %267 : vector<8x32xf32>
    %cst_65 = arith.constant 1.000000e+00 : f32
    %269 = vector.broadcast %cst_65 : f32 to vector<8x32xf32>
    %270 = arith.addf %269, %268 : vector<8x32xf32>
    %271 = arith.divf %269, %270 : vector<8x32xf32>
    %272 = vector.extract_strided_slice %255 {offsets = [0, 64], sizes = [8, 32], strides = [1, 1]} : vector<8x96xf32> to vector<8x32xf32>
    %273 = vector.extract_strided_slice %253 {offsets = [0, 64], sizes = [8, 32], strides = [1, 1]} : vector<8x96xf32> to vector<8x32xf32>
    %274 = arith.mulf %263, %273 : vector<8x32xf32>
    %275 = arith.addf %272, %274 : vector<8x32xf32>
    %276 = math.tanh %275 : vector<8x32xf32>
    %cst_66 = arith.constant 1.000000e+00 : f32
    %277 = vector.broadcast %cst_66 : f32 to vector<8x32xf32>
    %278 = arith.subf %277, %271 : vector<8x32xf32>
    %279 = arith.mulf %278, %276 : vector<8x32xf32>
    %280 = arith.mulf %271, %250 : vector<8x32xf32>
    %281 = arith.addf %279, %280 : vector<8x32xf32>
    %cst_67 = arith.constant dense<0.000000e+00> : vector<8x96xf32>
    %282 = tpu.matmul %281, %62, %cst_67 {dimension_numbers = #tpu.dot_dimension_numbers<[1], [0], [0], [1], [0, 0, 1, 1], [], []>} : vector<8x32xf32>, vector<32x96xf32>, vector<8x96xf32> -> vector<8x96xf32>
    %283 = vector.broadcast %63 : vector<1x96xf32> to vector<8x96xf32>
    %284 = arith.addf %282, %283 : vector<8x96xf32>
    %285 = vector.extract_strided_slice %61 {offsets = [0, 7, 0], sizes = [8, 1, 96], strides = [1, 1, 1]} : vector<8x8x96xf32> to vector<8x1x96xf32>
    %286 = vector.shape_cast %285 : vector<8x1x96xf32> to vector<8x96xf32>
    %287 = vector.extract_strided_slice %286 {offsets = [0, 0], sizes = [8, 32], strides = [1, 1]} : vector<8x96xf32> to vector<8x32xf32>
    %288 = vector.extract_strided_slice %284 {offsets = [0, 0], sizes = [8, 32], strides = [1, 1]} : vector<8x96xf32> to vector<8x32xf32>
    %289 = arith.addf %287, %288 : vector<8x32xf32>
    %290 = arith.negf %289 : vector<8x32xf32>
    %291 = math.exp %290 : vector<8x32xf32>
    %cst_68 = arith.constant 1.000000e+00 : f32
    %292 = vector.broadcast %cst_68 : f32 to vector<8x32xf32>
    %293 = arith.addf %292, %291 : vector<8x32xf32>
    %294 = arith.divf %292, %293 : vector<8x32xf32>
    %295 = vector.extract_strided_slice %286 {offsets = [0, 32], sizes = [8, 32], strides = [1, 1]} : vector<8x96xf32> to vector<8x32xf32>
    %296 = vector.extract_strided_slice %284 {offsets = [0, 32], sizes = [8, 32], strides = [1, 1]} : vector<8x96xf32> to vector<8x32xf32>
    %297 = arith.addf %295, %296 : vector<8x32xf32>
    %298 = arith.negf %297 : vector<8x32xf32>
    %299 = math.exp %298 : vector<8x32xf32>
    %cst_69 = arith.constant 1.000000e+00 : f32
    %300 = vector.broadcast %cst_69 : f32 to vector<8x32xf32>
    %301 = arith.addf %300, %299 : vector<8x32xf32>
    %302 = arith.divf %300, %301 : vector<8x32xf32>
    %303 = vector.extract_strided_slice %286 {offsets = [0, 64], sizes = [8, 32], strides = [1, 1]} : vector<8x96xf32> to vector<8x32xf32>
    %304 = vector.extract_strided_slice %284 {offsets = [0, 64], sizes = [8, 32], strides = [1, 1]} : vector<8x96xf32> to vector<8x32xf32>
    %305 = arith.mulf %294, %304 : vector<8x32xf32>
    %306 = arith.addf %303, %305 : vector<8x32xf32>
    %307 = math.tanh %306 : vector<8x32xf32>
    %cst_70 = arith.constant 1.000000e+00 : f32
    %308 = vector.broadcast %cst_70 : f32 to vector<8x32xf32>
    %309 = arith.subf %308, %302 : vector<8x32xf32>
    %310 = arith.mulf %309, %307 : vector<8x32xf32>
    %311 = arith.mulf %302, %281 : vector<8x32xf32>
    %312 = arith.addf %310, %311 : vector<8x32xf32>
    %c0_71 = arith.constant 0 : index
    %c0_72 = arith.constant 0 : index
    %313 = vector.load %arg12[%c0_71, %c0_72] : memref<1x32xf32, #tpu.memory_space<vmem>>, vector<1x32xf32>
    %314 = vector.broadcast %313 : vector<1x32xf32> to vector<8x32xf32>
    %315 = arith.mulf %312, %314 : vector<8x32xf32>
    %cst_73 = arith.constant dense<0.000000e+00> : vector<8xf32>
    %316 = vector.multi_reduction <add>, %315, %cst_73 [1] : vector<8x32xf32> to vector<8xf32>
    %317 = vector.shape_cast %316 : vector<8xf32> to vector<8x1xf32>
    %c0_74 = arith.constant 0 : index
    %c0_75 = arith.constant 0 : index
    %318 = vector.load %arg13[%c0_74, %c0_75] : memref<1x1xf32, #tpu.memory_space<vmem>>, vector<1x1xf32>
    %319 = vector.broadcast %318 : vector<1x1xf32> to vector<8x1xf32>
    %320 = arith.addf %317, %319 : vector<8x1xf32>
    %c0_76 = arith.constant 0 : index
    %c0_77 = arith.constant 0 : index
    %321 = vector.load %arg14[%c0_76, %c0_77] : memref<8x1xf32, #tpu.memory_space<vmem>>, vector<8x1xf32>
    tpu.vector_store %arg14[%c0_76, %c0_77], %320 {strides = array<i32>} : memref<8x1xf32, #tpu.memory_space<vmem>>, vector<8x1xf32>,
    return
  }
  func.func @transform_0(%arg0: i32) -> (i32, i32) {
    %c0_i32 = arith.constant 0 : i32
    %c0_i32_0 = arith.constant 0 : i32
    return %arg0, %c0_i32 : i32, i32
  }
  func.func @transform_1(%arg0: i32) -> (i32, i32) {
    %c0_i32 = arith.constant 0 : i32
    %c0_i32_0 = arith.constant 0 : i32
    return %arg0, %c0_i32 : i32, i32
  }
  func.func @transform_2(%arg0: i32) -> (i32, i32) {
    %c0_i32 = arith.constant 0 : i32
    %c0_i32_0 = arith.constant 0 : i32
    %c0_i32_1 = arith.constant 0 : i32
    return %c0_i32, %c0_i32_0 : i32, i32
  }
  func.func @transform_3(%arg0: i32) -> (i32, i32) {
    %c0_i32 = arith.constant 0 : i32
    %c0_i32_0 = arith.constant 0 : i32
    %c0_i32_1 = arith.constant 0 : i32
    return %c0_i32, %c0_i32_0 : i32, i32
  }
  func.func @transform_4(%arg0: i32) -> (i32, i32) {
    %c0_i32 = arith.constant 0 : i32
    %c0_i32_0 = arith.constant 0 : i32
    %c0_i32_1 = arith.constant 0 : i32
    return %c0_i32, %c0_i32_0 : i32, i32
  }
  func.func @transform_5(%arg0: i32) -> (i32, i32, i32) {
    %c0_i32 = arith.constant 0 : i32
    %c0_i32_0 = arith.constant 0 : i32
    %c0_i32_1 = arith.constant 0 : i32
    %c0_i32_2 = arith.constant 0 : i32
    return %c0_i32, %c0_i32_0, %c0_i32_1 : i32, i32, i32
  }
  func.func @transform_6(%arg0: i32) -> (i32, i32) {
    %c0_i32 = arith.constant 0 : i32
    %c0_i32_0 = arith.constant 0 : i32
    %c0_i32_1 = arith.constant 0 : i32
    return %c0_i32, %c0_i32_0 : i32, i32
  }
  func.func @transform_7(%arg0: i32) -> (i32, i32) {
    %c0_i32 = arith.constant 0 : i32
    %c0_i32_0 = arith.constant 0 : i32
    %c0_i32_1 = arith.constant 0 : i32
    return %c0_i32, %c0_i32_0 : i32, i32
  }
  func.func @transform_8(%arg0: i32) -> (i32, i32) {
    %c0_i32 = arith.constant 0 : i32
    %c0_i32_0 = arith.constant 0 : i32
    %c0_i32_1 = arith.constant 0 : i32
    return %c0_i32, %c0_i32_0 : i32, i32
  }
  func.func @transform_9(%arg0: i32) -> (i32, i32) {
    %c0_i32 = arith.constant 0 : i32
    %c0_i32_0 = arith.constant 0 : i32
    %c0_i32_1 = arith.constant 0 : i32
    return %c0_i32, %c0_i32_0 : i32, i32
  }
  func.func @transform_10(%arg0: i32) -> (i32, i32) {
    %c0_i32 = arith.constant 0 : i32
    %c0_i32_0 = arith.constant 0 : i32
    %c0_i32_1 = arith.constant 0 : i32
    return %c0_i32, %c0_i32_0 : i32, i32
  }
  func.func @transform_11(%arg0: i32) -> (i32, i32) {
    %c0_i32 = arith.constant 0 : i32
    %c0_i32_0 = arith.constant 0 : i32
    %c0_i32_1 = arith.constant 0 : i32
    return %c0_i32, %c0_i32_0 : i32, i32
  }
  func.func @transform_12(%arg0: i32) -> (i32, i32) {
    %c0_i32 = arith.constant 0 : i32
    %c0_i32_0 = arith.constant 0 : i32
    %c0_i32_1 = arith.constant 0 : i32
    return %c0_i32, %c0_i32_0 : i32, i32
  }
  func.func @transform_13(%arg0: i32) -> (i32, i32) {
    %c0_i32 = arith.constant 0 : i32
    %c0_i32_0 = arith.constant 0 : i32
    return %arg0, %c0_i32 : i32, i32
  }
}

</mosaic_0001>

<llo_original>
// kernel: cross_attention_gru_forward.1
$region0: #{cross_attention_gru_forward.1}
  #allocation0 [shape = 'u32[]', space=smem, size = 0x4, offset = 0x4, fixed_abs, tag = 'smem constant byte address 0x4 - core index']
  #allocation1 [shape = 'u32[72,128]{1,0:T(1,128)}', space=vmem, size = 0x9000, scoped, tag = 'internal scratch']
  #allocation2 [shape = 'f32[1,1]{1,0:T(1,128)S(1)}', space=vmem, size = 0x200, scoped, tag = 'scoped memory for cross_attention_gru_forward.1']
  %s0 = inlined_call_operand.vmem [shape: bf16[64,16], index: 0, kind: input, shape index: {}]
  %s1 = inlined_call_operand.vmem [shape: bf16[64,12], index: 1, kind: input, shape index: {}]
  %s2 = inlined_call_operand.vmem [shape: bf16[16,16], index: 2, kind: input, shape index: {}]
  %s3 = inlined_call_operand.vmem [shape: bf16[12,16], index: 3, kind: input, shape index: {}]
  %s4 = inlined_call_operand.vmem [shape: bf16[12,16], index: 4, kind: input, shape index: {}]
  %s5 = inlined_call_operand.vmem [shape: bf16[2,8,16], index: 5, kind: input, shape index: {}]
  %s6 = inlined_call_operand.vmem [shape: f32[1,16], index: 6, kind: input, shape index: {}]
  %s7 = inlined_call_operand.vmem [shape: bf16[16,96], index: 7, kind: input, shape index: {}]
  %s8 = inlined_call_operand.vmem [shape: f32[1,96], index: 8, kind: input, shape index: {}]
  %s9 = inlined_call_operand.vmem [shape: f32[32,96], index: 9, kind: input, shape index: {}]
  %s10 = inlined_call_operand.vmem [shape: f32[1,96], index: 10, kind: input, shape index: {}]
  %s11 = inlined_call_operand.vmem [shape: f32[1,32], index: 11, kind: input, shape index: {}]
  %s12 = inlined_call_operand.<no memory space> [shape: f32[1,1], index: 12, kind: input, shape index: {}]
  %s13 = inlined_call_operand.vmem [shape: f32[8,1], index: 13, kind: output, shape index: {}]
  %s14 = sld [smem:[#allocation0]]
  $region62: #{cross_attention_gru_forward.1} parent=0
    _
  %s16 = ssub.s32 1, %s14
  %s17 = scalar_select 0, %s16, %s14
  %v18 = vstv %s12
  %19 = vst [vmem:[#allocation2] sm:$0x1] %v18
  // Predicated region
  $region2: #{cross_attention_gru_forward.1} parent=0 // pred_check
    _
  $region3: #{cross_attention_gru_forward.1} parent=0 // pred_check_branch
    %21 = sbr.rel (0) target = $region5
  $region4: #{cross_attention_gru_forward.1} parent=0 // pred_region
    _
  $region5: #{cross_attention_gru_forward.1} parent=0 // pred_fallthru
    _
  // Predicated region
  $region6: #{cross_attention_gru_forward.1} parent=0 // pred_check
    _
  $region7: #{cross_attention_gru_forward.1} parent=0 // pred_check_branch
    %23 = sbr.rel (0) target = $region9
  $region8: #{cross_attention_gru_forward.1} parent=0 // pred_region
    _
  $region9: #{cross_attention_gru_forward.1} parent=0 // pred_fallthru
    _
  // Predicated region
  $region10: #{cross_attention_gru_forward.1} parent=0 // pred_check
    _
  $region11: #{cross_attention_gru_forward.1} parent=0 // pred_check_branch
    %25 = sbr.rel (0) target = $region13
  $region12: #{cross_attention_gru_forward.1} parent=0 // pred_region
    _
  $region13: #{cross_attention_gru_forward.1} parent=0 // pred_fallthru
    _
  // Predicated region
  $region14: #{cross_attention_gru_forward.1} parent=0 // pred_check
    _
  $region15: #{cross_attention_gru_forward.1} parent=0 // pred_check_branch
    %27 = sbr.rel (0) target = $region17
  $region16: #{cross_attention_gru_forward.1} parent=0 // pred_region
    _
  $region17: #{cross_attention_gru_forward.1} parent=0 // pred_fallthru
    _
  // Predicated region
  $region18: #{cross_attention_gru_forward.1} parent=0 // pred_check
    _
  $region19: #{cross_attention_gru_forward.1} parent=0 // pred_check_branch
    %29 = sbr.rel (0) target = $region21
  $region20: #{cross_attention_gru_forward.1} parent=0 // pred_region
    _
  $region21: #{cross_attention_gru_forward.1} parent=0 // pred_fallthru
    _
  // Predicated region
  $region22: #{cross_attention_gru_forward.1} parent=0 // pred_check
    _
  $region23: #{cross_attention_gru_forward.1} parent=0 // pred_check_branch
    %31 = sbr.rel (0) target = $region25
  $region24: #{cross_attention_gru_forward.1} parent=0 // pred_region
    _
  $region25: #{cross_attention_gru_forward.1} parent=0 // pred_fallthru
    _
  // Predicated region
  $region26: #{cross_attention_gru_forward.1} parent=0 // pred_check
    _
  $region27: #{cross_attention_gru_forward.1} parent=0 // pred_check_branch
    %33 = sbr.rel (0) target = $region29
  $region28: #{cross_attention_gru_forward.1} parent=0 // pred_region
    _
  $region29: #{cross_attention_gru_forward.1} parent=0 // pred_fallthru
    _
  // Predicated region
  $region30: #{cross_attention_gru_forward.1} parent=0 // pred_check
    _
  $region31: #{cross_attention_gru_forward.1} parent=0 // pred_check_branch
    %35 = sbr.rel (0) target = $region33
  $region32: #{cross_attention_gru_forward.1} parent=0 // pred_region
    _
  $region33: #{cross_attention_gru_forward.1} parent=0 // pred_fallthru
    _
  // Predicated region
  $region34: #{cross_attention_gru_forward.1} parent=0 // pred_check
    _
  $region35: #{cross_attention_gru_forward.1} parent=0 // pred_check_branch
    %37 = sbr.rel (0) target = $region37
  $region36: #{cross_attention_gru_forward.1} parent=0 // pred_region
    _
  $region37: #{cross_attention_gru_forward.1} parent=0 // pred_fallthru
    _
  // Predicated region
  $region38: #{cross_attention_gru_forward.1} parent=0 // pred_check
    _
  $region39: #{cross_attention_gru_forward.1} parent=0 // pred_check_branch
    %39 = sbr.rel (0) target = $region41
  $region40: #{cross_attention_gru_forward.1} parent=0 // pred_region
    _
  $region41: #{cross_attention_gru_forward.1} parent=0 // pred_fallthru
    _
  // Predicated region
  $region42: #{cross_attention_gru_forward.1} parent=0 // pred_check
    _
  $region43: #{cross_attention_gru_forward.1} parent=0 // pred_check_branch
    %41 = sbr.rel (0) target = $region45
  $region44: #{cross_attention_gru_forward.1} parent=0 // pred_region
    _
  $region45: #{cross_attention_gru_forward.1} parent=0 // pred_fallthru
    _
  // Predicated region
  $region46: #{cross_attention_gru_forward.1} parent=0 // pred_check
    _
  $region47: #{cross_attention_gru_forward.1} parent=0 // pred_check_branch
    %43 = sbr.rel (0) target = $region49
  $region48: #{cross_attention_gru_forward.1} parent=0 // pred_region
    _
  $region49: #{cross_attention_gru_forward.1} parent=0 // pred_fallthru
    _
  // Predicated region
  $region50: #{cross_attention_gru_forward.1} parent=0 // pred_check
    _
  $region51: #{cross_attention_gru_forward.1} parent=0 // pred_check_branch
    %45 = sbr.rel (0) target = $region53
  $region52: #{cross_attention_gru_forward.1} parent=0 // pred_region
    _
  $region53: #{cross_attention_gru_forward.1} parent=0 // pred_fallthru
    _
  %v47 = vld [vmem:[%s0] sm:$0xf]
  %v48 = vld [vmem:[%s0 + $0x4] sm:$0xf]
  %v49 = vld [vmem:[%s0 + $0x8] sm:$0xf]
  %v50 = vld [vmem:[%s0 + $0xc] sm:$0xf]
  %v51 = vld [vmem:[%s0 + $0x10] sm:$0xf]
  %v52 = vld [vmem:[%s0 + $0x14] sm:$0xf]
  %v53 = vld [vmem:[%s0 + $0x18] sm:$0xf]
  %v54 = vld [vmem:[%s0 + $0x1c] sm:$0xf]
  %v55 = vld [vmem:[%s1] sm:$0xf]
  %v56 = vld [vmem:[%s1 + $0x4] sm:$0xf]
  %v57 = vld [vmem:[%s1 + $0x8] sm:$0xf]
  %v58 = vld [vmem:[%s1 + $0xc] sm:$0xf]
  %v59 = vld [vmem:[%s1 + $0x10] sm:$0xf]
  %v60 = vld [vmem:[%s1 + $0x14] sm:$0xf]
  %v61 = vld [vmem:[%s1 + $0x18] sm:$0xf]
  %v62 = vld [vmem:[%s1 + $0x1c] sm:$0xf]
  %v63 = vld [vmem:[%s2] sm:$0xf]
  %v64 = vld [vmem:[%s2 + $0x4] sm:$0xf]
  %v73 = vunpack.c.l.b16 %v47
  %v74 = vunpack.c.l.b16 %v48
  %v75 = vunpack.c.l.b16 %v49
  %v76 = vunpack.c.l.b16 %v50
  %v77 = vunpack.c.l.b16 %v51
  %v78 = vunpack.c.l.b16 %v52
  %v79 = vunpack.c.l.b16 %v53
  %v80 = vunpack.c.l.b16 %v54
  %v81 = vpack.c.b16 %v74, %v73
  %v82 = vpack.c.b16 %v76, %v75
  %v83 = vpack.c.b16 %v78, %v77
  %v84 = vpack.c.b16 %v80, %v79
  %v87 = vunpack.c.l.b16 %v63
  %v88 = vunpack.c.l.b16 %v64
  %v89 = vpack.c.b16 %v88, %v87
  %vm91 = vcmask 130048
  %v93 = vsel %vm91, %v81, 0
  %v96 = vsel %vm91, %v82, 0
  %v99 = vsel %vm91, %v83, 0
  %v102 = vsel %vm91, %v84, 0
  %104 = vmatpush.bf16.msra.mxu0 0
  %105 = vmatpush.bf16.msra.mxu0 0
  %106 = vmatpush.bf16.msra.mxu0 0
  %107 = vmatpush.bf16.msra.mxu0 0
  %108 = vmatpush.bf16.msra.mxu0 0
  %109 = vmatpush.bf16.msra.mxu0 0
  %110 = vmatpush.bf16.msra.mxu0 0
  %111 = vmatpush.bf16.msra.mxu0 %v89
  %112 = vmatmul.bf16.gmra.mxu0 %v93
  %v113 = vpop.f32.mrf.mxu0
  %v114 = vadd.f32 0.0, %v113
  %v115 = vpop.f32.mrf.mxu0
  %v116 = vadd.f32 0.0, %v115
  %117 = vmatmul.bf16.gmra.mxu0 %v96
  %v118 = vpop.f32.mrf.mxu0
  %v119 = vadd.f32 0.0, %v118
  %v120 = vpop.f32.mrf.mxu0
  %v121 = vadd.f32 0.0, %v120
  %122 = vmatmul.bf16.gmra.mxu0 %v99
  %v123 = vpop.f32.mrf.mxu0
  %v124 = vadd.f32 0.0, %v123
  %v125 = vpop.f32.mrf.mxu0
  %v126 = vadd.f32 0.0, %v125
  %127 = vmatmul.bf16.gmra.mxu0 %v102
  %v128 = vpop.f32.mrf.mxu0
  %v129 = vadd.f32 0.0, %v128
  %v130 = vpop.f32.mrf.mxu0
  %v131 = vadd.f32 0.0, %v130
  %132 = vdwg.mxu0
  %v133 = vld [vmem:[%s3] sm:$0xf]
  %v134 = vld [vmem:[%s3 + $0x4] sm:$0x3]
  %v143 = vunpack.c.l.b16 %v55
  %v144 = vunpack.c.l.b16 %v56
  %v145 = vunpack.c.l.b16 %v57
  %v146 = vunpack.c.l.b16 %v58
  %v147 = vunpack.c.l.b16 %v59
  %v148 = vunpack.c.l.b16 %v60
  %v149 = vunpack.c.l.b16 %v61
  %v150 = vunpack.c.l.b16 %v62
  %v151 = vpack.c.b16 %v144, %v143
  %v152 = vpack.c.b16 %v146, %v145
  %v153 = vpack.c.b16 %v148, %v147
  %v154 = vpack.c.b16 %v150, %v149
  %v157 = vunpack.c.l.b16 %v133
  %v158 = vunpack.c.l.b16 %v134
  %v159 = vpack.c.b16 %v158, %v157
  %vm160 = vcmask 97280
  %v162 = vsel %vm160, %v151, 0
  %v165 = vsel %vm160, %v152, 0
  %v168 = vsel %vm160, %v153, 0
  %v171 = vsel %vm160, %v154, 0
  %vm173 = vcmask 1045504
  %v175 = vsel %vm173, %v159, 0
  %177 = vmatpush.bf16.msra.mxu0 0
  %178 = vmatpush.bf16.msra.mxu0 0
  %179 = vmatpush.bf16.msra.mxu0 0
  %180 = vmatpush.bf16.msra.mxu0 0
  %181 = vmatpush.bf16.msra.mxu0 0
  %182 = vmatpush.bf16.msra.mxu0 0
  %183 = vmatpush.bf16.msra.mxu0 0
  %184 = vmatpush.bf16.msra.mxu0 %v175
  %185 = vmatmul.bf16.gmra.mxu0 %v162
  %v186 = vpop.f32.mrf.mxu0
  %v187 = vadd.f32 0.0, %v186
  %v188 = vpop.f32.mrf.mxu0
  %v189 = vadd.f32 0.0, %v188
  %190 = vmatmul.bf16.gmra.mxu0 %v165
  %v191 = vpop.f32.mrf.mxu0
  %v192 = vadd.f32 0.0, %v191
  %v193 = vpop.f32.mrf.mxu0
  %v194 = vadd.f32 0.0, %v193
  %195 = vmatmul.bf16.gmra.mxu0 %v168
  %v196 = vpop.f32.mrf.mxu0
  %v197 = vadd.f32 0.0, %v196
  %v198 = vpop.f32.mrf.mxu0
  %v199 = vadd.f32 0.0, %v198
  %200 = vmatmul.bf16.gmra.mxu0 %v171
  %v201 = vpop.f32.mrf.mxu0
  %v202 = vadd.f32 0.0, %v201
  %v203 = vpop.f32.mrf.mxu0
  %v204 = vadd.f32 0.0, %v203
  %205 = vdwg.mxu0
  %v206 = vld [vmem:[%s4] sm:$0xf]
  %v207 = vld [vmem:[%s4 + $0x4] sm:$0x3]
  %v210 = vunpack.c.l.b16 %v206
  %v211 = vunpack.c.l.b16 %v207
  %v212 = vpack.c.b16 %v211, %v210
  %v214 = vsel %vm173, %v212, 0
  %216 = vmatpush.bf16.msra.mxu0 0
  %217 = vmatpush.bf16.msra.mxu0 0
  %218 = vmatpush.bf16.msra.mxu0 0
  %219 = vmatpush.bf16.msra.mxu0 0
  %220 = vmatpush.bf16.msra.mxu0 0
  %221 = vmatpush.bf16.msra.mxu0 0
  %222 = vmatpush.bf16.msra.mxu0 0
  %223 = vmatpush.bf16.msra.mxu0 %v214
  %224 = vmatmul.bf16.gmra.mxu0 %v162
  %v225 = vpop.f32.mrf.mxu0
  %v226 = vadd.f32 0.0, %v225
  %v227 = vpop.f32.mrf.mxu0
  %v228 = vadd.f32 0.0, %v227
  %229 = vmatmul.bf16.gmra.mxu0 %v165
  %v230 = vpop.f32.mrf.mxu0
  %v231 = vadd.f32 0.0, %v230
  %v232 = vpop.f32.mrf.mxu0
  %v233 = vadd.f32 0.0, %v232
  %234 = vmatmul.bf16.gmra.mxu0 %v168
  %v235 = vpop.f32.mrf.mxu0
  %v236 = vadd.f32 0.0, %v235
  %v237 = vpop.f32.mrf.mxu0
  %v238 = vadd.f32 0.0, %v237
  %239 = vmatmul.bf16.gmra.mxu0 %v171
  %v240 = vpop.f32.mrf.mxu0
  %v241 = vadd.f32 0.0, %v240
  %v242 = vpop.f32.mrf.mxu0
  %v243 = vadd.f32 0.0, %v242
  %244 = vdwg.mxu0
  %vm245 = vcmask 64512
  %v247 = vsel %vm245, %v114, 0
  %v250 = vsel %vm245, %v187, 0
  %252 = vmatpush.xpose.msra.mxu0 0.0
  %253 = vmatpush.xpose.msra.mxu0 0.0
  %254 = vmatpush.xpose.msra.mxu0 0.0
  %255 = vmatpush.xpose.msra.mxu0 0.0
  %256 = vmatpush.xpose.msra.mxu0 0.0
  %257 = vmatpush.xpose.msra.mxu0 0.0
  %258 = vmatpush.xpose.msra.mxu0 0.0
  %259 = vmatpush.xpose.msra.mxu0 0.0
  %260 = vmatpush.xpose.msra.mxu0 0.0
  %261 = vmatpush.xpose.msra.mxu0 0.0
  %262 = vmatpush.xpose.msra.mxu0 0.0
  %263 = vmatpush.xpose.msra.mxu0 0.0
  %264 = vmatpush.xpose.msra.mxu0 0.0
  %265 = vmatpush.xpose.msra.mxu0 0.0
  %266 = vmatpush.xpose.msra.mxu0 0.0
  %267 = vmatpush.xpose.msra.mxu0 %v250
  %268 = vmatmul.f32.gmra.mxu0 %v247
  %v269 = vpop.f32.mrf.mxu0
  %v270 = vadd.f32 0.0, %v269
  %271 = vdwg.mxu0
  %v273 = vsel %vm245, %v116, 0
  %v276 = vsel %vm245, %v189, 0
  %278 = vmatpush.xpose.msra.mxu0 0.0
  %279 = vmatpush.xpose.msra.mxu0 0.0
  %280 = vmatpush.xpose.msra.mxu0 0.0
  %281 = vmatpush.xpose.msra.mxu0 0.0
  %282 = vmatpush.xpose.msra.mxu0 0.0
  %283 = vmatpush.xpose.msra.mxu0 0.0
  %284 = vmatpush.xpose.msra.mxu0 0.0
  %285 = vmatpush.xpose.msra.mxu0 0.0
  %286 = vmatpush.xpose.msra.mxu0 0.0
  %287 = vmatpush.xpose.msra.mxu0 0.0
  %288 = vmatpush.xpose.msra.mxu0 0.0
  %289 = vmatpush.xpose.msra.mxu0 0.0
  %290 = vmatpush.xpose.msra.mxu0 0.0
  %291 = vmatpush.xpose.msra.mxu0 0.0
  %292 = vmatpush.xpose.msra.mxu0 0.0
  %293 = vmatpush.xpose.msra.mxu0 %v276
  %294 = vmatmul.f32.gmra.mxu0 %v273
  %v295 = vpop.f32.mrf.mxu0
  %v296 = vadd.f32 0.0, %v295
  %297 = vdwg.mxu0
  %v299 = vsel %vm245, %v119, 0
  %v302 = vsel %vm245, %v192, 0
  %304 = vmatpush.xpose.msra.mxu0 0.0
  %305 = vmatpush.xpose.msra.mxu0 0.0
  %306 = vmatpush.xpose.msra.mxu0 0.0
  %307 = vmatpush.xpose.msra.mxu0 0.0
  %308 = vmatpush.xpose.msra.mxu0 0.0
  %309 = vmatpush.xpose.msra.mxu0 0.0
  %310 = vmatpush.xpose.msra.mxu0 0.0
  %311 = vmatpush.xpose.msra.mxu0 0.0
  %312 = vmatpush.xpose.msra.mxu0 0.0
  %313 = vmatpush.xpose.msra.mxu0 0.0
  %314 = vmatpush.xpose.msra.mxu0 0.0
  %315 = vmatpush.xpose.msra.mxu0 0.0
  %316 = vmatpush.xpose.msra.mxu0 0.0
  %317 = vmatpush.xpose.msra.mxu0 0.0
  %318 = vmatpush.xpose.msra.mxu0 0.0
  %319 = vmatpush.xpose.msra.mxu0 %v302
  %320 = vmatmul.f32.gmra.mxu0 %v299
  %v321 = vpop.f32.mrf.mxu0
  %v322 = vadd.f32 0.0, %v321
  %323 = vdwg.mxu0
  %v325 = vsel %vm245, %v121, 0
  %v328 = vsel %vm245, %v194, 0
  %330 = vmatpush.xpose.msra.mxu0 0.0
  %331 = vmatpush.xpose.msra.mxu0 0.0
  %332 = vmatpush.xpose.msra.mxu0 0.0
  %333 = vmatpush.xpose.msra.mxu0 0.0
  %334 = vmatpush.xpose.msra.mxu0 0.0
  %335 = vmatpush.xpose.msra.mxu0 0.0
  %336 = vmatpush.xpose.msra.mxu0 0.0
  %337 = vmatpush.xpose.msra.mxu0 0.0
  %338 = vmatpush.xpose.msra.mxu0 0.0
  %339 = vmatpush.xpose.msra.mxu0 0.0
  %340 = vmatpush.xpose.msra.mxu0 0.0
  %341 = vmatpush.xpose.msra.mxu0 0.0
  %342 = vmatpush.xpose.msra.mxu0 0.0
  %343 = vmatpush.xpose.msra.mxu0 0.0
  %344 = vmatpush.xpose.msra.mxu0 0.0
  %345 = vmatpush.xpose.msra.mxu0 %v328
  %346 = vmatmul.f32.gmra.mxu0 %v325
  %v347 = vpop.f32.mrf.mxu0
  %v348 = vadd.f32 0.0, %v347
  %349 = vdwg.mxu0
  %v351 = vsel %vm245, %v124, 0
  %v354 = vsel %vm245, %v197, 0
  %356 = vmatpush.xpose.msra.mxu0 0.0
  %357 = vmatpush.xpose.msra.mxu0 0.0
  %358 = vmatpush.xpose.msra.mxu0 0.0
  %359 = vmatpush.xpose.msra.mxu0 0.0
  %360 = vmatpush.xpose.msra.mxu0 0.0
  %361 = vmatpush.xpose.msra.mxu0 0.0
  %362 = vmatpush.xpose.msra.mxu0 0.0
  %363 = vmatpush.xpose.msra.mxu0 0.0
  %364 = vmatpush.xpose.msra.mxu0 0.0
  %365 = vmatpush.xpose.msra.mxu0 0.0
  %366 = vmatpush.xpose.msra.mxu0 0.0
  %367 = vmatpush.xpose.msra.mxu0 0.0
  %368 = vmatpush.xpose.msra.mxu0 0.0
  %369 = vmatpush.xpose.msra.mxu0 0.0
  %370 = vmatpush.xpose.msra.mxu0 0.0
  %371 = vmatpush.xpose.msra.mxu0 %v354
  %372 = vmatmul.f32.gmra.mxu0 %v351
  %v373 = vpop.f32.mrf.mxu0
  %v374 = vadd.f32 0.0, %v373
  %375 = vdwg.mxu0
  %v377 = vsel %vm245, %v126, 0
  %v380 = vsel %vm245, %v199, 0
  %382 = vmatpush.xpose.msra.mxu0 0.0
  %383 = vmatpush.xpose.msra.mxu0 0.0
  %384 = vmatpush.xpose.msra.mxu0 0.0
  %385 = vmatpush.xpose.msra.mxu0 0.0
  %386 = vmatpush.xpose.msra.mxu0 0.0
  %387 = vmatpush.xpose.msra.mxu0 0.0
  %388 = vmatpush.xpose.msra.mxu0 0.0
  %389 = vmatpush.xpose.msra.mxu0 0.0
  %390 = vmatpush.xpose.msra.mxu0 0.0
  %391 = vmatpush.xpose.msra.mxu0 0.0
  %392 = vmatpush.xpose.msra.mxu0 0.0
  %393 = vmatpush.xpose.msra.mxu0 0.0
  %394 = vmatpush.xpose.msra.mxu0 0.0
  %395 = vmatpush.xpose.msra.mxu0 0.0
  %396 = vmatpush.xpose.msra.mxu0 0.0
  %397 = vmatpush.xpose.msra.mxu0 %v380
  %398 = vmatmul.f32.gmra.mxu0 %v377
  %v399 = vpop.f32.mrf.mxu0
  %v400 = vadd.f32 0.0, %v399
  %401 = vdwg.mxu0
  %v403 = vsel %vm245, %v129, 0
  %v406 = vsel %vm245, %v202, 0
  %408 = vmatpush.xpose.msra.mxu0 0.0
  %409 = vmatpush.xpose.msra.mxu0 0.0
  %410 = vmatpush.xpose.msra.mxu0 0.0
  %411 = vmatpush.xpose.msra.mxu0 0.0
  %412 = vmatpush.xpose.msra.mxu0 0.0
  %413 = vmatpush.xpose.msra.mxu0 0.0
  %414 = vmatpush.xpose.msra.mxu0 0.0
  %415 = vmatpush.xpose.msra.mxu0 0.0
  %416 = vmatpush.xpose.msra.mxu0 0.0
  %417 = vmatpush.xpose.msra.mxu0 0.0
  %418 = vmatpush.xpose.msra.mxu0 0.0
  %419 = vmatpush.xpose.msra.mxu0 0.0
  %420 = vmatpush.xpose.msra.mxu0 0.0
  %421 = vmatpush.xpose.msra.mxu0 0.0
  %422 = vmatpush.xpose.msra.mxu0 0.0
  %423 = vmatpush.xpose.msra.mxu0 %v406
  %424 = vmatmul.f32.gmra.mxu0 %v403
  %v425 = vpop.f32.mrf.mxu0
  %v426 = vadd.f32 0.0, %v425
  %427 = vdwg.mxu0
  %v429 = vsel %vm245, %v131, 0
  %v432 = vsel %vm245, %v204, 0
  %434 = vmatpush.xpose.msra.mxu0 0.0
  %435 = vmatpush.xpose.msra.mxu0 0.0
  %436 = vmatpush.xpose.msra.mxu0 0.0
  %437 = vmatpush.xpose.msra.mxu0 0.0
  %438 = vmatpush.xpose.msra.mxu0 0.0
  %439 = vmatpush.xpose.msra.mxu0 0.0
  %440 = vmatpush.xpose.msra.mxu0 0.0
  %441 = vmatpush.xpose.msra.mxu0 0.0
  %442 = vmatpush.xpose.msra.mxu0 0.0
  %443 = vmatpush.xpose.msra.mxu0 0.0
  %444 = vmatpush.xpose.msra.mxu0 0.0
  %445 = vmatpush.xpose.msra.mxu0 0.0
  %446 = vmatpush.xpose.msra.mxu0 0.0
  %447 = vmatpush.xpose.msra.mxu0 0.0
  %448 = vmatpush.xpose.msra.mxu0 0.0
  %449 = vmatpush.xpose.msra.mxu0 %v432
  %450 = vmatmul.f32.gmra.mxu0 %v429
  %v451 = vpop.f32.mrf.mxu0
  %v452 = vadd.f32 0.0, %v451
  %453 = vdwg.mxu0
  %v454 = vsel %vm245, %v270, -inf
  %455 = vmax.xlane.f32.xlu0 %v454
  %v456 = vpop.xlane.xlu0 %455
  %v457 = vsel %vm245, %v296, -inf
  %458 = vmax.xlane.f32.xlu0 %v457
  %v459 = vpop.xlane.xlu0 %458
  %v460 = vsel %vm245, %v322, -inf
  %461 = vmax.xlane.f32.xlu0 %v460
  %v462 = vpop.xlane.xlu0 %461
  %v463 = vsel %vm245, %v348, -inf
  %464 = vmax.xlane.f32.xlu0 %v463
  %v465 = vpop.xlane.xlu0 %464
  %v466 = vsel %vm245, %v374, -inf
  %467 = vmax.xlane.f32.xlu0 %v466
  %v468 = vpop.xlane.xlu0 %467
  %v469 = vsel %vm245, %v400, -inf
  %470 = vmax.xlane.f32.xlu0 %v469
  %v471 = vpop.xlane.xlu0 %470
  %v472 = vsel %vm245, %v426, -inf
  %473 = vmax.xlane.f32.xlu0 %v472
  %v474 = vpop.xlane.xlu0 %473
  %v475 = vsel %vm245, %v452, -inf
  %476 = vmax.xlane.f32.xlu0 %v475
  %v477 = vpop.xlane.xlu0 %476
  %v478 = vsub.f32 %v270, %v456
  %v479 = vsub.f32 %v296, %v459
  %v480 = vsub.f32 %v322, %v462
  %v481 = vsub.f32 %v348, %v465
  %v482 = vsub.f32 %v374, %v468
  %v483 = vsub.f32 %v400, %v471
  %v484 = vsub.f32 %v426, %v474
  %v485 = vsub.f32 %v452, %v477
  %v486 = vmul.f32 %v478, 1.442695
  %v487 = vpow.pop %v486
  %v488 = vmul.f32 %v479, 1.442695
  %v489 = vpow.pop %v488
  %v490 = vmul.f32 %v480, 1.442695
  %v491 = vpow.pop %v490
  %v492 = vmul.f32 %v481, 1.442695
  %v493 = vpow.pop %v492
  %v494 = vmul.f32 %v482, 1.442695
  %v495 = vpow.pop %v494
  %v496 = vmul.f32 %v483, 1.442695
  %v497 = vpow.pop %v496
  %v498 = vmul.f32 %v484, 1.442695
  %v499 = vpow.pop %v498
  %v500 = vmul.f32 %v485, 1.442695
  %v501 = vpow.pop %v500
  %v502 = vsel %vm245, %v487, 0.0
  %503 = vadd.xlane.f32.xlu0 %v502
  %v504 = vpop.xlane.xlu0 %503
  %v505 = vsel %vm245, %v489, 0.0
  %506 = vadd.xlane.f32.xlu0 %v505
  %v507 = vpop.xlane.xlu0 %506
  %v508 = vsel %vm245, %v491, 0.0
  %509 = vadd.xlane.f32.xlu0 %v508
  %v510 = vpop.xlane.xlu0 %509
  %v511 = vsel %vm245, %v493, 0.0
  %512 = vadd.xlane.f32.xlu0 %v511
  %v513 = vpop.xlane.xlu0 %512
  %v514 = vsel %vm245, %v495, 0.0
  %515 = vadd.xlane.f32.xlu0 %v514
  %v516 = vpop.xlane.xlu0 %515
  %v517 = vsel %vm245, %v497, 0.0
  %518 = vadd.xlane.f32.xlu0 %v517
  %v519 = vpop.xlane.xlu0 %518
  %v520 = vsel %vm245, %v499, 0.0
  %521 = vadd.xlane.f32.xlu0 %v520
  %v522 = vpop.xlane.xlu0 %521
  %v523 = vsel %vm245, %v501, 0.0
  %524 = vadd.xlane.f32.xlu0 %v523
  %v525 = vpop.xlane.xlu0 %524
  %v526 = vrcp.pop %v504
  %v527 = vmul.f32 %v504, %v526
  %v528 = vsub.f32 1.0, %v527
  %v529 = vmul.f32 %v526, %v528
  %v530 = vadd.f32 %v526, %v529
  %vm531 = vweird.f32 %v504
  %vm532 = vweird.f32 %v526
  %vm533 = vmor %vm531, %vm532
  %v534 = vsel %vm533, %v526, %v530
  %v535 = vand.u32 2147483647, %v504
  %vm536 = vcmp.eq.f32.partialorder %v535, 8.507059e+37
  %v537 = vand.u32 %v504, 2147483648
  %v538 = vor.u32 1.1754944e-38, %v537
  %v539 = vsel %vm536, %v538, %v534
  %v540 = vmul.f32 %v487, %v539
  %v541 = vrcp.pop %v507
  %v542 = vmul.f32 %v507, %v541
  %v543 = vsub.f32 1.0, %v542
  %v544 = vmul.f32 %v541, %v543
  %v545 = vadd.f32 %v541, %v544
  %vm546 = vweird.f32 %v507
  %vm547 = vweird.f32 %v541
  %vm548 = vmor %vm546, %vm547
  %v549 = vsel %vm548, %v541, %v545
  %v550 = vand.u32 2147483647, %v507
  %vm551 = vcmp.eq.f32.partialorder %v550, 8.507059e+37
  %v552 = vand.u32 %v507, 2147483648
  %v553 = vor.u32 1.1754944e-38, %v552
  %v554 = vsel %vm551, %v553, %v549
  %v555 = vmul.f32 %v489, %v554
  %v556 = vrcp.pop %v510
  %v557 = vmul.f32 %v510, %v556
  %v558 = vsub.f32 1.0, %v557
  %v559 = vmul.f32 %v556, %v558
  %v560 = vadd.f32 %v556, %v559
  %vm561 = vweird.f32 %v510
  %vm562 = vweird.f32 %v556
  %vm563 = vmor %vm561, %vm562
  %v564 = vsel %vm563, %v556, %v560
  %v565 = vand.u32 2147483647, %v510
  %vm566 = vcmp.eq.f32.partialorder %v565, 8.507059e+37
  %v567 = vand.u32 %v510, 2147483648
  %v568 = vor.u32 1.1754944e-38, %v567
  %v569 = vsel %vm566, %v568, %v564
  %v570 = vmul.f32 %v491, %v569
  %v571 = vrcp.pop %v513
  %v572 = vmul.f32 %v513, %v571
  %v573 = vsub.f32 1.0, %v572
  %v574 = vmul.f32 %v571, %v573
  %v575 = vadd.f32 %v571, %v574
  %vm576 = vweird.f32 %v513
  %vm577 = vweird.f32 %v571
  %vm578 = vmor %vm576, %vm577
  %v579 = vsel %vm578, %v571, %v575
  %v580 = vand.u32 2147483647, %v513
  %vm581 = vcmp.eq.f32.partialorder %v580, 8.507059e+37
  %v582 = vand.u32 %v513, 2147483648
  %v583 = vor.u32 1.1754944e-38, %v582
  %v584 = vsel %vm581, %v583, %v579
  %v585 = vmul.f32 %v493, %v584
  %v586 = vrcp.pop %v516
  %v587 = vmul.f32 %v516, %v586
  %v588 = vsub.f32 1.0, %v587
  %v589 = vmul.f32 %v586, %v588
  %v590 = vadd.f32 %v586, %v589
  %vm591 = vweird.f32 %v516
  %vm592 = vweird.f32 %v586
  %vm593 = vmor %vm591, %vm592
  %v594 = vsel %vm593, %v586, %v590
  %v595 = vand.u32 2147483647, %v516
  %vm596 = vcmp.eq.f32.partialorder %v595, 8.507059e+37
  %v597 = vand.u32 %v516, 2147483648
  %v598 = vor.u32 1.1754944e-38, %v597
  %v599 = vsel %vm596, %v598, %v594
  %v600 = vmul.f32 %v495, %v599
  %v601 = vrcp.pop %v519
  %v602 = vmul.f32 %v519, %v601
  %v603 = vsub.f32 1.0, %v602
  %v604 = vmul.f32 %v601, %v603
  %v605 = vadd.f32 %v601, %v604
  %vm606 = vweird.f32 %v519
  %vm607 = vweird.f32 %v601
  %vm608 = vmor %vm606, %vm607
  %v609 = vsel %vm608, %v601, %v605
  %v610 = vand.u32 2147483647, %v519
  %vm611 = vcmp.eq.f32.partialorder %v610, 8.507059e+37
  %v612 = vand.u32 %v519, 2147483648
  %v613 = vor.u32 1.1754944e-38, %v612
  %v614 = vsel %vm611, %v613, %v609
  %v615 = vmul.f32 %v497, %v614
  %v616 = vrcp.pop %v522
  %v617 = vmul.f32 %v522, %v616
  %v618 = vsub.f32 1.0, %v617
  %v619 = vmul.f32 %v616, %v618
  %v620 = vadd.f32 %v616, %v619
  %vm621 = vweird.f32 %v522
  %vm622 = vweird.f32 %v616
  %vm623 = vmor %vm621, %vm622
  %v624 = vsel %vm623, %v616, %v620
  %v625 = vand.u32 2147483647, %v522
  %vm626 = vcmp.eq.f32.partialorder %v625, 8.507059e+37
  %v627 = vand.u32 %v522, 2147483648
  %v628 = vor.u32 1.1754944e-38, %v627
  %v629 = vsel %vm626, %v628, %v624
  %v630 = vmul.f32 %v499, %v629
  %v631 = vrcp.pop %v525
  %v632 = vmul.f32 %v525, %v631
  %v633 = vsub.f32 1.0, %v632
  %v634 = vmul.f32 %v631, %v633
  %v635 = vadd.f32 %v631, %v634
  %vm636 = vweird.f32 %v525
  %vm637 = vweird.f32 %v631
  %vm638 = vmor %vm636, %vm637
  %v639 = vsel %vm638, %v631, %v635
  %v640 = vand.u32 2147483647, %v525
  %vm641 = vcmp.eq.f32.partialorder %v640, 8.507059e+37
  %v642 = vand.u32 %v525, 2147483648
  %v643 = vor.u32 1.1754944e-38, %v642
  %v644 = vsel %vm641, %v643, %v639
  %v645 = vmul.f32 %v501, %v644
  %v647 = vsel %vm245, %v540, 0
  %649 = vmatpush.msra.mxu0 0.0
  %650 = vmatpush.msra.mxu0 0.0
  %651 = vmatpush.msra.mxu0 0.0
  %652 = vmatpush.msra.mxu0 0.0
  %653 = vmatpush.msra.mxu0 0.0
  %654 = vmatpush.msra.mxu0 0.0
  %655 = vmatpush.msra.mxu0 0.0
  %656 = vmatpush.msra.mxu0 0.0
  %657 = vmatpush.msra.mxu0 0.0
  %658 = vmatpush.msra.mxu0 0.0
  %659 = vmatpush.msra.mxu0 0.0
  %660 = vmatpush.msra.mxu0 0.0
  %661 = vmatpush.msra.mxu0 0.0
  %662 = vmatpush.msra.mxu0 0.0
  %663 = vmatpush.msra.mxu0 0.0
  %664 = vmatpush.msra.mxu0 %v226
  %665 = vmatmul.f32.gmra.mxu0 %v647
  %v666 = vpop.f32.mrf.mxu0
  %v667 = vadd.f32 0.0, %v666
  %668 = vdwg.mxu0
  %v670 = vsel %vm245, %v555, 0
  %672 = vmatpush.msra.mxu0 0.0
  %673 = vmatpush.msra.mxu0 0.0
  %674 = vmatpush.msra.mxu0 0.0
  %675 = vmatpush.msra.mxu0 0.0
  %676 = vmatpush.msra.mxu0 0.0
  %677 = vmatpush.msra.mxu0 0.0
  %678 = vmatpush.msra.mxu0 0.0
  %679 = vmatpush.msra.mxu0 0.0
  %680 = vmatpush.msra.mxu0 0.0
  %681 = vmatpush.msra.mxu0 0.0
  %682 = vmatpush.msra.mxu0 0.0
  %683 = vmatpush.msra.mxu0 0.0
  %684 = vmatpush.msra.mxu0 0.0
  %685 = vmatpush.msra.mxu0 0.0
  %686 = vmatpush.msra.mxu0 0.0
  %687 = vmatpush.msra.mxu0 %v228
  %688 = vmatmul.f32.gmra.mxu0 %v670
  %v689 = vpop.f32.mrf.mxu0
  %v690 = vadd.f32 0.0, %v689
  %691 = vdwg.mxu0
  %v693 = vsel %vm245, %v570, 0
  %695 = vmatpush.msra.mxu0 0.0
  %696 = vmatpush.msra.mxu0 0.0
  %697 = vmatpush.msra.mxu0 0.0
  %698 = vmatpush.msra.mxu0 0.0
  %699 = vmatpush.msra.mxu0 0.0
  %700 = vmatpush.msra.mxu0 0.0
  %701 = vmatpush.msra.mxu0 0.0
  %702 = vmatpush.msra.mxu0 0.0
  %703 = vmatpush.msra.mxu0 0.0
  %704 = vmatpush.msra.mxu0 0.0
  %705 = vmatpush.msra.mxu0 0.0
  %706 = vmatpush.msra.mxu0 0.0
  %707 = vmatpush.msra.mxu0 0.0
  %708 = vmatpush.msra.mxu0 0.0
  %709 = vmatpush.msra.mxu0 0.0
  %710 = vmatpush.msra.mxu0 %v231
  %711 = vmatmul.f32.gmra.mxu0 %v693
  %v712 = vpop.f32.mrf.mxu0
  %v713 = vadd.f32 0.0, %v712
  %714 = vdwg.mxu0
  %v716 = vsel %vm245, %v585, 0
  %718 = vmatpush.msra.mxu0 0.0
  %719 = vmatpush.msra.mxu0 0.0
  %720 = vmatpush.msra.mxu0 0.0
  %721 = vmatpush.msra.mxu0 0.0
  %722 = vmatpush.msra.mxu0 0.0
  %723 = vmatpush.msra.mxu0 0.0
  %724 = vmatpush.msra.mxu0 0.0
  %725 = vmatpush.msra.mxu0 0.0
  %726 = vmatpush.msra.mxu0 0.0
  %727 = vmatpush.msra.mxu0 0.0
  %728 = vmatpush.msra.mxu0 0.0
  %729 = vmatpush.msra.mxu0 0.0
  %730 = vmatpush.msra.mxu0 0.0
  %731 = vmatpush.msra.mxu0 0.0
  %732 = vmatpush.msra.mxu0 0.0
  %733 = vmatpush.msra.mxu0 %v233
  %734 = vmatmul.f32.gmra.mxu0 %v716
  %v735 = vpop.f32.mrf.mxu0
  %v736 = vadd.f32 0.0, %v735
  %737 = vdwg.mxu0
  %v739 = vsel %vm245, %v600, 0
  %741 = vmatpush.msra.mxu0 0.0
  %742 = vmatpush.msra.mxu0 0.0
  %743 = vmatpush.msra.mxu0 0.0
  %744 = vmatpush.msra.mxu0 0.0
  %745 = vmatpush.msra.mxu0 0.0
  %746 = vmatpush.msra.mxu0 0.0
  %747 = vmatpush.msra.mxu0 0.0
  %748 = vmatpush.msra.mxu0 0.0
  %749 = vmatpush.msra.mxu0 0.0
  %750 = vmatpush.msra.mxu0 0.0
  %751 = vmatpush.msra.mxu0 0.0
  %752 = vmatpush.msra.mxu0 0.0
  %753 = vmatpush.msra.mxu0 0.0
  %754 = vmatpush.msra.mxu0 0.0
  %755 = vmatpush.msra.mxu0 0.0
  %756 = vmatpush.msra.mxu0 %v236
  %757 = vmatmul.f32.gmra.mxu0 %v739
  %v758 = vpop.f32.mrf.mxu0
  %v759 = vadd.f32 0.0, %v758
  %760 = vdwg.mxu0
  %v762 = vsel %vm245, %v615, 0
  %764 = vmatpush.msra.mxu0 0.0
  %765 = vmatpush.msra.mxu0 0.0
  %766 = vmatpush.msra.mxu0 0.0
  %767 = vmatpush.msra.mxu0 0.0
  %768 = vmatpush.msra.mxu0 0.0
  %769 = vmatpush.msra.mxu0 0.0
  %770 = vmatpush.msra.mxu0 0.0
  %771 = vmatpush.msra.mxu0 0.0
  %772 = vmatpush.msra.mxu0 0.0
  %773 = vmatpush.msra.mxu0 0.0
  %774 = vmatpush.msra.mxu0 0.0
  %775 = vmatpush.msra.mxu0 0.0
  %776 = vmatpush.msra.mxu0 0.0
  %777 = vmatpush.msra.mxu0 0.0
  %778 = vmatpush.msra.mxu0 0.0
  %779 = vmatpush.msra.mxu0 %v238
  %780 = vmatmul.f32.gmra.mxu0 %v762
  %v781 = vpop.f32.mrf.mxu0
  %v782 = vadd.f32 0.0, %v781
  %783 = vdwg.mxu0
  %v785 = vsel %vm245, %v630, 0
  %787 = vmatpush.msra.mxu0 0.0
  %788 = vmatpush.msra.mxu0 0.0
  %789 = vmatpush.msra.mxu0 0.0
  %790 = vmatpush.msra.mxu0 0.0
  %791 = vmatpush.msra.mxu0 0.0
  %792 = vmatpush.msra.mxu0 0.0
  %793 = vmatpush.msra.mxu0 0.0
  %794 = vmatpush.msra.mxu0 0.0
  %795 = vmatpush.msra.mxu0 0.0
  %796 = vmatpush.msra.mxu0 0.0
  %797 = vmatpush.msra.mxu0 0.0
  %798 = vmatpush.msra.mxu0 0.0
  %799 = vmatpush.msra.mxu0 0.0
  %800 = vmatpush.msra.mxu0 0.0
  %801 = vmatpush.msra.mxu0 0.0
  %802 = vmatpush.msra.mxu0 %v241
  %803 = vmatmul.f32.gmra.mxu0 %v785
  %v804 = vpop.f32.mrf.mxu0
  %v805 = vadd.f32 0.0, %v804
  %806 = vdwg.mxu0
  %v808 = vsel %vm245, %v645, 0
  %810 = vmatpush.msra.mxu0 0.0
  %811 = vmatpush.msra.mxu0 0.0
  %812 = vmatpush.msra.mxu0 0.0
  %813 = vmatpush.msra.mxu0 0.0
  %814 = vmatpush.msra.mxu0 0.0
  %815 = vmatpush.msra.mxu0 0.0
  %816 = vmatpush.msra.mxu0 0.0
  %817 = vmatpush.msra.mxu0 0.0
  %818 = vmatpush.msra.mxu0 0.0
  %819 = vmatpush.msra.mxu0 0.0
  %820 = vmatpush.msra.mxu0 0.0
  %821 = vmatpush.msra.mxu0 0.0
  %822 = vmatpush.msra.mxu0 0.0
  %823 = vmatpush.msra.mxu0 0.0
  %824 = vmatpush.msra.mxu0 0.0
  %825 = vmatpush.msra.mxu0 %v243
  %826 = vmatmul.f32.gmra.mxu0 %v808
  %v827 = vpop.f32.mrf.mxu0
  %v828 = vadd.f32 0.0, %v827
  %829 = vdwg.mxu0
  %v830 = vpack.c.bf16 %v690, %v667
  %v831 = vpack.c.bf16 %v736, %v713
  %v832 = vpack.c.bf16 %v782, %v759
  %v833 = vpack.c.bf16 %v828, %v805
  %v834 = vld [vmem:[%s5] sm:$0xf]
  %835 = vrot.lane.b32.xlu0 %v114, 120
  %v836 = vpop.permute.xlu0 %835
  %837 = vrot.lane.b32.xlu0 %v187, 120
  %v838 = vpop.permute.xlu0 %837
  %v839 = vsel %vm245, %v836, 0
  %v841 = vsel %vm245, %v838, 0
  %843 = vmatpush.xpose.msra.mxu0 0.0
  %844 = vmatpush.xpose.msra.mxu0 0.0
  %845 = vmatpush.xpose.msra.mxu0 0.0
  %846 = vmatpush.xpose.msra.mxu0 0.0
  %847 = vmatpush.xpose.msra.mxu0 0.0
  %848 = vmatpush.xpose.msra.mxu0 0.0
  %849 = vmatpush.xpose.msra.mxu0 0.0
  %850 = vmatpush.xpose.msra.mxu0 0.0
  %851 = vmatpush.xpose.msra.mxu0 0.0
  %852 = vmatpush.xpose.msra.mxu0 0.0
  %853 = vmatpush.xpose.msra.mxu0 0.0
  %854 = vmatpush.xpose.msra.mxu0 0.0
  %855 = vmatpush.xpose.msra.mxu0 0.0
  %856 = vmatpush.xpose.msra.mxu0 0.0
  %857 = vmatpush.xpose.msra.mxu0 0.0
  %858 = vmatpush.xpose.msra.mxu0 %v841
  %859 = vmatmul.f32.gmra.mxu0 %v839
  %v860 = vpop.f32.mrf.mxu0
  %v861 = vadd.f32 0.0, %v860
  %862 = vdwg.mxu0
  %863 = vrot.lane.b32.xlu0 %v116, 120
  %v864 = vpop.permute.xlu0 %863
  %865 = vrot.lane.b32.xlu0 %v189, 120
  %v866 = vpop.permute.xlu0 %865
  %v867 = vsel %vm245, %v864, 0
  %v869 = vsel %vm245, %v866, 0
  %871 = vmatpush.xpose.msra.mxu0 0.0
  %872 = vmatpush.xpose.msra.mxu0 0.0
  %873 = vmatpush.xpose.msra.mxu0 0.0
  %874 = vmatpush.xpose.msra.mxu0 0.0
  %875 = vmatpush.xpose.msra.mxu0 0.0
  %876 = vmatpush.xpose.msra.mxu0 0.0
  %877 = vmatpush.xpose.msra.mxu0 0.0
  %878 = vmatpush.xpose.msra.mxu0 0.0
  %879 = vmatpush.xpose.msra.mxu0 0.0
  %880 = vmatpush.xpose.msra.mxu0 0.0
  %881 = vmatpush.xpose.msra.mxu0 0.0
  %882 = vmatpush.xpose.msra.mxu0 0.0
  %883 = vmatpush.xpose.msra.mxu0 0.0
  %884 = vmatpush.xpose.msra.mxu0 0.0
  %885 = vmatpush.xpose.msra.mxu0 0.0
  %886 = vmatpush.xpose.msra.mxu0 %v869
  %887 = vmatmul.f32.gmra.mxu0 %v867
  %v888 = vpop.f32.mrf.mxu0
  %v889 = vadd.f32 0.0, %v888
  %890 = vdwg.mxu0
  %891 = vrot.lane.b32.xlu0 %v119, 120
  %v892 = vpop.permute.xlu0 %891
  %893 = vrot.lane.b32.xlu0 %v192, 120
  %v894 = vpop.permute.xlu0 %893
  %v895 = vsel %vm245, %v892, 0
  %v897 = vsel %vm245, %v894, 0
  %899 = vmatpush.xpose.msra.mxu0 0.0
  %900 = vmatpush.xpose.msra.mxu0 0.0
  %901 = vmatpush.xpose.msra.mxu0 0.0
  %902 = vmatpush.xpose.msra.mxu0 0.0
  %903 = vmatpush.xpose.msra.mxu0 0.0
  %904 = vmatpush.xpose.msra.mxu0 0.0
  %905 = vmatpush.xpose.msra.mxu0 0.0
  %906 = vmatpush.xpose.msra.mxu0 0.0
  %907 = vmatpush.xpose.msra.mxu0 0.0
  %908 = vmatpush.xpose.msra.mxu0 0.0
  %909 = vmatpush.xpose.msra.mxu0 0.0
  %910 = vmatpush.xpose.msra.mxu0 0.0
  %911 = vmatpush.xpose.msra.mxu0 0.0
  %912 = vmatpush.xpose.msra.mxu0 0.0
  %913 = vmatpush.xpose.msra.mxu0 0.0
  %914 = vmatpush.xpose.msra.mxu0 %v897
  %915 = vmatmul.f32.gmra.mxu0 %v895
  %v916 = vpop.f32.mrf.mxu0
  %v917 = vadd.f32 0.0, %v916
  %918 = vdwg.mxu0
  %919 = vrot.lane.b32.xlu0 %v121, 120
  %v920 = vpop.permute.xlu0 %919
  %921 = vrot.lane.b32.xlu0 %v194, 120
  %v922 = vpop.permute.xlu0 %921
  %v923 = vsel %vm245, %v920, 0
  %v925 = vsel %vm245, %v922, 0
  %927 = vmatpush.xpose.msra.mxu0 0.0
  %928 = vmatpush.xpose.msra.mxu0 0.0
  %929 = vmatpush.xpose.msra.mxu0 0.0
  %930 = vmatpush.xpose.msra.mxu0 0.0
  %931 = vmatpush.xpose.msra.mxu0 0.0
  %932 = vmatpush.xpose.msra.mxu0 0.0
  %933 = vmatpush.xpose.msra.mxu0 0.0
  %934 = vmatpush.xpose.msra.mxu0 0.0
  %935 = vmatpush.xpose.msra.mxu0 0.0
  %936 = vmatpush.xpose.msra.mxu0 0.0
  %937 = vmatpush.xpose.msra.mxu0 0.0
  %938 = vmatpush.xpose.msra.mxu0 0.0
  %939 = vmatpush.xpose.msra.mxu0 0.0
  %940 = vmatpush.xpose.msra.mxu0 0.0
  %941 = vmatpush.xpose.msra.mxu0 0.0
  %942 = vmatpush.xpose.msra.mxu0 %v925
  %943 = vmatmul.f32.gmra.mxu0 %v923
  %v944 = vpop.f32.mrf.mxu0
  %v945 = vadd.f32 0.0, %v944
  %946 = vdwg.mxu0
  %947 = vrot.lane.b32.xlu0 %v124, 120
  %v948 = vpop.permute.xlu0 %947
  %949 = vrot.lane.b32.xlu0 %v197, 120
  %v950 = vpop.permute.xlu0 %949
  %v951 = vsel %vm245, %v948, 0
  %v953 = vsel %vm245, %v950, 0
  %955 = vmatpush.xpose.msra.mxu0 0.0
  %956 = vmatpush.xpose.msra.mxu0 0.0
  %957 = vmatpush.xpose.msra.mxu0 0.0
  %958 = vmatpush.xpose.msra.mxu0 0.0
  %959 = vmatpush.xpose.msra.mxu0 0.0
  %960 = vmatpush.xpose.msra.mxu0 0.0
  %961 = vmatpush.xpose.msra.mxu0 0.0
  %962 = vmatpush.xpose.msra.mxu0 0.0
  %963 = vmatpush.xpose.msra.mxu0 0.0
  %964 = vmatpush.xpose.msra.mxu0 0.0
  %965 = vmatpush.xpose.msra.mxu0 0.0
  %966 = vmatpush.xpose.msra.mxu0 0.0
  %967 = vmatpush.xpose.msra.mxu0 0.0
  %968 = vmatpush.xpose.msra.mxu0 0.0
  %969 = vmatpush.xpose.msra.mxu0 0.0
  %970 = vmatpush.xpose.msra.mxu0 %v953
  %971 = vmatmul.f32.gmra.mxu0 %v951
  %v972 = vpop.f32.mrf.mxu0
  %v973 = vadd.f32 0.0, %v972
  %974 = vdwg.mxu0
  %975 = vrot.lane.b32.xlu0 %v126, 120
  %v976 = vpop.permute.xlu0 %975
  %977 = vrot.lane.b32.xlu0 %v199, 120
  %v978 = vpop.permute.xlu0 %977
  %v979 = vsel %vm245, %v976, 0
  %v981 = vsel %vm245, %v978, 0
  %983 = vmatpush.xpose.msra.mxu0 0.0
  %984 = vmatpush.xpose.msra.mxu0 0.0
  %985 = vmatpush.xpose.msra.mxu0 0.0
  %986 = vmatpush.xpose.msra.mxu0 0.0
  %987 = vmatpush.xpose.msra.mxu0 0.0
  %988 = vmatpush.xpose.msra.mxu0 0.0
  %989 = vmatpush.xpose.msra.mxu0 0.0
  %990 = vmatpush.xpose.msra.mxu0 0.0
  %991 = vmatpush.xpose.msra.mxu0 0.0
  %992 = vmatpush.xpose.msra.mxu0 0.0
  %993 = vmatpush.xpose.msra.mxu0 0.0
  %994 = vmatpush.xpose.msra.mxu0 0.0
  %995 = vmatpush.xpose.msra.mxu0 0.0
  %996 = vmatpush.xpose.msra.mxu0 0.0
  %997 = vmatpush.xpose.msra.mxu0 0.0
  %998 = vmatpush.xpose.msra.mxu0 %v981
  %999 = vmatmul.f32.gmra.mxu0 %v979
  %v1000 = vpop.f32.mrf.mxu0
  %v1001 = vadd.f32 0.0, %v1000
  %1002 = vdwg.mxu0
  %1003 = vrot.lane.b32.xlu0 %v129, 120
  %v1004 = vpop.permute.xlu0 %1003
  %1005 = vrot.lane.b32.xlu0 %v202, 120
  %v1006 = vpop.permute.xlu0 %1005
  %v1007 = vsel %vm245, %v1004, 0
  %v1009 = vsel %vm245, %v1006, 0
  %1011 = vmatpush.xpose.msra.mxu0 0.0
  %1012 = vmatpush.xpose.msra.mxu0 0.0
  %1013 = vmatpush.xpose.msra.mxu0 0.0
  %1014 = vmatpush.xpose.msra.mxu0 0.0
  %1015 = vmatpush.xpose.msra.mxu0 0.0
  %1016 = vmatpush.xpose.msra.mxu0 0.0
  %1017 = vmatpush.xpose.msra.mxu0 0.0
  %1018 = vmatpush.xpose.msra.mxu0 0.0
  %1019 = vmatpush.xpose.msra.mxu0 0.0
  %1020 = vmatpush.xpose.msra.mxu0 0.0
  %1021 = vmatpush.xpose.msra.mxu0 0.0
  %1022 = vmatpush.xpose.msra.mxu0 0.0
  %1023 = vmatpush.xpose.msra.mxu0 0.0
  %1024 = vmatpush.xpose.msra.mxu0 0.0
  %1025 = vmatpush.xpose.msra.mxu0 0.0
  %1026 = vmatpush.xpose.msra.mxu0 %v1009
  %1027 = vmatmul.f32.gmra.mxu0 %v1007
  %v1028 = vpop.f32.mrf.mxu0
  %v1029 = vadd.f32 0.0, %v1028
  %1030 = vdwg.mxu0
  %1031 = vrot.lane.b32.xlu0 %v131, 120
  %v1032 = vpop.permute.xlu0 %1031
  %1033 = vrot.lane.b32.xlu0 %v204, 120
  %v1034 = vpop.permute.xlu0 %1033
  %v1035 = vsel %vm245, %v1032, 0
  %v1037 = vsel %vm245, %v1034, 0
  %1039 = vmatpush.xpose.msra.mxu0 0.0
  %1040 = vmatpush.xpose.msra.mxu0 0.0
  %1041 = vmatpush.xpose.msra.mxu0 0.0
  %1042 = vmatpush.xpose.msra.mxu0 0.0
  %1043 = vmatpush.xpose.msra.mxu0 0.0
  %1044 = vmatpush.xpose.msra.mxu0 0.0
  %1045 = vmatpush.xpose.msra.mxu0 0.0
  %1046 = vmatpush.xpose.msra.mxu0 0.0
  %1047 = vmatpush.xpose.msra.mxu0 0.0
  %1048 = vmatpush.xpose.msra.mxu0 0.0
  %1049 = vmatpush.xpose.msra.mxu0 0.0
  %1050 = vmatpush.xpose.msra.mxu0 0.0
  %1051 = vmatpush.xpose.msra.mxu0 0.0
  %1052 = vmatpush.xpose.msra.mxu0 0.0
  %1053 = vmatpush.xpose.msra.mxu0 0.0
  %1054 = vmatpush.xpose.msra.mxu0 %v1037
  %1055 = vmatmul.f32.gmra.mxu0 %v1035
  %v1056 = vpop.f32.mrf.mxu0
  %v1057 = vadd.f32 0.0, %v1056
  %1058 = vdwg.mxu0
  %v1059 = vsel %vm245, %v861, -inf
  %1060 = vmax.xlane.f32.xlu0 %v1059
  %v1061 = vpop.xlane.xlu0 %1060
  %v1062 = vsel %vm245, %v889, -inf
  %1063 = vmax.xlane.f32.xlu0 %v1062
  %v1064 = vpop.xlane.xlu0 %1063
  %v1065 = vsel %vm245, %v917, -inf
  %1066 = vmax.xlane.f32.xlu0 %v1065
  %v1067 = vpop.xlane.xlu0 %1066
  %v1068 = vsel %vm245, %v945, -inf
  %1069 = vmax.xlane.f32.xlu0 %v1068
  %v1070 = vpop.xlane.xlu0 %1069
  %v1071 = vsel %vm245, %v973, -inf
  %1072 = vmax.xlane.f32.xlu0 %v1071
  %v1073 = vpop.xlane.xlu0 %1072
  %v1074 = vsel %vm245, %v1001, -inf
  %1075 = vmax.xlane.f32.xlu0 %v1074
  %v1076 = vpop.xlane.xlu0 %1075
  %v1077 = vsel %vm245, %v1029, -inf
  %1078 = vmax.xlane.f32.xlu0 %v1077
  %v1079 = vpop.xlane.xlu0 %1078
  %v1080 = vsel %vm245, %v1057, -inf
  %1081 = vmax.xlane.f32.xlu0 %v1080
  %v1082 = vpop.xlane.xlu0 %1081
  %v1083 = vsub.f32 %v861, %v1061
  %v1084 = vsub.f32 %v889, %v1064
  %v1085 = vsub.f32 %v917, %v1067
  %v1086 = vsub.f32 %v945, %v1070
  %v1087 = vsub.f32 %v973, %v1073
  %v1088 = vsub.f32 %v1001, %v1076
  %v1089 = vsub.f32 %v1029, %v1079
  %v1090 = vsub.f32 %v1057, %v1082
  %v1091 = vmul.f32 %v1083, 1.442695
  %v1092 = vpow.pop %v1091
  %v1093 = vmul.f32 %v1084, 1.442695
  %v1094 = vpow.pop %v1093
  %v1095 = vmul.f32 %v1085, 1.442695
  %v1096 = vpow.pop %v1095
  %v1097 = vmul.f32 %v1086, 1.442695
  %v1098 = vpow.pop %v1097
  %v1099 = vmul.f32 %v1087, 1.442695
  %v1100 = vpow.pop %v1099
  %v1101 = vmul.f32 %v1088, 1.442695
  %v1102 = vpow.pop %v1101
  %v1103 = vmul.f32 %v1089, 1.442695
  %v1104 = vpow.pop %v1103
  %v1105 = vmul.f32 %v1090, 1.442695
  %v1106 = vpow.pop %v1105
  %v1107 = vsel %vm245, %v1092, 0.0
  %1108 = vadd.xlane.f32.xlu0 %v1107
  %v1109 = vpop.xlane.xlu0 %1108
  %v1110 = vsel %vm245, %v1094, 0.0
  %1111 = vadd.xlane.f32.xlu0 %v1110
  %v1112 = vpop.xlane.xlu0 %1111
  %v1113 = vsel %vm245, %v1096, 0.0
  %1114 = vadd.xlane.f32.xlu0 %v1113
  %v1115 = vpop.xlane.xlu0 %1114
  %v1116 = vsel %vm245, %v1098, 0.0
  %1117 = vadd.xlane.f32.xlu0 %v1116
  %v1118 = vpop.xlane.xlu0 %1117
  %v1119 = vsel %vm245, %v1100, 0.0
  %1120 = vadd.xlane.f32.xlu0 %v1119
  %v1121 = vpop.xlane.xlu0 %1120
  %v1122 = vsel %vm245, %v1102, 0.0
  %1123 = vadd.xlane.f32.xlu0 %v1122
  %v1124 = vpop.xlane.xlu0 %1123
  %v1125 = vsel %vm245, %v1104, 0.0
  %1126 = vadd.xlane.f32.xlu0 %v1125
  %v1127 = vpop.xlane.xlu0 %1126
  %v1128 = vsel %vm245, %v1106, 0.0
  %1129 = vadd.xlane.f32.xlu0 %v1128
  %v1130 = vpop.xlane.xlu0 %1129
  %v1131 = vrcp.pop %v1109
  %v1132 = vmul.f32 %v1109, %v1131
  %v1133 = vsub.f32 1.0, %v1132
  %v1134 = vmul.f32 %v1131, %v1133
  %v1135 = vadd.f32 %v1131, %v1134
  %vm1136 = vweird.f32 %v1109
  %vm1137 = vweird.f32 %v1131
  %vm1138 = vmor %vm1136, %vm1137
  %v1139 = vsel %vm1138, %v1131, %v1135
  %v1140 = vand.u32 2147483647, %v1109
  %vm1141 = vcmp.eq.f32.partialorder %v1140, 8.507059e+37
  %v1142 = vand.u32 %v1109, 2147483648
  %v1143 = vor.u32 1.1754944e-38, %v1142
  %v1144 = vsel %vm1141, %v1143, %v1139
  %v1145 = vmul.f32 %v1092, %v1144
  %v1146 = vrcp.pop %v1112
  %v1147 = vmul.f32 %v1112, %v1146
  %v1148 = vsub.f32 1.0, %v1147
  %v1149 = vmul.f32 %v1146, %v1148
  %v1150 = vadd.f32 %v1146, %v1149
  %vm1151 = vweird.f32 %v1112
  %vm1152 = vweird.f32 %v1146
  %vm1153 = vmor %vm1151, %vm1152
  %v1154 = vsel %vm1153, %v1146, %v1150
  %v1155 = vand.u32 2147483647, %v1112
  %vm1156 = vcmp.eq.f32.partialorder %v1155, 8.507059e+37
  %v1157 = vand.u32 %v1112, 2147483648
  %v1158 = vor.u32 1.1754944e-38, %v1157
  %v1159 = vsel %vm1156, %v1158, %v1154
  %v1160 = vmul.f32 %v1094, %v1159
  %v1161 = vrcp.pop %v1115
  %v1162 = vmul.f32 %v1115, %v1161
  %v1163 = vsub.f32 1.0, %v1162
  %v1164 = vmul.f32 %v1161, %v1163
  %v1165 = vadd.f32 %v1161, %v1164
  %vm1166 = vweird.f32 %v1115
  %vm1167 = vweird.f32 %v1161
  %vm1168 = vmor %vm1166, %vm1167
  %v1169 = vsel %vm1168, %v1161, %v1165
  %v1170 = vand.u32 2147483647, %v1115
  %vm1171 = vcmp.eq.f32.partialorder %v1170, 8.507059e+37
  %v1172 = vand.u32 %v1115, 2147483648
  %v1173 = vor.u32 1.1754944e-38, %v1172
  %v1174 = vsel %vm1171, %v1173, %v1169
  %v1175 = vmul.f32 %v1096, %v1174
  %v1176 = vrcp.pop %v1118
  %v1177 = vmul.f32 %v1118, %v1176
  %v1178 = vsub.f32 1.0, %v1177
  %v1179 = vmul.f32 %v1176, %v1178
  %v1180 = vadd.f32 %v1176, %v1179
  %vm1181 = vweird.f32 %v1118
  %vm1182 = vweird.f32 %v1176
  %vm1183 = vmor %vm1181, %vm1182
  %v1184 = vsel %vm1183, %v1176, %v1180
  %v1185 = vand.u32 2147483647, %v1118
  %vm1186 = vcmp.eq.f32.partialorder %v1185, 8.507059e+37
  %v1187 = vand.u32 %v1118, 2147483648
  %v1188 = vor.u32 1.1754944e-38, %v1187
  %v1189 = vsel %vm1186, %v1188, %v1184
  %v1190 = vmul.f32 %v1098, %v1189
  %v1191 = vrcp.pop %v1121
  %v1192 = vmul.f32 %v1121, %v1191
  %v1193 = vsub.f32 1.0, %v1192
  %v1194 = vmul.f32 %v1191, %v1193
  %v1195 = vadd.f32 %v1191, %v1194
  %vm1196 = vweird.f32 %v1121
  %vm1197 = vweird.f32 %v1191
  %vm1198 = vmor %vm1196, %vm1197
  %v1199 = vsel %vm1198, %v1191, %v1195
  %v1200 = vand.u32 2147483647, %v1121
  %vm1201 = vcmp.eq.f32.partialorder %v1200, 8.507059e+37
  %v1202 = vand.u32 %v1121, 2147483648
  %v1203 = vor.u32 1.1754944e-38, %v1202
  %v1204 = vsel %vm1201, %v1203, %v1199
  %v1205 = vmul.f32 %v1100, %v1204
  %v1206 = vrcp.pop %v1124
  %v1207 = vmul.f32 %v1124, %v1206
  %v1208 = vsub.f32 1.0, %v1207
  %v1209 = vmul.f32 %v1206, %v1208
  %v1210 = vadd.f32 %v1206, %v1209
  %vm1211 = vweird.f32 %v1124
  %vm1212 = vweird.f32 %v1206
  %vm1213 = vmor %vm1211, %vm1212
  %v1214 = vsel %vm1213, %v1206, %v1210
  %v1215 = vand.u32 2147483647, %v1124
  %vm1216 = vcmp.eq.f32.partialorder %v1215, 8.507059e+37
  %v1217 = vand.u32 %v1124, 2147483648
  %v1218 = vor.u32 1.1754944e-38, %v1217
  %v1219 = vsel %vm1216, %v1218, %v1214
  %v1220 = vmul.f32 %v1102, %v1219
  %v1221 = vrcp.pop %v1127
  %v1222 = vmul.f32 %v1127, %v1221
  %v1223 = vsub.f32 1.0, %v1222
  %v1224 = vmul.f32 %v1221, %v1223
  %v1225 = vadd.f32 %v1221, %v1224
  %vm1226 = vweird.f32 %v1127
  %vm1227 = vweird.f32 %v1221
  %vm1228 = vmor %vm1226, %vm1227
  %v1229 = vsel %vm1228, %v1221, %v1225
  %v1230 = vand.u32 2147483647, %v1127
  %vm1231 = vcmp.eq.f32.partialorder %v1230, 8.507059e+37
  %v1232 = vand.u32 %v1127, 2147483648
  %v1233 = vor.u32 1.1754944e-38, %v1232
  %v1234 = vsel %vm1231, %v1233, %v1229
  %v1235 = vmul.f32 %v1104, %v1234
  %v1236 = vrcp.pop %v1130
  %v1237 = vmul.f32 %v1130, %v1236
  %v1238 = vsub.f32 1.0, %v1237
  %v1239 = vmul.f32 %v1236, %v1238
  %v1240 = vadd.f32 %v1236, %v1239
  %vm1241 = vweird.f32 %v1130
  %vm1242 = vweird.f32 %v1236
  %vm1243 = vmor %vm1241, %vm1242
  %v1244 = vsel %vm1243, %v1236, %v1240
  %v1245 = vand.u32 2147483647, %v1130
  %vm1246 = vcmp.eq.f32.partialorder %v1245, 8.507059e+37
  %v1247 = vand.u32 %v1130, 2147483648
  %v1248 = vor.u32 1.1754944e-38, %v1247
  %v1249 = vsel %vm1246, %v1248, %v1244
  %v1250 = vmul.f32 %v1106, %v1249
  %1252 = vrot.lane.b32.xlu0 %v226, 120
  %v1253 = vpop.permute.xlu0 %1252
  %v1256 = vsel %vm245, %v1145, 0
  %1258 = vmatpush.msra.mxu0 0.0
  %1259 = vmatpush.msra.mxu0 0.0
  %1260 = vmatpush.msra.mxu0 0.0
  %1261 = vmatpush.msra.mxu0 0.0
  %1262 = vmatpush.msra.mxu0 0.0
  %1263 = vmatpush.msra.mxu0 0.0
  %1264 = vmatpush.msra.mxu0 0.0
  %1265 = vmatpush.msra.mxu0 0.0
  %1266 = vmatpush.msra.mxu0 0.0
  %1267 = vmatpush.msra.mxu0 0.0
  %1268 = vmatpush.msra.mxu0 0.0
  %1269 = vmatpush.msra.mxu0 0.0
  %1270 = vmatpush.msra.mxu0 0.0
  %1271 = vmatpush.msra.mxu0 0.0
  %1272 = vmatpush.msra.mxu0 0.0
  %1273 = vmatpush.msra.mxu0 %v1253
  %1274 = vmatmul.f32.gmra.mxu0 %v1256
  %v1275 = vpop.f32.mrf.mxu0
  %v1276 = vadd.f32 0.0, %v1275
  %1277 = vdwg.mxu0
  %1279 = vrot.lane.b32.xlu0 %v228, 120
  %v1280 = vpop.permute.xlu0 %1279
  %v1283 = vsel %vm245, %v1160, 0
  %1285 = vmatpush.msra.mxu0 0.0
  %1286 = vmatpush.msra.mxu0 0.0
  %1287 = vmatpush.msra.mxu0 0.0
  %1288 = vmatpush.msra.mxu0 0.0
  %1289 = vmatpush.msra.mxu0 0.0
  %1290 = vmatpush.msra.mxu0 0.0
  %1291 = vmatpush.msra.mxu0 0.0
  %1292 = vmatpush.msra.mxu0 0.0
  %1293 = vmatpush.msra.mxu0 0.0
  %1294 = vmatpush.msra.mxu0 0.0
  %1295 = vmatpush.msra.mxu0 0.0
  %1296 = vmatpush.msra.mxu0 0.0
  %1297 = vmatpush.msra.mxu0 0.0
  %1298 = vmatpush.msra.mxu0 0.0
  %1299 = vmatpush.msra.mxu0 0.0
  %1300 = vmatpush.msra.mxu0 %v1280
  %1301 = vmatmul.f32.gmra.mxu0 %v1283
  %v1302 = vpop.f32.mrf.mxu0
  %v1303 = vadd.f32 0.0, %v1302
  %1304 = vdwg.mxu0
  %1306 = vrot.lane.b32.xlu0 %v231, 120
  %v1307 = vpop.permute.xlu0 %1306
  %v1310 = vsel %vm245, %v1175, 0
  %1312 = vmatpush.msra.mxu0 0.0
  %1313 = vmatpush.msra.mxu0 0.0
  %1314 = vmatpush.msra.mxu0 0.0
  %1315 = vmatpush.msra.mxu0 0.0
  %1316 = vmatpush.msra.mxu0 0.0
  %1317 = vmatpush.msra.mxu0 0.0
  %1318 = vmatpush.msra.mxu0 0.0
  %1319 = vmatpush.msra.mxu0 0.0
  %1320 = vmatpush.msra.mxu0 0.0
  %1321 = vmatpush.msra.mxu0 0.0
  %1322 = vmatpush.msra.mxu0 0.0
  %1323 = vmatpush.msra.mxu0 0.0
  %1324 = vmatpush.msra.mxu0 0.0
  %1325 = vmatpush.msra.mxu0 0.0
  %1326 = vmatpush.msra.mxu0 0.0
  %1327 = vmatpush.msra.mxu0 %v1307
  %1328 = vmatmul.f32.gmra.mxu0 %v1310
  %v1329 = vpop.f32.mrf.mxu0
  %v1330 = vadd.f32 0.0, %v1329
  %1331 = vdwg.mxu0
  %1333 = vrot.lane.b32.xlu0 %v233, 120
  %v1334 = vpop.permute.xlu0 %1333
  %v1337 = vsel %vm245, %v1190, 0
  %1339 = vmatpush.msra.mxu0 0.0
  %1340 = vmatpush.msra.mxu0 0.0
  %1341 = vmatpush.msra.mxu0 0.0
  %1342 = vmatpush.msra.mxu0 0.0
  %1343 = vmatpush.msra.mxu0 0.0
  %1344 = vmatpush.msra.mxu0 0.0
  %1345 = vmatpush.msra.mxu0 0.0
  %1346 = vmatpush.msra.mxu0 0.0
  %1347 = vmatpush.msra.mxu0 0.0
  %1348 = vmatpush.msra.mxu0 0.0
  %1349 = vmatpush.msra.mxu0 0.0
  %1350 = vmatpush.msra.mxu0 0.0
  %1351 = vmatpush.msra.mxu0 0.0
  %1352 = vmatpush.msra.mxu0 0.0
  %1353 = vmatpush.msra.mxu0 0.0
  %1354 = vmatpush.msra.mxu0 %v1334
  %1355 = vmatmul.f32.gmra.mxu0 %v1337
  %v1356 = vpop.f32.mrf.mxu0
  %v1357 = vadd.f32 0.0, %v1356
  %1358 = vdwg.mxu0
  %1360 = vrot.lane.b32.xlu0 %v236, 120
  %v1361 = vpop.permute.xlu0 %1360
  %v1364 = vsel %vm245, %v1205, 0
  %1366 = vmatpush.msra.mxu0 0.0
  %1367 = vmatpush.msra.mxu0 0.0
  %1368 = vmatpush.msra.mxu0 0.0
  %1369 = vmatpush.msra.mxu0 0.0
  %1370 = vmatpush.msra.mxu0 0.0
  %1371 = vmatpush.msra.mxu0 0.0
  %1372 = vmatpush.msra.mxu0 0.0
  %1373 = vmatpush.msra.mxu0 0.0
  %1374 = vmatpush.msra.mxu0 0.0
  %1375 = vmatpush.msra.mxu0 0.0
  %1376 = vmatpush.msra.mxu0 0.0
  %1377 = vmatpush.msra.mxu0 0.0
  %1378 = vmatpush.msra.mxu0 0.0
  %1379 = vmatpush.msra.mxu0 0.0
  %1380 = vmatpush.msra.mxu0 0.0
  %1381 = vmatpush.msra.mxu0 %v1361
  %1382 = vmatmul.f32.gmra.mxu0 %v1364
  %v1383 = vpop.f32.mrf.mxu0
  %v1384 = vadd.f32 0.0, %v1383
  %1385 = vdwg.mxu0
  %1387 = vrot.lane.b32.xlu0 %v238, 120
  %v1388 = vpop.permute.xlu0 %1387
  %v1391 = vsel %vm245, %v1220, 0
  %1393 = vmatpush.msra.mxu0 0.0
  %1394 = vmatpush.msra.mxu0 0.0
  %1395 = vmatpush.msra.mxu0 0.0
  %1396 = vmatpush.msra.mxu0 0.0
  %1397 = vmatpush.msra.mxu0 0.0
  %1398 = vmatpush.msra.mxu0 0.0
  %1399 = vmatpush.msra.mxu0 0.0
  %1400 = vmatpush.msra.mxu0 0.0
  %1401 = vmatpush.msra.mxu0 0.0
  %1402 = vmatpush.msra.mxu0 0.0
  %1403 = vmatpush.msra.mxu0 0.0
  %1404 = vmatpush.msra.mxu0 0.0
  %1405 = vmatpush.msra.mxu0 0.0
  %1406 = vmatpush.msra.mxu0 0.0
  %1407 = vmatpush.msra.mxu0 0.0
  %1408 = vmatpush.msra.mxu0 %v1388
  %1409 = vmatmul.f32.gmra.mxu0 %v1391
  %v1410 = vpop.f32.mrf.mxu0
  %v1411 = vadd.f32 0.0, %v1410
  %1412 = vdwg.mxu0
  %1414 = vrot.lane.b32.xlu0 %v241, 120
  %v1415 = vpop.permute.xlu0 %1414
  %v1418 = vsel %vm245, %v1235, 0
  %1420 = vmatpush.msra.mxu0 0.0
  %1421 = vmatpush.msra.mxu0 0.0
  %1422 = vmatpush.msra.mxu0 0.0
  %1423 = vmatpush.msra.mxu0 0.0
  %1424 = vmatpush.msra.mxu0 0.0
  %1425 = vmatpush.msra.mxu0 0.0
  %1426 = vmatpush.msra.mxu0 0.0
  %1427 = vmatpush.msra.mxu0 0.0
  %1428 = vmatpush.msra.mxu0 0.0
  %1429 = vmatpush.msra.mxu0 0.0
  %1430 = vmatpush.msra.mxu0 0.0
  %1431 = vmatpush.msra.mxu0 0.0
  %1432 = vmatpush.msra.mxu0 0.0
  %1433 = vmatpush.msra.mxu0 0.0
  %1434 = vmatpush.msra.mxu0 0.0
  %1435 = vmatpush.msra.mxu0 %v1415
  %1436 = vmatmul.f32.gmra.mxu0 %v1418
  %v1437 = vpop.f32.mrf.mxu0
  %v1438 = vadd.f32 0.0, %v1437
  %1439 = vdwg.mxu0
  %1441 = vrot.lane.b32.xlu0 %v243, 120
  %v1442 = vpop.permute.xlu0 %1441
  %v1445 = vsel %vm245, %v1250, 0
  %1447 = vmatpush.msra.mxu0 0.0
  %1448 = vmatpush.msra.mxu0 0.0
  %1449 = vmatpush.msra.mxu0 0.0
  %1450 = vmatpush.msra.mxu0 0.0
  %1451 = vmatpush.msra.mxu0 0.0
  %1452 = vmatpush.msra.mxu0 0.0
  %1453 = vmatpush.msra.mxu0 0.0
  %1454 = vmatpush.msra.mxu0 0.0
  %1455 = vmatpush.msra.mxu0 0.0
  %1456 = vmatpush.msra.mxu0 0.0
  %1457 = vmatpush.msra.mxu0 0.0
  %1458 = vmatpush.msra.mxu0 0.0
  %1459 = vmatpush.msra.mxu0 0.0
  %1460 = vmatpush.msra.mxu0 0.0
  %1461 = vmatpush.msra.mxu0 0.0
  %1462 = vmatpush.msra.mxu0 %v1442
  %1463 = vmatmul.f32.gmra.mxu0 %v1445
  %v1464 = vpop.f32.mrf.mxu0
  %v1465 = vadd.f32 0.0, %v1464
  %1466 = vdwg.mxu0
  %v1467 = vpack.c.bf16 %v1303, %v1276
  %v1468 = vpack.c.bf16 %v1357, %v1330
  %v1469 = vpack.c.bf16 %v1411, %v1384
  %v1470 = vpack.c.bf16 %v1465, %v1438
  %s1471 = scalar_lea.vmem %s5, 4
  %v1472 = vld [vmem:[%s1471] sm:$0xf]
  %v1474 = vsel %vm245, %v1467, 0
  %v1477 = vsel %vm245, %v1468, 0
  %v1480 = vsel %vm245, %v1469, 0
  %v1483 = vsel %vm245, %v1470, 0
  %vm1485 = vcmask 1043456
  %v1487 = vsel %vm1485, %v1472, 0
  %1489 = vmatpush.bf16.msra.mxu0 0
  %1490 = vmatpush.bf16.msra.mxu0 0
  %1491 = vmatpush.bf16.msra.mxu0 0
  %1492 = vmatpush.bf16.msra.mxu0 0
  %1493 = vmatpush.bf16.msra.mxu0 0
  %1494 = vmatpush.bf16.msra.mxu0 0
  %1495 = vmatpush.bf16.msra.mxu0 0
  %1496 = vmatpush.bf16.msra.mxu0 %v1487
  %1497 = vmatmul.bf16.gmra.mxu0 %v1474
  %v1498 = vpop.f32.mrf.mxu0
  %v1499 = vadd.f32 0.0, %v1498
  %v1500 = vpop.f32.mrf.mxu0
  %v1501 = vadd.f32 0.0, %v1500
  %1502 = vmatmul.bf16.gmra.mxu0 %v1477
  %v1503 = vpop.f32.mrf.mxu0
  %v1504 = vadd.f32 0.0, %v1503
  %v1505 = vpop.f32.mrf.mxu0
  %v1506 = vadd.f32 0.0, %v1505
  %1507 = vmatmul.bf16.gmra.mxu0 %v1480
  %v1508 = vpop.f32.mrf.mxu0
  %v1509 = vadd.f32 0.0, %v1508
  %v1510 = vpop.f32.mrf.mxu0
  %v1511 = vadd.f32 0.0, %v1510
  %1512 = vmatmul.bf16.gmra.mxu0 %v1483
  %v1513 = vpop.f32.mrf.mxu0
  %v1514 = vadd.f32 0.0, %v1513
  %v1515 = vpop.f32.mrf.mxu0
  %v1516 = vadd.f32 0.0, %v1515
  %1517 = vdwg.mxu0
  %v1519 = vsel %vm245, %v830, 0
  %v1522 = vsel %vm245, %v831, 0
  %v1525 = vsel %vm245, %v832, 0
  %v1528 = vsel %vm245, %v833, 0
  %v1531 = vsel %vm1485, %v834, 0
  %1533 = vmatpush.bf16.msra.mxu0 0
  %1534 = vmatpush.bf16.msra.mxu0 0
  %1535 = vmatpush.bf16.msra.mxu0 0
  %1536 = vmatpush.bf16.msra.mxu0 0
  %1537 = vmatpush.bf16.msra.mxu0 0
  %1538 = vmatpush.bf16.msra.mxu0 0
  %1539 = vmatpush.bf16.msra.mxu0 0
  %1540 = vmatpush.bf16.msra.mxu0 %v1531
  %1541 = vmatmul.bf16.gmra.mxu0 %v1519
  %v1542 = vpop.f32.mrf.mxu0
  %v1543 = vadd.f32 %v1499, %v1542
  %v1544 = vpop.f32.mrf.mxu0
  %v1545 = vadd.f32 %v1501, %v1544
  %1546 = vmatmul.bf16.gmra.mxu0 %v1522
  %v1547 = vpop.f32.mrf.mxu0
  %v1548 = vadd.f32 %v1504, %v1547
  %v1549 = vpop.f32.mrf.mxu0
  %v1550 = vadd.f32 %v1506, %v1549
  %1551 = vmatmul.bf16.gmra.mxu0 %v1525
  %v1552 = vpop.f32.mrf.mxu0
  %v1553 = vadd.f32 %v1509, %v1552
  %v1554 = vpop.f32.mrf.mxu0
  %v1555 = vadd.f32 %v1511, %v1554
  %1556 = vmatmul.bf16.gmra.mxu0 %v1528
  %v1557 = vpop.f32.mrf.mxu0
  %v1558 = vadd.f32 %v1514, %v1557
  %v1559 = vpop.f32.mrf.mxu0
  %v1560 = vadd.f32 %v1516, %v1559
  %1561 = vdwg.mxu0
  %v1562 = vld [vmem:[%s6] sm:$0x1]
  %v1564 = vperm.slane %v1562, 0
  %v1566 = vadd.f32 %v1543, %v1564
  %v1567 = vadd.f32 %v1545, %v1564
  %v1568 = vadd.f32 %v1548, %v1564
  %v1569 = vadd.f32 %v1550, %v1564
  %v1570 = vadd.f32 %v1553, %v1564
  %v1571 = vadd.f32 %v1555, %v1564
  %v1572 = vadd.f32 %v1558, %v1564
  %v1573 = vadd.f32 %v1560, %v1564
  %v1574 = vpack.c.bf16 %v1567, %v1566
  %v1575 = vpack.c.bf16 %v1569, %v1568
  %v1576 = vpack.c.bf16 %v1571, %v1570
  %v1577 = vpack.c.bf16 %v1573, %v1572
  %v1578 = vld [vmem:[%s7] sm:$0xf]
  %v1579 = vld [vmem:[%s7 + $0x4] sm:$0xf]
  %v1580 = vld [vmem:[%s8] sm:$0x1]
  %v1582 = vperm.slane %v1580, 0
  %v1586 = vunpack.c.l.b16 %v1578
  %v1587 = vunpack.c.l.b16 %v1579
  %v1588 = vpack.c.b16 %v1587, %v1586
  %v1591 = vsel %vm91, %v1574, 0
  %v1594 = vsel %vm91, %v1575, 0
  %v1597 = vsel %vm91, %v1576, 0
  %v1600 = vsel %vm91, %v1577, 0
  %1602 = vmatpush.bf16.msra.mxu0 0
  %1603 = vmatpush.bf16.msra.mxu0 0
  %1604 = vmatpush.bf16.msra.mxu0 0
  %1605 = vmatpush.bf16.msra.mxu0 0
  %1606 = vmatpush.bf16.msra.mxu0 0
  %1607 = vmatpush.bf16.msra.mxu0 0
  %1608 = vmatpush.bf16.msra.mxu0 0
  %1609 = vmatpush.bf16.msra.mxu0 %v1588
  %1610 = vmatmul.bf16.gmra.mxu0 %v1591
  %v1611 = vpop.f32.mrf.mxu0
  %v1612 = vadd.f32 %v1582, %v1611
  %v1613 = vpop.f32.mrf.mxu0
  %v1614 = vadd.f32 %v1582, %v1613
  %1615 = vmatmul.bf16.gmra.mxu0 %v1594
  %v1616 = vpop.f32.mrf.mxu0
  %v1617 = vadd.f32 %v1582, %v1616
  %v1618 = vpop.f32.mrf.mxu0
  %v1619 = vadd.f32 %v1582, %v1618
  %1620 = vmatmul.bf16.gmra.mxu0 %v1597
  %v1621 = vpop.f32.mrf.mxu0
  %v1622 = vadd.f32 %v1582, %v1621
  %v1623 = vpop.f32.mrf.mxu0
  %v1624 = vadd.f32 %v1582, %v1623
  %1625 = vmatmul.bf16.gmra.mxu0 %v1600
  %v1626 = vpop.f32.mrf.mxu0
  %v1627 = vadd.f32 %v1582, %v1626
  %v1628 = vpop.f32.mrf.mxu0
  %v1629 = vadd.f32 %v1582, %v1628
  %1630 = vdwg.mxu0
  %v1631 = vld [vmem:[%s9] sm:$0xff]
  %v1632 = vld [vmem:[%s9 + $0x8] sm:$0xff]
  %v1633 = vld [vmem:[%s9 + $0x10] sm:$0xff]
  %v1634 = vld [vmem:[%s9 + $0x18] sm:$0xff]
  %v1635 = vld [vmem:[%s10] sm:$0x1]
  %v1637 = vperm.slane %v1635, 0
  %vm1639 = vcmask 261120
  %v1641 = vsel %vm1639, 0.0, 0
  %1643 = vmatpush.msra.mxu0 0.0
  %1644 = vmatpush.msra.mxu0 0.0
  %1645 = vmatpush.msra.mxu0 0.0
  %1646 = vmatpush.msra.mxu0 0.0
  %1647 = vmatpush.msra.mxu0 0.0
  %1648 = vmatpush.msra.mxu0 0.0
  %1649 = vmatpush.msra.mxu0 0.0
  %1650 = vmatpush.msra.mxu0 0.0
  %1651 = vmatpush.msra.mxu0 0.0
  %1652 = vmatpush.msra.mxu0 0.0
  %1653 = vmatpush.msra.mxu0 0.0
  %1654 = vmatpush.msra.mxu0 0.0
  %1655 = vmatpush.msra.mxu0 %v1634
  %1656 = vmatpush.msra.mxu0 %v1633
  %1657 = vmatpush.msra.mxu0 %v1632
  %1658 = vmatpush.msra.mxu0 %v1631
  %1659 = vmatmul.f32.gmra.mxu0 %v1641
  %v1660 = vpop.f32.mrf.mxu0
  %v1661 = vadd.f32 %v1637, %v1660
  %1662 = vdwg.mxu0
  %v1664 = vrot.slane %v1661, 1
  %v1665 = vrot.slane %v1661, 2
  %v1666 = vrot.slane %v1661, 3
  %v1667 = vrot.slane %v1661, 4
  %v1668 = vrot.slane %v1661, 5
  %v1669 = vrot.slane %v1661, 6
  %v1670 = vrot.slane %v1661, 7
  %v1679 = vadd.f32 %v1612, %v1661
  %v1680 = vadd.f32 %v1614, %v1664
  %v1681 = vadd.f32 %v1617, %v1665
  %v1682 = vadd.f32 %v1619, %v1666
  %v1683 = vadd.f32 %v1622, %v1667
  %v1684 = vadd.f32 %v1624, %v1668
  %v1685 = vadd.f32 %v1627, %v1669
  %v1686 = vadd.f32 %v1629, %v1670
  %v1687 = vxor.u32 %v1679, 2147483648
  %v1688 = vxor.u32 %v1680, 2147483648
  %v1689 = vxor.u32 %v1681, 2147483648
  %v1690 = vxor.u32 %v1682, 2147483648
  %v1691 = vxor.u32 %v1683, 2147483648
  %v1692 = vxor.u32 %v1684, 2147483648
  %v1693 = vxor.u32 %v1685, 2147483648
  %v1694 = vxor.u32 %v1686, 2147483648
  %v1695 = vmul.f32 %v1687, 1.442695
  %v1696 = vpow.pop %v1695
  %v1697 = vmul.f32 %v1688, 1.442695
  %v1698 = vpow.pop %v1697
  %v1699 = vmul.f32 %v1689, 1.442695
  %v1700 = vpow.pop %v1699
  %v1701 = vmul.f32 %v1690, 1.442695
  %v1702 = vpow.pop %v1701
  %v1703 = vmul.f32 %v1691, 1.442695
  %v1704 = vpow.pop %v1703
  %v1705 = vmul.f32 %v1692, 1.442695
  %v1706 = vpow.pop %v1705
  %v1707 = vmul.f32 %v1693, 1.442695
  %v1708 = vpow.pop %v1707
  %v1709 = vmul.f32 %v1694, 1.442695
  %v1710 = vpow.pop %v1709
  %v1711 = vadd.f32 %v1696, 1.0
  %v1712 = vadd.f32 %v1698, 1.0
  %v1713 = vadd.f32 %v1700, 1.0
  %v1714 = vadd.f32 %v1702, 1.0
  %v1715 = vadd.f32 %v1704, 1.0
  %v1716 = vadd.f32 %v1706, 1.0
  %v1717 = vadd.f32 %v1708, 1.0
  %v1718 = vadd.f32 %v1710, 1.0
  %v1719 = vrcp.pop %v1711
  %v1720 = vmul.f32 %v1711, %v1719
  %v1721 = vsub.f32 1.0, %v1720
  %v1722 = vmul.f32 %v1719, %v1721
  %v1723 = vadd.f32 %v1719, %v1722
  %vm1724 = vweird.f32 %v1711
  %vm1725 = vweird.f32 %v1719
  %vm1726 = vmor %vm1724, %vm1725
  %v1727 = vsel %vm1726, %v1719, %v1723
  %v1728 = vand.u32 2147483647, %v1711
  %vm1729 = vcmp.eq.f32.partialorder %v1728, 8.507059e+37
  %v1730 = vand.u32 %v1711, 2147483648
  %v1731 = vor.u32 1.1754944e-38, %v1730
  %v1732 = vsel %vm1729, %v1731, %v1727
  %v1733 = vmul.f32 1.0, %v1732
  %v1734 = vrcp.pop %v1712
  %v1735 = vmul.f32 %v1712, %v1734
  %v1736 = vsub.f32 1.0, %v1735
  %v1737 = vmul.f32 %v1734, %v1736
  %v1738 = vadd.f32 %v1734, %v1737
  %vm1739 = vweird.f32 %v1712
  %vm1740 = vweird.f32 %v1734
  %vm1741 = vmor %vm1739, %vm1740
  %v1742 = vsel %vm1741, %v1734, %v1738
  %v1743 = vand.u32 2147483647, %v1712
  %vm1744 = vcmp.eq.f32.partialorder %v1743, 8.507059e+37
  %v1745 = vand.u32 %v1712, 2147483648
  %v1746 = vor.u32 1.1754944e-38, %v1745
  %v1747 = vsel %vm1744, %v1746, %v1742
  %v1748 = vmul.f32 1.0, %v1747
  %v1749 = vrcp.pop %v1713
  %v1750 = vmul.f32 %v1713, %v1749
  %v1751 = vsub.f32 1.0, %v1750
  %v1752 = vmul.f32 %v1749, %v1751
  %v1753 = vadd.f32 %v1749, %v1752
  %vm1754 = vweird.f32 %v1713
  %vm1755 = vweird.f32 %v1749
  %vm1756 = vmor %vm1754, %vm1755
  %v1757 = vsel %vm1756, %v1749, %v1753
  %v1758 = vand.u32 2147483647, %v1713
  %vm1759 = vcmp.eq.f32.partialorder %v1758, 8.507059e+37
  %v1760 = vand.u32 %v1713, 2147483648
  %v1761 = vor.u32 1.1754944e-38, %v1760
  %v1762 = vsel %vm1759, %v1761, %v1757
  %v1763 = vmul.f32 1.0, %v1762
  %v1764 = vrcp.pop %v1714
  %v1765 = vmul.f32 %v1714, %v1764
  %v1766 = vsub.f32 1.0, %v1765
  %v1767 = vmul.f32 %v1764, %v1766
  %v1768 = vadd.f32 %v1764, %v1767
  %vm1769 = vweird.f32 %v1714
  %vm1770 = vweird.f32 %v1764
  %vm1771 = vmor %vm1769, %vm1770
  %v1772 = vsel %vm1771, %v1764, %v1768
  %v1773 = vand.u32 2147483647, %v1714
  %vm1774 = vcmp.eq.f32.partialorder %v1773, 8.507059e+37
  %v1775 = vand.u32 %v1714, 2147483648
  %v1776 = vor.u32 1.1754944e-38, %v1775
  %v1777 = vsel %vm1774, %v1776, %v1772
  %v1778 = vmul.f32 1.0, %v1777
  %v1779 = vrcp.pop %v1715
  %v1780 = vmul.f32 %v1715, %v1779
  %v1781 = vsub.f32 1.0, %v1780
  %v1782 = vmul.f32 %v1779, %v1781
  %v1783 = vadd.f32 %v1779, %v1782
  %vm1784 = vweird.f32 %v1715
  %vm1785 = vweird.f32 %v1779
  %vm1786 = vmor %vm1784, %vm1785
  %v1787 = vsel %vm1786, %v1779, %v1783
  %v1788 = vand.u32 2147483647, %v1715
  %vm1789 = vcmp.eq.f32.partialorder %v1788, 8.507059e+37
  %v1790 = vand.u32 %v1715, 2147483648
  %v1791 = vor.u32 1.1754944e-38, %v1790
  %v1792 = vsel %vm1789, %v1791, %v1787
  %v1793 = vmul.f32 1.0, %v1792
  %v1794 = vrcp.pop %v1716
  %v1795 = vmul.f32 %v1716, %v1794
  %v1796 = vsub.f32 1.0, %v1795
  %v1797 = vmul.f32 %v1794, %v1796
  %v1798 = vadd.f32 %v1794, %v1797
  %vm1799 = vweird.f32 %v1716
  %vm1800 = vweird.f32 %v1794
  %vm1801 = vmor %vm1799, %vm1800
  %v1802 = vsel %vm1801, %v1794, %v1798
  %v1803 = vand.u32 2147483647, %v1716
  %vm1804 = vcmp.eq.f32.partialorder %v1803, 8.507059e+37
  %v1805 = vand.u32 %v1716, 2147483648
  %v1806 = vor.u32 1.1754944e-38, %v1805
  %v1807 = vsel %vm1804, %v1806, %v1802
  %v1808 = vmul.f32 1.0, %v1807
  %v1809 = vrcp.pop %v1717
  %v1810 = vmul.f32 %v1717, %v1809
  %v1811 = vsub.f32 1.0, %v1810
  %v1812 = vmul.f32 %v1809, %v1811
  %v1813 = vadd.f32 %v1809, %v1812
  %vm1814 = vweird.f32 %v1717
  %vm1815 = vweird.f32 %v1809
  %vm1816 = vmor %vm1814, %vm1815
  %v1817 = vsel %vm1816, %v1809, %v1813
  %v1818 = vand.u32 2147483647, %v1717
  %vm1819 = vcmp.eq.f32.partialorder %v1818, 8.507059e+37
  %v1820 = vand.u32 %v1717, 2147483648
  %v1821 = vor.u32 1.1754944e-38, %v1820
  %v1822 = vsel %vm1819, %v1821, %v1817
  %v1823 = vmul.f32 1.0, %v1822
  %v1824 = vrcp.pop %v1718
  %v1825 = vmul.f32 %v1718, %v1824
  %v1826 = vsub.f32 1.0, %v1825
  %v1827 = vmul.f32 %v1824, %v1826
  %v1828 = vadd.f32 %v1824, %v1827
  %vm1829 = vweird.f32 %v1718
  %vm1830 = vweird.f32 %v1824
  %vm1831 = vmor %vm1829, %vm1830
  %v1832 = vsel %vm1831, %v1824, %v1828
  %v1833 = vand.u32 2147483647, %v1718
  %vm1834 = vcmp.eq.f32.partialorder %v1833, 8.507059e+37
  %v1835 = vand.u32 %v1718, 2147483648
  %v1836 = vor.u32 1.1754944e-38, %v1835
  %v1837 = vsel %vm1834, %v1836, %v1832
  %v1838 = vmul.f32 1.0, %v1837
  %1839 = vrot.lane.b32.xlu0 %v1661, 64
  %v1840 = vpop.permute.xlu0 %1839
  %1841 = vrot.lane.b32.xlu0 %v1664, 64
  %v1842 = vpop.permute.xlu0 %1841
  %1843 = vrot.lane.b32.xlu0 %v1665, 64
  %v1844 = vpop.permute.xlu0 %1843
  %1845 = vrot.lane.b32.xlu0 %v1666, 64
  %v1846 = vpop.permute.xlu0 %1845
  %1847 = vrot.lane.b32.xlu0 %v1667, 64
  %v1848 = vpop.permute.xlu0 %1847
  %1849 = vrot.lane.b32.xlu0 %v1668, 64
  %v1850 = vpop.permute.xlu0 %1849
  %1851 = vrot.lane.b32.xlu0 %v1669, 64
  %v1852 = vpop.permute.xlu0 %1851
  %1853 = vrot.lane.b32.xlu0 %v1670, 64
  %v1854 = vpop.permute.xlu0 %1853
  %v1863 = vmul.f32 %v1733, %v1840
  %v1864 = vmul.f32 %v1748, %v1842
  %v1865 = vmul.f32 %v1763, %v1844
  %v1866 = vmul.f32 %v1778, %v1846
  %v1867 = vmul.f32 %v1793, %v1848
  %v1868 = vmul.f32 %v1808, %v1850
  %v1869 = vmul.f32 %v1823, %v1852
  %v1870 = vmul.f32 %v1838, %v1854
  %1879 = vrot.lane.b32.xlu0 %v1863, 64
  %v1880 = vpop.permute.xlu0 %1879
  %1881 = vrot.lane.b32.xlu0 %v1864, 64
  %v1882 = vpop.permute.xlu0 %1881
  %1883 = vrot.lane.b32.xlu0 %v1865, 64
  %v1884 = vpop.permute.xlu0 %1883
  %1885 = vrot.lane.b32.xlu0 %v1866, 64
  %v1886 = vpop.permute.xlu0 %1885
  %1887 = vrot.lane.b32.xlu0 %v1867, 64
  %v1888 = vpop.permute.xlu0 %1887
  %1889 = vrot.lane.b32.xlu0 %v1868, 64
  %v1890 = vpop.permute.xlu0 %1889
  %1891 = vrot.lane.b32.xlu0 %v1869, 64
  %v1892 = vpop.permute.xlu0 %1891
  %1893 = vrot.lane.b32.xlu0 %v1870, 64
  %v1894 = vpop.permute.xlu0 %1893
  %v1903 = vadd.f32 %v1612, %v1880
  %v1904 = vadd.f32 %v1614, %v1882
  %v1905 = vadd.f32 %v1617, %v1884
  %v1906 = vadd.f32 %v1619, %v1886
  %v1907 = vadd.f32 %v1622, %v1888
  %v1908 = vadd.f32 %v1624, %v1890
  %v1909 = vadd.f32 %v1627, %v1892
  %v1910 = vadd.f32 %v1629, %v1894
  %v1911 = vtanh.pop %v1903
  %v1912 = vtanh.pop %v1904
  %v1913 = vtanh.pop %v1905
  %v1914 = vtanh.pop %v1906
  %v1915 = vtanh.pop %v1907
  %v1916 = vtanh.pop %v1908
  %v1917 = vtanh.pop %v1909
  %v1918 = vtanh.pop %v1910
  %v1919 = vsub.f32 1.0, %v1733
  %v1920 = vsub.f32 1.0, %v1748
  %v1921 = vsub.f32 1.0, %v1763
  %v1922 = vsub.f32 1.0, %v1778
  %v1923 = vsub.f32 1.0, %v1793
  %v1924 = vsub.f32 1.0, %v1808
  %v1925 = vsub.f32 1.0, %v1823
  %v1926 = vsub.f32 1.0, %v1838
  %1935 = vrot.lane.b32.xlu0 %v1911, 96
  %v1936 = vpop.permute.xlu0 %1935
  %1937 = vrot.lane.b32.xlu0 %v1912, 96
  %v1938 = vpop.permute.xlu0 %1937
  %1939 = vrot.lane.b32.xlu0 %v1913, 96
  %v1940 = vpop.permute.xlu0 %1939
  %1941 = vrot.lane.b32.xlu0 %v1914, 96
  %v1942 = vpop.permute.xlu0 %1941
  %1943 = vrot.lane.b32.xlu0 %v1915, 96
  %v1944 = vpop.permute.xlu0 %1943
  %1945 = vrot.lane.b32.xlu0 %v1916, 96
  %v1946 = vpop.permute.xlu0 %1945
  %1947 = vrot.lane.b32.xlu0 %v1917, 96
  %v1948 = vpop.permute.xlu0 %1947
  %1949 = vrot.lane.b32.xlu0 %v1918, 96
  %v1950 = vpop.permute.xlu0 %1949
  %v1959 = vmul.f32 %v1919, %v1936
  %v1960 = vmul.f32 %v1920, %v1938
  %v1961 = vmul.f32 %v1921, %v1940
  %v1962 = vmul.f32 %v1922, %v1942
  %v1963 = vmul.f32 %v1923, %v1944
  %v1964 = vmul.f32 %v1924, %v1946
  %v1965 = vmul.f32 %v1925, %v1948
  %v1966 = vmul.f32 %v1926, %v1950
  %v1967 = vmul.f32 %v1733, 0.0
  %v1968 = vmul.f32 %v1748, 0.0
  %v1969 = vmul.f32 %v1763, 0.0
  %v1970 = vmul.f32 %v1778, 0.0
  %v1971 = vmul.f32 %v1793, 0.0
  %v1972 = vmul.f32 %v1808, 0.0
  %v1973 = vmul.f32 %v1823, 0.0
  %v1974 = vmul.f32 %v1838, 0.0
  %v1975 = vadd.f32 %v1959, %v1967
  %v1976 = vadd.f32 %v1960, %v1968
  %v1977 = vadd.f32 %v1961, %v1969
  %v1978 = vadd.f32 %v1962, %v1970
  %v1979 = vadd.f32 %v1963, %v1971
  %v1980 = vadd.f32 %v1964, %v1972
  %v1981 = vadd.f32 %v1965, %v1973
  %v1982 = vadd.f32 %v1966, %v1974
  %v1991 = vrot.slane %v1976, 7
  %vm1992 = vcmask 1041409
  %v1993 = vsel %vm1992, %v1991, %v1975
  %v1994 = vrot.slane %v1977, 6
  %vm1995 = vcmask 1042434
  %v1996 = vsel %vm1995, %v1994, %v1993
  %v1997 = vrot.slane %v1978, 5
  %vm1998 = vcmask 1043459
  %v1999 = vsel %vm1998, %v1997, %v1996
  %v2000 = vrot.slane %v1979, 4
  %vm2001 = vcmask 1044484
  %v2002 = vsel %vm2001, %v2000, %v1999
  %v2003 = vrot.slane %v1980, 3
  %vm2004 = vcmask 1045509
  %v2005 = vsel %vm2004, %v2003, %v2002
  %v2006 = vrot.slane %v1981, 2
  %vm2007 = vcmask 1046534
  %v2008 = vsel %vm2007, %v2006, %v2005
  %v2009 = vrot.slane %v1982, 1
  %vm2010 = vcmask 1047559
  %v2011 = vsel %vm2010, %v2009, %v2008
  %2012 = vrot.lane.b32.xlu0 %v2011, 96
  %v2013 = vpop.permute.xlu0 %2012
  %v2014 = vsel %vm1639, %v2013, 0
  %2016 = vmatpush.msra.mxu0 0.0
  %2017 = vmatpush.msra.mxu0 0.0
  %2018 = vmatpush.msra.mxu0 0.0
  %2019 = vmatpush.msra.mxu0 0.0
  %2020 = vmatpush.msra.mxu0 0.0
  %2021 = vmatpush.msra.mxu0 0.0
  %2022 = vmatpush.msra.mxu0 0.0
  %2023 = vmatpush.msra.mxu0 0.0
  %2024 = vmatpush.msra.mxu0 0.0
  %2025 = vmatpush.msra.mxu0 0.0
  %2026 = vmatpush.msra.mxu0 0.0
  %2027 = vmatpush.msra.mxu0 0.0
  %2028 = vmatpush.msra.mxu0 %v1634
  %2029 = vmatpush.msra.mxu0 %v1633
  %2030 = vmatpush.msra.mxu0 %v1632
  %2031 = vmatpush.msra.mxu0 %v1631
  %2032 = vmatmul.f32.gmra.mxu0 %v2014
  %v2033 = vpop.f32.mrf.mxu0
  %v2034 = vadd.f32 %v1637, %v2033
  %2035 = vdwg.mxu0
  %v2037 = vrot.slane %v2034, 7
  %v2038 = vrot.slane %v2034, 1
  %v2039 = vrot.slane %v2034, 2
  %v2040 = vrot.slane %v2034, 3
  %v2041 = vrot.slane %v2034, 4
  %v2042 = vrot.slane %v2034, 5
  %v2043 = vrot.slane %v2034, 6
  %v2052 = vadd.f32 %v1612, %v2037
  %v2053 = vadd.f32 %v1614, %v2034
  %v2054 = vadd.f32 %v1617, %v2038
  %v2055 = vadd.f32 %v1619, %v2039
  %v2056 = vadd.f32 %v1622, %v2040
  %v2057 = vadd.f32 %v1624, %v2041
  %v2058 = vadd.f32 %v1627, %v2042
  %v2059 = vadd.f32 %v1629, %v2043
  %v2060 = vxor.u32 %v2052, 2147483648
  %v2061 = vxor.u32 %v2053, 2147483648
  %v2062 = vxor.u32 %v2054, 2147483648
  %v2063 = vxor.u32 %v2055, 2147483648
  %v2064 = vxor.u32 %v2056, 2147483648
  %v2065 = vxor.u32 %v2057, 2147483648
  %v2066 = vxor.u32 %v2058, 2147483648
  %v2067 = vxor.u32 %v2059, 2147483648
  %v2068 = vmul.f32 %v2060, 1.442695
  %v2069 = vpow.pop %v2068
  %v2070 = vmul.f32 %v2061, 1.442695
  %v2071 = vpow.pop %v2070
  %v2072 = vmul.f32 %v2062, 1.442695
  %v2073 = vpow.pop %v2072
  %v2074 = vmul.f32 %v2063, 1.442695
  %v2075 = vpow.pop %v2074
  %v2076 = vmul.f32 %v2064, 1.442695
  %v2077 = vpow.pop %v2076
  %v2078 = vmul.f32 %v2065, 1.442695
  %v2079 = vpow.pop %v2078
  %v2080 = vmul.f32 %v2066, 1.442695
  %v2081 = vpow.pop %v2080
  %v2082 = vmul.f32 %v2067, 1.442695
  %v2083 = vpow.pop %v2082
  %v2084 = vadd.f32 %v2069, 1.0
  %v2085 = vadd.f32 %v2071, 1.0
  %v2086 = vadd.f32 %v2073, 1.0
  %v2087 = vadd.f32 %v2075, 1.0
  %v2088 = vadd.f32 %v2077, 1.0
  %v2089 = vadd.f32 %v2079, 1.0
  %v2090 = vadd.f32 %v2081, 1.0
  %v2091 = vadd.f32 %v2083, 1.0
  %v2092 = vrcp.pop %v2084
  %v2093 = vmul.f32 %v2084, %v2092
  %v2094 = vsub.f32 1.0, %v2093
  %v2095 = vmul.f32 %v2092, %v2094
  %v2096 = vadd.f32 %v2092, %v2095
  %vm2097 = vweird.f32 %v2084
  %vm2098 = vweird.f32 %v2092
  %vm2099 = vmor %vm2097, %vm2098
  %v2100 = vsel %vm2099, %v2092, %v2096
  %v2101 = vand.u32 2147483647, %v2084
  %vm2102 = vcmp.eq.f32.partialorder %v2101, 8.507059e+37
  %v2103 = vand.u32 %v2084, 2147483648
  %v2104 = vor.u32 1.1754944e-38, %v2103
  %v2105 = vsel %vm2102, %v2104, %v2100
  %v2106 = vmul.f32 1.0, %v2105
  %v2107 = vrcp.pop %v2085
  %v2108 = vmul.f32 %v2085, %v2107
  %v2109 = vsub.f32 1.0, %v2108
  %v2110 = vmul.f32 %v2107, %v2109
  %v2111 = vadd.f32 %v2107, %v2110
  %vm2112 = vweird.f32 %v2085
  %vm2113 = vweird.f32 %v2107
  %vm2114 = vmor %vm2112, %vm2113
  %v2115 = vsel %vm2114, %v2107, %v2111
  %v2116 = vand.u32 2147483647, %v2085
  %vm2117 = vcmp.eq.f32.partialorder %v2116, 8.507059e+37
  %v2118 = vand.u32 %v2085, 2147483648
  %v2119 = vor.u32 1.1754944e-38, %v2118
  %v2120 = vsel %vm2117, %v2119, %v2115
  %v2121 = vmul.f32 1.0, %v2120
  %v2122 = vrcp.pop %v2086
  %v2123 = vmul.f32 %v2086, %v2122
  %v2124 = vsub.f32 1.0, %v2123
  %v2125 = vmul.f32 %v2122, %v2124
  %v2126 = vadd.f32 %v2122, %v2125
  %vm2127 = vweird.f32 %v2086
  %vm2128 = vweird.f32 %v2122
  %vm2129 = vmor %vm2127, %vm2128
  %v2130 = vsel %vm2129, %v2122, %v2126
  %v2131 = vand.u32 2147483647, %v2086
  %vm2132 = vcmp.eq.f32.partialorder %v2131, 8.507059e+37
  %v2133 = vand.u32 %v2086, 2147483648
  %v2134 = vor.u32 1.1754944e-38, %v2133
  %v2135 = vsel %vm2132, %v2134, %v2130
  %v2136 = vmul.f32 1.0, %v2135
  %v2137 = vrcp.pop %v2087
  %v2138 = vmul.f32 %v2087, %v2137
  %v2139 = vsub.f32 1.0, %v2138
  %v2140 = vmul.f32 %v2137, %v2139
  %v2141 = vadd.f32 %v2137, %v2140
  %vm2142 = vweird.f32 %v2087
  %vm2143 = vweird.f32 %v2137
  %vm2144 = vmor %vm2142, %vm2143
  %v2145 = vsel %vm2144, %v2137, %v2141
  %v2146 = vand.u32 2147483647, %v2087
  %vm2147 = vcmp.eq.f32.partialorder %v2146, 8.507059e+37
  %v2148 = vand.u32 %v2087, 2147483648
  %v2149 = vor.u32 1.1754944e-38, %v2148
  %v2150 = vsel %vm2147, %v2149, %v2145
  %v2151 = vmul.f32 1.0, %v2150
  %v2152 = vrcp.pop %v2088
  %v2153 = vmul.f32 %v2088, %v2152
  %v2154 = vsub.f32 1.0, %v2153
  %v2155 = vmul.f32 %v2152, %v2154
  %v2156 = vadd.f32 %v2152, %v2155
  %vm2157 = vweird.f32 %v2088
  %vm2158 = vweird.f32 %v2152
  %vm2159 = vmor %vm2157, %vm2158
  %v2160 = vsel %vm2159, %v2152, %v2156
  %v2161 = vand.u32 2147483647, %v2088
  %vm2162 = vcmp.eq.f32.partialorder %v2161, 8.507059e+37
  %v2163 = vand.u32 %v2088, 2147483648
  %v2164 = vor.u32 1.1754944e-38, %v2163
  %v2165 = vsel %vm2162, %v2164, %v2160
  %v2166 = vmul.f32 1.0, %v2165
  %v2167 = vrcp.pop %v2089
  %v2168 = vmul.f32 %v2089, %v2167
  %v2169 = vsub.f32 1.0, %v2168
  %v2170 = vmul.f32 %v2167, %v2169
  %v2171 = vadd.f32 %v2167, %v2170
  %vm2172 = vweird.f32 %v2089
  %vm2173 = vweird.f32 %v2167
  %vm2174 = vmor %vm2172, %vm2173
  %v2175 = vsel %vm2174, %v2167, %v2171
  %v2176 = vand.u32 2147483647, %v2089
  %vm2177 = vcmp.eq.f32.partialorder %v2176, 8.507059e+37
  %v2178 = vand.u32 %v2089, 2147483648
  %v2179 = vor.u32 1.1754944e-38, %v2178
  %v2180 = vsel %vm2177, %v2179, %v2175
  %v2181 = vmul.f32 1.0, %v2180
  %v2182 = vrcp.pop %v2090
  %v2183 = vmul.f32 %v2090, %v2182
  %v2184 = vsub.f32 1.0, %v2183
  %v2185 = vmul.f32 %v2182, %v2184
  %v2186 = vadd.f32 %v2182, %v2185
  %vm2187 = vweird.f32 %v2090
  %vm2188 = vweird.f32 %v2182
  %vm2189 = vmor %vm2187, %vm2188
  %v2190 = vsel %vm2189, %v2182, %v2186
  %v2191 = vand.u32 2147483647, %v2090
  %vm2192 = vcmp.eq.f32.partialorder %v2191, 8.507059e+37
  %v2193 = vand.u32 %v2090, 2147483648
  %v2194 = vor.u32 1.1754944e-38, %v2193
  %v2195 = vsel %vm2192, %v2194, %v2190
  %v2196 = vmul.f32 1.0, %v2195
  %v2197 = vrcp.pop %v2091
  %v2198 = vmul.f32 %v2091, %v2197
  %v2199 = vsub.f32 1.0, %v2198
  %v2200 = vmul.f32 %v2197, %v2199
  %v2201 = vadd.f32 %v2197, %v2200
  %vm2202 = vweird.f32 %v2091
  %vm2203 = vweird.f32 %v2197
  %vm2204 = vmor %vm2202, %vm2203
  %v2205 = vsel %vm2204, %v2197, %v2201
  %v2206 = vand.u32 2147483647, %v2091
  %vm2207 = vcmp.eq.f32.partialorder %v2206, 8.507059e+37
  %v2208 = vand.u32 %v2091, 2147483648
  %v2209 = vor.u32 1.1754944e-38, %v2208
  %v2210 = vsel %vm2207, %v2209, %v2205
  %v2211 = vmul.f32 1.0, %v2210
  %2212 = vrot.lane.b32.xlu0 %v2037, 64
  %v2213 = vpop.permute.xlu0 %2212
  %2214 = vrot.lane.b32.xlu0 %v2034, 64
  %v2215 = vpop.permute.xlu0 %2214
  %2216 = vrot.lane.b32.xlu0 %v2038, 64
  %v2217 = vpop.permute.xlu0 %2216
  %2218 = vrot.lane.b32.xlu0 %v2039, 64
  %v2219 = vpop.permute.xlu0 %2218
  %2220 = vrot.lane.b32.xlu0 %v2040, 64
  %v2221 = vpop.permute.xlu0 %2220
  %2222 = vrot.lane.b32.xlu0 %v2041, 64
  %v2223 = vpop.permute.xlu0 %2222
  %2224 = vrot.lane.b32.xlu0 %v2042, 64
  %v2225 = vpop.permute.xlu0 %2224
  %2226 = vrot.lane.b32.xlu0 %v2043, 64
  %v2227 = vpop.permute.xlu0 %2226
  %v2236 = vmul.f32 %v2106, %v2213
  %v2237 = vmul.f32 %v2121, %v2215
  %v2238 = vmul.f32 %v2136, %v2217
  %v2239 = vmul.f32 %v2151, %v2219
  %v2240 = vmul.f32 %v2166, %v2221
  %v2241 = vmul.f32 %v2181, %v2223
  %v2242 = vmul.f32 %v2196, %v2225
  %v2243 = vmul.f32 %v2211, %v2227
  %2252 = vrot.lane.b32.xlu0 %v2236, 64
  %v2253 = vpop.permute.xlu0 %2252
  %2254 = vrot.lane.b32.xlu0 %v2237, 64
  %v2255 = vpop.permute.xlu0 %2254
  %2256 = vrot.lane.b32.xlu0 %v2238, 64
  %v2257 = vpop.permute.xlu0 %2256
  %2258 = vrot.lane.b32.xlu0 %v2239, 64
  %v2259 = vpop.permute.xlu0 %2258
  %2260 = vrot.lane.b32.xlu0 %v2240, 64
  %v2261 = vpop.permute.xlu0 %2260
  %2262 = vrot.lane.b32.xlu0 %v2241, 64
  %v2263 = vpop.permute.xlu0 %2262
  %2264 = vrot.lane.b32.xlu0 %v2242, 64
  %v2265 = vpop.permute.xlu0 %2264
  %2266 = vrot.lane.b32.xlu0 %v2243, 64
  %v2267 = vpop.permute.xlu0 %2266
  %v2276 = vadd.f32 %v1612, %v2253
  %v2277 = vadd.f32 %v1614, %v2255
  %v2278 = vadd.f32 %v1617, %v2257
  %v2279 = vadd.f32 %v1619, %v2259
  %v2280 = vadd.f32 %v1622, %v2261
  %v2281 = vadd.f32 %v1624, %v2263
  %v2282 = vadd.f32 %v1627, %v2265
  %v2283 = vadd.f32 %v1629, %v2267
  %v2284 = vtanh.pop %v2276
  %v2285 = vtanh.pop %v2277
  %v2286 = vtanh.pop %v2278
  %v2287 = vtanh.pop %v2279
  %v2288 = vtanh.pop %v2280
  %v2289 = vtanh.pop %v2281
  %v2290 = vtanh.pop %v2282
  %v2291 = vtanh.pop %v2283
  %v2292 = vsub.f32 1.0, %v2106
  %v2293 = vsub.f32 1.0, %v2121
  %v2294 = vsub.f32 1.0, %v2136
  %v2295 = vsub.f32 1.0, %v2151
  %v2296 = vsub.f32 1.0, %v2166
  %v2297 = vsub.f32 1.0, %v2181
  %v2298 = vsub.f32 1.0, %v2196
  %v2299 = vsub.f32 1.0, %v2211
  %2308 = vrot.lane.b32.xlu0 %v2284, 96
  %v2309 = vpop.permute.xlu0 %2308
  %2310 = vrot.lane.b32.xlu0 %v2285, 96
  %v2311 = vpop.permute.xlu0 %2310
  %2312 = vrot.lane.b32.xlu0 %v2286, 96
  %v2313 = vpop.permute.xlu0 %2312
  %2314 = vrot.lane.b32.xlu0 %v2287, 96
  %v2315 = vpop.permute.xlu0 %2314
  %2316 = vrot.lane.b32.xlu0 %v2288, 96
  %v2317 = vpop.permute.xlu0 %2316
  %2318 = vrot.lane.b32.xlu0 %v2289, 96
  %v2319 = vpop.permute.xlu0 %2318
  %2320 = vrot.lane.b32.xlu0 %v2290, 96
  %v2321 = vpop.permute.xlu0 %2320
  %2322 = vrot.lane.b32.xlu0 %v2291, 96
  %v2323 = vpop.permute.xlu0 %2322
  %v2332 = vmul.f32 %v2292, %v2309
  %v2333 = vmul.f32 %v2293, %v2311
  %v2334 = vmul.f32 %v2294, %v2313
  %v2335 = vmul.f32 %v2295, %v2315
  %v2336 = vmul.f32 %v2296, %v2317
  %v2337 = vmul.f32 %v2297, %v2319
  %v2338 = vmul.f32 %v2298, %v2321
  %v2339 = vmul.f32 %v2299, %v2323
  %v2340 = vrot.slane %v1975, 7
  %v2341 = vrot.slane %v1977, 7
  %v2342 = vrot.slane %v1978, 7
  %v2343 = vrot.slane %v1979, 7
  %v2344 = vrot.slane %v1980, 7
  %v2345 = vrot.slane %v1981, 7
  %v2346 = vrot.slane %v1982, 7
  %v2355 = vmul.f32 %v2106, %v2340
  %v2356 = vmul.f32 %v2121, %v1991
  %v2357 = vmul.f32 %v2136, %v2341
  %v2358 = vmul.f32 %v2151, %v2342
  %v2359 = vmul.f32 %v2166, %v2343
  %v2360 = vmul.f32 %v2181, %v2344
  %v2361 = vmul.f32 %v2196, %v2345
  %v2362 = vmul.f32 %v2211, %v2346
  %v2363 = vadd.f32 %v2332, %v2355
  %v2364 = vadd.f32 %v2333, %v2356
  %v2365 = vadd.f32 %v2334, %v2357
  %v2366 = vadd.f32 %v2335, %v2358
  %v2367 = vadd.f32 %v2336, %v2359
  %v2368 = vadd.f32 %v2337, %v2360
  %v2369 = vadd.f32 %v2338, %v2361
  %v2370 = vadd.f32 %v2339, %v2362
  %v2379 = vrot.slane %v2363, 1
  %v2380 = vsel %vm1992, %v2364, %v2379
  %v2381 = vrot.slane %v2365, 7
  %v2382 = vsel %vm1995, %v2381, %v2380
  %v2383 = vrot.slane %v2366, 6
  %v2384 = vsel %vm1998, %v2383, %v2382
  %v2385 = vrot.slane %v2367, 5
  %v2386 = vsel %vm2001, %v2385, %v2384
  %v2387 = vrot.slane %v2368, 4
  %v2388 = vsel %vm2004, %v2387, %v2386
  %v2389 = vrot.slane %v2369, 3
  %v2390 = vsel %vm2007, %v2389, %v2388
  %v2391 = vrot.slane %v2370, 2
  %v2392 = vsel %vm2010, %v2391, %v2390
  %2393 = vrot.lane.b32.xlu0 %v2392, 96
  %v2394 = vpop.permute.xlu0 %2393
  %v2395 = vsel %vm1639, %v2394, 0
  %2397 = vmatpush.msra.mxu0 0.0
  %2398 = vmatpush.msra.mxu0 0.0
  %2399 = vmatpush.msra.mxu0 0.0
  %2400 = vmatpush.msra.mxu0 0.0
  %2401 = vmatpush.msra.mxu0 0.0
  %2402 = vmatpush.msra.mxu0 0.0
  %2403 = vmatpush.msra.mxu0 0.0
  %2404 = vmatpush.msra.mxu0 0.0
  %2405 = vmatpush.msra.mxu0 0.0
  %2406 = vmatpush.msra.mxu0 0.0
  %2407 = vmatpush.msra.mxu0 0.0
  %2408 = vmatpush.msra.mxu0 0.0
  %2409 = vmatpush.msra.mxu0 %v1634
  %2410 = vmatpush.msra.mxu0 %v1633
  %2411 = vmatpush.msra.mxu0 %v1632
  %2412 = vmatpush.msra.mxu0 %v1631
  %2413 = vmatmul.f32.gmra.mxu0 %v2395
  %v2414 = vpop.f32.mrf.mxu0
  %v2415 = vadd.f32 %v1637, %v2414
  %2416 = vdwg.mxu0
  %v2418 = vrot.slane %v2415, 6
  %v2419 = vrot.slane %v2415, 7
  %v2420 = vrot.slane %v2415, 1
  %v2421 = vrot.slane %v2415, 2
  %v2422 = vrot.slane %v2415, 3
  %v2423 = vrot.slane %v2415, 4
  %v2424 = vrot.slane %v2415, 5
  %v2433 = vadd.f32 %v1612, %v2418
  %v2434 = vadd.f32 %v1614, %v2419
  %v2435 = vadd.f32 %v1617, %v2415
  %v2436 = vadd.f32 %v1619, %v2420
  %v2437 = vadd.f32 %v1622, %v2421
  %v2438 = vadd.f32 %v1624, %v2422
  %v2439 = vadd.f32 %v1627, %v2423
  %v2440 = vadd.f32 %v1629, %v2424
  %v2441 = vxor.u32 %v2433, 2147483648
  %v2442 = vxor.u32 %v2434, 2147483648
  %v2443 = vxor.u32 %v2435, 2147483648
  %v2444 = vxor.u32 %v2436, 2147483648
  %v2445 = vxor.u32 %v2437, 2147483648
  %v2446 = vxor.u32 %v2438, 2147483648
  %v2447 = vxor.u32 %v2439, 2147483648
  %v2448 = vxor.u32 %v2440, 2147483648
  %v2449 = vmul.f32 %v2441, 1.442695
  %v2450 = vpow.pop %v2449
  %v2451 = vmul.f32 %v2442, 1.442695
  %v2452 = vpow.pop %v2451
  %v2453 = vmul.f32 %v2443, 1.442695
  %v2454 = vpow.pop %v2453
  %v2455 = vmul.f32 %v2444, 1.442695
  %v2456 = vpow.pop %v2455
  %v2457 = vmul.f32 %v2445, 1.442695
  %v2458 = vpow.pop %v2457
  %v2459 = vmul.f32 %v2446, 1.442695
  %v2460 = vpow.pop %v2459
  %v2461 = vmul.f32 %v2447, 1.442695
  %v2462 = vpow.pop %v2461
  %v2463 = vmul.f32 %v2448, 1.442695
  %v2464 = vpow.pop %v2463
  %v2465 = vadd.f32 %v2450, 1.0
  %v2466 = vadd.f32 %v2452, 1.0
  %v2467 = vadd.f32 %v2454, 1.0
  %v2468 = vadd.f32 %v2456, 1.0
  %v2469 = vadd.f32 %v2458, 1.0
  %v2470 = vadd.f32 %v2460, 1.0
  %v2471 = vadd.f32 %v2462, 1.0
  %v2472 = vadd.f32 %v2464, 1.0
  %v2473 = vrcp.pop %v2465
  %v2474 = vmul.f32 %v2465, %v2473
  %v2475 = vsub.f32 1.0, %v2474
  %v2476 = vmul.f32 %v2473, %v2475
  %v2477 = vadd.f32 %v2473, %v2476
  %vm2478 = vweird.f32 %v2465
  %vm2479 = vweird.f32 %v2473
  %vm2480 = vmor %vm2478, %vm2479
  %v2481 = vsel %vm2480, %v2473, %v2477
  %v2482 = vand.u32 2147483647, %v2465
  %vm2483 = vcmp.eq.f32.partialorder %v2482, 8.507059e+37
  %v2484 = vand.u32 %v2465, 2147483648
  %v2485 = vor.u32 1.1754944e-38, %v2484
  %v2486 = vsel %vm2483, %v2485, %v2481
  %v2487 = vmul.f32 1.0, %v2486
  %v2488 = vrcp.pop %v2466
  %v2489 = vmul.f32 %v2466, %v2488
  %v2490 = vsub.f32 1.0, %v2489
  %v2491 = vmul.f32 %v2488, %v2490
  %v2492 = vadd.f32 %v2488, %v2491
  %vm2493 = vweird.f32 %v2466
  %vm2494 = vweird.f32 %v2488
  %vm2495 = vmor %vm2493, %vm2494
  %v2496 = vsel %vm2495, %v2488, %v2492
  %v2497 = vand.u32 2147483647, %v2466
  %vm2498 = vcmp.eq.f32.partialorder %v2497, 8.507059e+37
  %v2499 = vand.u32 %v2466, 2147483648
  %v2500 = vor.u32 1.1754944e-38, %v2499
  %v2501 = vsel %vm2498, %v2500, %v2496
  %v2502 = vmul.f32 1.0, %v2501
  %v2503 = vrcp.pop %v2467
  %v2504 = vmul.f32 %v2467, %v2503
  %v2505 = vsub.f32 1.0, %v2504
  %v2506 = vmul.f32 %v2503, %v2505
  %v2507 = vadd.f32 %v2503, %v2506
  %vm2508 = vweird.f32 %v2467
  %vm2509 = vweird.f32 %v2503
  %vm2510 = vmor %vm2508, %vm2509
  %v2511 = vsel %vm2510, %v2503, %v2507
  %v2512 = vand.u32 2147483647, %v2467
  %vm2513 = vcmp.eq.f32.partialorder %v2512, 8.507059e+37
  %v2514 = vand.u32 %v2467, 2147483648
  %v2515 = vor.u32 1.1754944e-38, %v2514
  %v2516 = vsel %vm2513, %v2515, %v2511
  %v2517 = vmul.f32 1.0, %v2516
  %v2518 = vrcp.pop %v2468
  %v2519 = vmul.f32 %v2468, %v2518
  %v2520 = vsub.f32 1.0, %v2519
  %v2521 = vmul.f32 %v2518, %v2520
  %v2522 = vadd.f32 %v2518, %v2521
  %vm2523 = vweird.f32 %v2468
  %vm2524 = vweird.f32 %v2518
  %vm2525 = vmor %vm2523, %vm2524
  %v2526 = vsel %vm2525, %v2518, %v2522
  %v2527 = vand.u32 2147483647, %v2468
  %vm2528 = vcmp.eq.f32.partialorder %v2527, 8.507059e+37
  %v2529 = vand.u32 %v2468, 2147483648
  %v2530 = vor.u32 1.1754944e-38, %v2529
  %v2531 = vsel %vm2528, %v2530, %v2526
  %v2532 = vmul.f32 1.0, %v2531
  %v2533 = vrcp.pop %v2469
  %v2534 = vmul.f32 %v2469, %v2533
  %v2535 = vsub.f32 1.0, %v2534
  %v2536 = vmul.f32 %v2533, %v2535
  %v2537 = vadd.f32 %v2533, %v2536
  %vm2538 = vweird.f32 %v2469
  %vm2539 = vweird.f32 %v2533
  %vm2540 = vmor %vm2538, %vm2539
  %v2541 = vsel %vm2540, %v2533, %v2537
  %v2542 = vand.u32 2147483647, %v2469
  %vm2543 = vcmp.eq.f32.partialorder %v2542, 8.507059e+37
  %v2544 = vand.u32 %v2469, 2147483648
  %v2545 = vor.u32 1.1754944e-38, %v2544
  %v2546 = vsel %vm2543, %v2545, %v2541
  %v2547 = vmul.f32 1.0, %v2546
  %v2548 = vrcp.pop %v2470
  %v2549 = vmul.f32 %v2470, %v2548
  %v2550 = vsub.f32 1.0, %v2549
  %v2551 = vmul.f32 %v2548, %v2550
  %v2552 = vadd.f32 %v2548, %v2551
  %vm2553 = vweird.f32 %v2470
  %vm2554 = vweird.f32 %v2548
  %vm2555 = vmor %vm2553, %vm2554
  %v2556 = vsel %vm2555, %v2548, %v2552
  %v2557 = vand.u32 2147483647, %v2470
  %vm2558 = vcmp.eq.f32.partialorder %v2557, 8.507059e+37
  %v2559 = vand.u32 %v2470, 2147483648
  %v2560 = vor.u32 1.1754944e-38, %v2559
  %v2561 = vsel %vm2558, %v2560, %v2556
  %v2562 = vmul.f32 1.0, %v2561
  %v2563 = vrcp.pop %v2471
  %v2564 = vmul.f32 %v2471, %v2563
  %v2565 = vsub.f32 1.0, %v2564
  %v2566 = vmul.f32 %v2563, %v2565
  %v2567 = vadd.f32 %v2563, %v2566
  %vm2568 = vweird.f32 %v2471
  %vm2569 = vweird.f32 %v2563
  %vm2570 = vmor %vm2568, %vm2569
  %v2571 = vsel %vm2570, %v2563, %v2567
  %v2572 = vand.u32 2147483647, %v2471
  %vm2573 = vcmp.eq.f32.partialorder %v2572, 8.507059e+37
  %v2574 = vand.u32 %v2471, 2147483648
  %v2575 = vor.u32 1.1754944e-38, %v2574
  %v2576 = vsel %vm2573, %v2575, %v2571
  %v2577 = vmul.f32 1.0, %v2576
  %v2578 = vrcp.pop %v2472
  %v2579 = vmul.f32 %v2472, %v2578
  %v2580 = vsub.f32 1.0, %v2579
  %v2581 = vmul.f32 %v2578, %v2580
  %v2582 = vadd.f32 %v2578, %v2581
  %vm2583 = vweird.f32 %v2472
  %vm2584 = vweird.f32 %v2578
  %vm2585 = vmor %vm2583, %vm2584
  %v2586 = vsel %vm2585, %v2578, %v2582
  %v2587 = vand.u32 2147483647, %v2472
  %vm2588 = vcmp.eq.f32.partialorder %v2587, 8.507059e+37
  %v2589 = vand.u32 %v2472, 2147483648
  %v2590 = vor.u32 1.1754944e-38, %v2589
  %v2591 = vsel %vm2588, %v2590, %v2586
  %v2592 = vmul.f32 1.0, %v2591
  %2593 = vrot.lane.b32.xlu0 %v2418, 64
  %v2594 = vpop.permute.xlu0 %2593
  %2595 = vrot.lane.b32.xlu0 %v2419, 64
  %v2596 = vpop.permute.xlu0 %2595
  %2597 = vrot.lane.b32.xlu0 %v2415, 64
  %v2598 = vpop.permute.xlu0 %2597
  %2599 = vrot.lane.b32.xlu0 %v2420, 64
  %v2600 = vpop.permute.xlu0 %2599
  %2601 = vrot.lane.b32.xlu0 %v2421, 64
  %v2602 = vpop.permute.xlu0 %2601
  %2603 = vrot.lane.b32.xlu0 %v2422, 64
  %v2604 = vpop.permute.xlu0 %2603
  %2605 = vrot.lane.b32.xlu0 %v2423, 64
  %v2606 = vpop.permute.xlu0 %2605
  %2607 = vrot.lane.b32.xlu0 %v2424, 64
  %v2608 = vpop.permute.xlu0 %2607
  %v2617 = vmul.f32 %v2487, %v2594
  %v2618 = vmul.f32 %v2502, %v2596
  %v2619 = vmul.f32 %v2517, %v2598
  %v2620 = vmul.f32 %v2532, %v2600
  %v2621 = vmul.f32 %v2547, %v2602
  %v2622 = vmul.f32 %v2562, %v2604
  %v2623 = vmul.f32 %v2577, %v2606
  %v2624 = vmul.f32 %v2592, %v2608
  %2633 = vrot.lane.b32.xlu0 %v2617, 64
  %v2634 = vpop.permute.xlu0 %2633
  %2635 = vrot.lane.b32.xlu0 %v2618, 64
  %v2636 = vpop.permute.xlu0 %2635
  %2637 = vrot.lane.b32.xlu0 %v2619, 64
  %v2638 = vpop.permute.xlu0 %2637
  %2639 = vrot.lane.b32.xlu0 %v2620, 64
  %v2640 = vpop.permute.xlu0 %2639
  %2641 = vrot.lane.b32.xlu0 %v2621, 64
  %v2642 = vpop.permute.xlu0 %2641
  %2643 = vrot.lane.b32.xlu0 %v2622, 64
  %v2644 = vpop.permute.xlu0 %2643
  %2645 = vrot.lane.b32.xlu0 %v2623, 64
  %v2646 = vpop.permute.xlu0 %2645
  %2647 = vrot.lane.b32.xlu0 %v2624, 64
  %v2648 = vpop.permute.xlu0 %2647
  %v2657 = vadd.f32 %v1612, %v2634
  %v2658 = vadd.f32 %v1614, %v2636
  %v2659 = vadd.f32 %v1617, %v2638
  %v2660 = vadd.f32 %v1619, %v2640
  %v2661 = vadd.f32 %v1622, %v2642
  %v2662 = vadd.f32 %v1624, %v2644
  %v2663 = vadd.f32 %v1627, %v2646
  %v2664 = vadd.f32 %v1629, %v2648
  %v2665 = vtanh.pop %v2657
  %v2666 = vtanh.pop %v2658
  %v2667 = vtanh.pop %v2659
  %v2668 = vtanh.pop %v2660
  %v2669 = vtanh.pop %v2661
  %v2670 = vtanh.pop %v2662
  %v2671 = vtanh.pop %v2663
  %v2672 = vtanh.pop %v2664
  %v2673 = vsub.f32 1.0, %v2487
  %v2674 = vsub.f32 1.0, %v2502
  %v2675 = vsub.f32 1.0, %v2517
  %v2676 = vsub.f32 1.0, %v2532
  %v2677 = vsub.f32 1.0, %v2547
  %v2678 = vsub.f32 1.0, %v2562
  %v2679 = vsub.f32 1.0, %v2577
  %v2680 = vsub.f32 1.0, %v2592
  %2689 = vrot.lane.b32.xlu0 %v2665, 96
  %v2690 = vpop.permute.xlu0 %2689
  %2691 = vrot.lane.b32.xlu0 %v2666, 96
  %v2692 = vpop.permute.xlu0 %2691
  %2693 = vrot.lane.b32.xlu0 %v2667, 96
  %v2694 = vpop.permute.xlu0 %2693
  %2695 = vrot.lane.b32.xlu0 %v2668, 96
  %v2696 = vpop.permute.xlu0 %2695
  %2697 = vrot.lane.b32.xlu0 %v2669, 96
  %v2698 = vpop.permute.xlu0 %2697
  %2699 = vrot.lane.b32.xlu0 %v2670, 96
  %v2700 = vpop.permute.xlu0 %2699
  %2701 = vrot.lane.b32.xlu0 %v2671, 96
  %v2702 = vpop.permute.xlu0 %2701
  %2703 = vrot.lane.b32.xlu0 %v2672, 96
  %v2704 = vpop.permute.xlu0 %2703
  %v2713 = vmul.f32 %v2673, %v2690
  %v2714 = vmul.f32 %v2674, %v2692
  %v2715 = vmul.f32 %v2675, %v2694
  %v2716 = vmul.f32 %v2676, %v2696
  %v2717 = vmul.f32 %v2677, %v2698
  %v2718 = vmul.f32 %v2678, %v2700
  %v2719 = vmul.f32 %v2679, %v2702
  %v2720 = vmul.f32 %v2680, %v2704
  %v2721 = vrot.slane %v2363, 7
  %v2722 = vrot.slane %v2364, 7
  %v2723 = vrot.slane %v2366, 7
  %v2724 = vrot.slane %v2367, 7
  %v2725 = vrot.slane %v2368, 7
  %v2726 = vrot.slane %v2369, 7
  %v2727 = vrot.slane %v2370, 7
  %v2736 = vmul.f32 %v2487, %v2721
  %v2737 = vmul.f32 %v2502, %v2722
  %v2738 = vmul.f32 %v2517, %v2381
  %v2739 = vmul.f32 %v2532, %v2723
  %v2740 = vmul.f32 %v2547, %v2724
  %v2741 = vmul.f32 %v2562, %v2725
  %v2742 = vmul.f32 %v2577, %v2726
  %v2743 = vmul.f32 %v2592, %v2727
  %v2744 = vadd.f32 %v2713, %v2736
  %v2745 = vadd.f32 %v2714, %v2737
  %v2746 = vadd.f32 %v2715, %v2738
  %v2747 = vadd.f32 %v2716, %v2739
  %v2748 = vadd.f32 %v2717, %v2740
  %v2749 = vadd.f32 %v2718, %v2741
  %v2750 = vadd.f32 %v2719, %v2742
  %v2751 = vadd.f32 %v2720, %v2743
  %v2760 = vrot.slane %v2744, 2
  %v2761 = vrot.slane %v2745, 1
  %v2762 = vsel %vm1992, %v2761, %v2760
  %v2763 = vsel %vm1995, %v2746, %v2762
  %v2764 = vrot.slane %v2747, 7
  %v2765 = vsel %vm1998, %v2764, %v2763
  %v2766 = vrot.slane %v2748, 6
  %v2767 = vsel %vm2001, %v2766, %v2765
  %v2768 = vrot.slane %v2749, 5
  %v2769 = vsel %vm2004, %v2768, %v2767
  %v2770 = vrot.slane %v2750, 4
  %v2771 = vsel %vm2007, %v2770, %v2769
  %v2772 = vrot.slane %v2751, 3
  %v2773 = vsel %vm2010, %v2772, %v2771
  %2774 = vrot.lane.b32.xlu0 %v2773, 96
  %v2775 = vpop.permute.xlu0 %2774
  %v2776 = vsel %vm1639, %v2775, 0
  %2778 = vmatpush.msra.mxu0 0.0
  %2779 = vmatpush.msra.mxu0 0.0
  %2780 = vmatpush.msra.mxu0 0.0
  %2781 = vmatpush.msra.mxu0 0.0
  %2782 = vmatpush.msra.mxu0 0.0
  %2783 = vmatpush.msra.mxu0 0.0
  %2784 = vmatpush.msra.mxu0 0.0
  %2785 = vmatpush.msra.mxu0 0.0
  %2786 = vmatpush.msra.mxu0 0.0
  %2787 = vmatpush.msra.mxu0 0.0
  %2788 = vmatpush.msra.mxu0 0.0
  %2789 = vmatpush.msra.mxu0 0.0
  %2790 = vmatpush.msra.mxu0 %v1634
  %2791 = vmatpush.msra.mxu0 %v1633
  %2792 = vmatpush.msra.mxu0 %v1632
  %2793 = vmatpush.msra.mxu0 %v1631
  %2794 = vmatmul.f32.gmra.mxu0 %v2776
  %v2795 = vpop.f32.mrf.mxu0
  %v2796 = vadd.f32 %v1637, %v2795
  %2797 = vdwg.mxu0
  %v2799 = vrot.slane %v2796, 5
  %v2800 = vrot.slane %v2796, 6
  %v2801 = vrot.slane %v2796, 7
  %v2802 = vrot.slane %v2796, 1
  %v2803 = vrot.slane %v2796, 2
  %v2804 = vrot.slane %v2796, 3
  %v2805 = vrot.slane %v2796, 4
  %v2814 = vadd.f32 %v1612, %v2799
  %v2815 = vadd.f32 %v1614, %v2800
  %v2816 = vadd.f32 %v1617, %v2801
  %v2817 = vadd.f32 %v1619, %v2796
  %v2818 = vadd.f32 %v1622, %v2802
  %v2819 = vadd.f32 %v1624, %v2803
  %v2820 = vadd.f32 %v1627, %v2804
  %v2821 = vadd.f32 %v1629, %v2805
  %v2822 = vxor.u32 %v2814, 2147483648
  %v2823 = vxor.u32 %v2815, 2147483648
  %v2824 = vxor.u32 %v2816, 2147483648
  %v2825 = vxor.u32 %v2817, 2147483648
  %v2826 = vxor.u32 %v2818, 2147483648
  %v2827 = vxor.u32 %v2819, 2147483648
  %v2828 = vxor.u32 %v2820, 2147483648
  %v2829 = vxor.u32 %v2821, 2147483648
  %v2830 = vmul.f32 %v2822, 1.442695
  %v2831 = vpow.pop %v2830
  %v2832 = vmul.f32 %v2823, 1.442695
  %v2833 = vpow.pop %v2832
  %v2834 = vmul.f32 %v2824, 1.442695
  %v2835 = vpow.pop %v2834
  %v2836 = vmul.f32 %v2825, 1.442695
  %v2837 = vpow.pop %v2836
  %v2838 = vmul.f32 %v2826, 1.442695
  %v2839 = vpow.pop %v2838
  %v2840 = vmul.f32 %v2827, 1.442695
  %v2841 = vpow.pop %v2840
  %v2842 = vmul.f32 %v2828, 1.442695
  %v2843 = vpow.pop %v2842
  %v2844 = vmul.f32 %v2829, 1.442695
  %v2845 = vpow.pop %v2844
  %v2846 = vadd.f32 %v2831, 1.0
  %v2847 = vadd.f32 %v2833, 1.0
  %v2848 = vadd.f32 %v2835, 1.0
  %v2849 = vadd.f32 %v2837, 1.0
  %v2850 = vadd.f32 %v2839, 1.0
  %v2851 = vadd.f32 %v2841, 1.0
  %v2852 = vadd.f32 %v2843, 1.0
  %v2853 = vadd.f32 %v2845, 1.0
  %v2854 = vrcp.pop %v2846
  %v2855 = vmul.f32 %v2846, %v2854
  %v2856 = vsub.f32 1.0, %v2855
  %v2857 = vmul.f32 %v2854, %v2856
  %v2858 = vadd.f32 %v2854, %v2857
  %vm2859 = vweird.f32 %v2846
  %vm2860 = vweird.f32 %v2854
  %vm2861 = vmor %vm2859, %vm2860
  %v2862 = vsel %vm2861, %v2854, %v2858
  %v2863 = vand.u32 2147483647, %v2846
  %vm2864 = vcmp.eq.f32.partialorder %v2863, 8.507059e+37
  %v2865 = vand.u32 %v2846, 2147483648
  %v2866 = vor.u32 1.1754944e-38, %v2865
  %v2867 = vsel %vm2864, %v2866, %v2862
  %v2868 = vmul.f32 1.0, %v2867
  %v2869 = vrcp.pop %v2847
  %v2870 = vmul.f32 %v2847, %v2869
  %v2871 = vsub.f32 1.0, %v2870
  %v2872 = vmul.f32 %v2869, %v2871
  %v2873 = vadd.f32 %v2869, %v2872
  %vm2874 = vweird.f32 %v2847
  %vm2875 = vweird.f32 %v2869
  %vm2876 = vmor %vm2874, %vm2875
  %v2877 = vsel %vm2876, %v2869, %v2873
  %v2878 = vand.u32 2147483647, %v2847
  %vm2879 = vcmp.eq.f32.partialorder %v2878, 8.507059e+37
  %v2880 = vand.u32 %v2847, 2147483648
  %v2881 = vor.u32 1.1754944e-38, %v2880
  %v2882 = vsel %vm2879, %v2881, %v2877
  %v2883 = vmul.f32 1.0, %v2882
  %v2884 = vrcp.pop %v2848
  %v2885 = vmul.f32 %v2848, %v2884
  %v2886 = vsub.f32 1.0, %v2885
  %v2887 = vmul.f32 %v2884, %v2886
  %v2888 = vadd.f32 %v2884, %v2887
  %vm2889 = vweird.f32 %v2848
  %vm2890 = vweird.f32 %v2884
  %vm2891 = vmor %vm2889, %vm2890
  %v2892 = vsel %vm2891, %v2884, %v2888
  %v2893 = vand.u32 2147483647, %v2848
  %vm2894 = vcmp.eq.f32.partialorder %v2893, 8.507059e+37
  %v2895 = vand.u32 %v2848, 2147483648
  %v2896 = vor.u32 1.1754944e-38, %v2895
  %v2897 = vsel %vm2894, %v2896, %v2892
  %v2898 = vmul.f32 1.0, %v2897
  %v2899 = vrcp.pop %v2849
  %v2900 = vmul.f32 %v2849, %v2899
  %v2901 = vsub.f32 1.0, %v2900
  %v2902 = vmul.f32 %v2899, %v2901
  %v2903 = vadd.f32 %v2899, %v2902
  %vm2904 = vweird.f32 %v2849
  %vm2905 = vweird.f32 %v2899
  %vm2906 = vmor %vm2904, %vm2905
  %v2907 = vsel %vm2906, %v2899, %v2903
  %v2908 = vand.u32 2147483647, %v2849
  %vm2909 = vcmp.eq.f32.partialorder %v2908, 8.507059e+37
  %v2910 = vand.u32 %v2849, 2147483648
  %v2911 = vor.u32 1.1754944e-38, %v2910
  %v2912 = vsel %vm2909, %v2911, %v2907
  %v2913 = vmul.f32 1.0, %v2912
  %v2914 = vrcp.pop %v2850
  %v2915 = vmul.f32 %v2850, %v2914
  %v2916 = vsub.f32 1.0, %v2915
  %v2917 = vmul.f32 %v2914, %v2916
  %v2918 = vadd.f32 %v2914, %v2917
  %vm2919 = vweird.f32 %v2850
  %vm2920 = vweird.f32 %v2914
  %vm2921 = vmor %vm2919, %vm2920
  %v2922 = vsel %vm2921, %v2914, %v2918
  %v2923 = vand.u32 2147483647, %v2850
  %vm2924 = vcmp.eq.f32.partialorder %v2923, 8.507059e+37
  %v2925 = vand.u32 %v2850, 2147483648
  %v2926 = vor.u32 1.1754944e-38, %v2925
  %v2927 = vsel %vm2924, %v2926, %v2922
  %v2928 = vmul.f32 1.0, %v2927
  %v2929 = vrcp.pop %v2851
  %v2930 = vmul.f32 %v2851, %v2929
  %v2931 = vsub.f32 1.0, %v2930
  %v2932 = vmul.f32 %v2929, %v2931
  %v2933 = vadd.f32 %v2929, %v2932
  %vm2934 = vweird.f32 %v2851
  %vm2935 = vweird.f32 %v2929
  %vm2936 = vmor %vm2934, %vm2935
  %v2937 = vsel %vm2936, %v2929, %v2933
  %v2938 = vand.u32 2147483647, %v2851
  %vm2939 = vcmp.eq.f32.partialorder %v2938, 8.507059e+37
  %v2940 = vand.u32 %v2851, 2147483648
  %v2941 = vor.u32 1.1754944e-38, %v2940
  %v2942 = vsel %vm2939, %v2941, %v2937
  %v2943 = vmul.f32 1.0, %v2942
  %v2944 = vrcp.pop %v2852
  %v2945 = vmul.f32 %v2852, %v2944
  %v2946 = vsub.f32 1.0, %v2945
  %v2947 = vmul.f32 %v2944, %v2946
  %v2948 = vadd.f32 %v2944, %v2947
  %vm2949 = vweird.f32 %v2852
  %vm2950 = vweird.f32 %v2944
  %vm2951 = vmor %vm2949, %vm2950
  %v2952 = vsel %vm2951, %v2944, %v2948
  %v2953 = vand.u32 2147483647, %v2852
  %vm2954 = vcmp.eq.f32.partialorder %v2953, 8.507059e+37
  %v2955 = vand.u32 %v2852, 2147483648
  %v2956 = vor.u32 1.1754944e-38, %v2955
  %v2957 = vsel %vm2954, %v2956, %v2952
  %v2958 = vmul.f32 1.0, %v2957
  %v2959 = vrcp.pop %v2853
  %v2960 = vmul.f32 %v2853, %v2959
  %v2961 = vsub.f32 1.0, %v2960
  %v2962 = vmul.f32 %v2959, %v2961
  %v2963 = vadd.f32 %v2959, %v2962
  %vm2964 = vweird.f32 %v2853
  %vm2965 = vweird.f32 %v2959
  %vm2966 = vmor %vm2964, %vm2965
  %v2967 = vsel %vm2966, %v2959, %v2963
  %v2968 = vand.u32 2147483647, %v2853
  %vm2969 = vcmp.eq.f32.partialorder %v2968, 8.507059e+37
  %v2970 = vand.u32 %v2853, 2147483648
  %v2971 = vor.u32 1.1754944e-38, %v2970
  %v2972 = vsel %vm2969, %v2971, %v2967
  %v2973 = vmul.f32 1.0, %v2972
  %2974 = vrot.lane.b32.xlu0 %v2799, 64
  %v2975 = vpop.permute.xlu0 %2974
  %2976 = vrot.lane.b32.xlu0 %v2800, 64
  %v2977 = vpop.permute.xlu0 %2976
  %2978 = vrot.lane.b32.xlu0 %v2801, 64
  %v2979 = vpop.permute.xlu0 %2978
  %2980 = vrot.lane.b32.xlu0 %v2796, 64
  %v2981 = vpop.permute.xlu0 %2980
  %2982 = vrot.lane.b32.xlu0 %v2802, 64
  %v2983 = vpop.permute.xlu0 %2982
  %2984 = vrot.lane.b32.xlu0 %v2803, 64
  %v2985 = vpop.permute.xlu0 %2984
  %2986 = vrot.lane.b32.xlu0 %v2804, 64
  %v2987 = vpop.permute.xlu0 %2986
  %2988 = vrot.lane.b32.xlu0 %v2805, 64
  %v2989 = vpop.permute.xlu0 %2988
  %v2998 = vmul.f32 %v2868, %v2975
  %v2999 = vmul.f32 %v2883, %v2977
  %v3000 = vmul.f32 %v2898, %v2979
  %v3001 = vmul.f32 %v2913, %v2981
  %v3002 = vmul.f32 %v2928, %v2983
  %v3003 = vmul.f32 %v2943, %v2985
  %v3004 = vmul.f32 %v2958, %v2987
  %v3005 = vmul.f32 %v2973, %v2989
  %3014 = vrot.lane.b32.xlu0 %v2998, 64
  %v3015 = vpop.permute.xlu0 %3014
  %3016 = vrot.lane.b32.xlu0 %v2999, 64
  %v3017 = vpop.permute.xlu0 %3016
  %3018 = vrot.lane.b32.xlu0 %v3000, 64
  %v3019 = vpop.permute.xlu0 %3018
  %3020 = vrot.lane.b32.xlu0 %v3001, 64
  %v3021 = vpop.permute.xlu0 %3020
  %3022 = vrot.lane.b32.xlu0 %v3002, 64
  %v3023 = vpop.permute.xlu0 %3022
  %3024 = vrot.lane.b32.xlu0 %v3003, 64
  %v3025 = vpop.permute.xlu0 %3024
  %3026 = vrot.lane.b32.xlu0 %v3004, 64
  %v3027 = vpop.permute.xlu0 %3026
  %3028 = vrot.lane.b32.xlu0 %v3005, 64
  %v3029 = vpop.permute.xlu0 %3028
  %v3038 = vadd.f32 %v1612, %v3015
  %v3039 = vadd.f32 %v1614, %v3017
  %v3040 = vadd.f32 %v1617, %v3019
  %v3041 = vadd.f32 %v1619, %v3021
  %v3042 = vadd.f32 %v1622, %v3023
  %v3043 = vadd.f32 %v1624, %v3025
  %v3044 = vadd.f32 %v1627, %v3027
  %v3045 = vadd.f32 %v1629, %v3029
  %v3046 = vtanh.pop %v3038
  %v3047 = vtanh.pop %v3039
  %v3048 = vtanh.pop %v3040
  %v3049 = vtanh.pop %v3041
  %v3050 = vtanh.pop %v3042
  %v3051 = vtanh.pop %v3043
  %v3052 = vtanh.pop %v3044
  %v3053 = vtanh.pop %v3045
  %v3054 = vsub.f32 1.0, %v2868
  %v3055 = vsub.f32 1.0, %v2883
  %v3056 = vsub.f32 1.0, %v2898
  %v3057 = vsub.f32 1.0, %v2913
  %v3058 = vsub.f32 1.0, %v2928
  %v3059 = vsub.f32 1.0, %v2943
  %v3060 = vsub.f32 1.0, %v2958
  %v3061 = vsub.f32 1.0, %v2973
  %3070 = vrot.lane.b32.xlu0 %v3046, 96
  %v3071 = vpop.permute.xlu0 %3070
  %3072 = vrot.lane.b32.xlu0 %v3047, 96
  %v3073 = vpop.permute.xlu0 %3072
  %3074 = vrot.lane.b32.xlu0 %v3048, 96
  %v3075 = vpop.permute.xlu0 %3074
  %3076 = vrot.lane.b32.xlu0 %v3049, 96
  %v3077 = vpop.permute.xlu0 %3076
  %3078 = vrot.lane.b32.xlu0 %v3050, 96
  %v3079 = vpop.permute.xlu0 %3078
  %3080 = vrot.lane.b32.xlu0 %v3051, 96
  %v3081 = vpop.permute.xlu0 %3080
  %3082 = vrot.lane.b32.xlu0 %v3052, 96
  %v3083 = vpop.permute.xlu0 %3082
  %3084 = vrot.lane.b32.xlu0 %v3053, 96
  %v3085 = vpop.permute.xlu0 %3084
  %v3094 = vmul.f32 %v3054, %v3071
  %v3095 = vmul.f32 %v3055, %v3073
  %v3096 = vmul.f32 %v3056, %v3075
  %v3097 = vmul.f32 %v3057, %v3077
  %v3098 = vmul.f32 %v3058, %v3079
  %v3099 = vmul.f32 %v3059, %v3081
  %v3100 = vmul.f32 %v3060, %v3083
  %v3101 = vmul.f32 %v3061, %v3085
  %v3102 = vrot.slane %v2744, 7
  %v3103 = vrot.slane %v2745, 7
  %v3104 = vrot.slane %v2746, 7
  %v3105 = vrot.slane %v2748, 7
  %v3106 = vrot.slane %v2749, 7
  %v3107 = vrot.slane %v2750, 7
  %v3108 = vrot.slane %v2751, 7
  %v3117 = vmul.f32 %v2868, %v3102
  %v3118 = vmul.f32 %v2883, %v3103
  %v3119 = vmul.f32 %v2898, %v3104
  %v3120 = vmul.f32 %v2913, %v2764
  %v3121 = vmul.f32 %v2928, %v3105
  %v3122 = vmul.f32 %v2943, %v3106
  %v3123 = vmul.f32 %v2958, %v3107
  %v3124 = vmul.f32 %v2973, %v3108
  %v3125 = vadd.f32 %v3094, %v3117
  %v3126 = vadd.f32 %v3095, %v3118
  %v3127 = vadd.f32 %v3096, %v3119
  %v3128 = vadd.f32 %v3097, %v3120
  %v3129 = vadd.f32 %v3098, %v3121
  %v3130 = vadd.f32 %v3099, %v3122
  %v3131 = vadd.f32 %v3100, %v3123
  %v3132 = vadd.f32 %v3101, %v3124
  %v3141 = vrot.slane %v3125, 3
  %v3142 = vrot.slane %v3126, 2
  %v3143 = vsel %vm1992, %v3142, %v3141
  %v3144 = vrot.slane %v3127, 1
  %v3145 = vsel %vm1995, %v3144, %v3143
  %v3146 = vsel %vm1998, %v3128, %v3145
  %v3147 = vrot.slane %v3129, 7
  %v3148 = vsel %vm2001, %v3147, %v3146
  %v3149 = vrot.slane %v3130, 6
  %v3150 = vsel %vm2004, %v3149, %v3148
  %v3151 = vrot.slane %v3131, 5
  %v3152 = vsel %vm2007, %v3151, %v3150
  %v3153 = vrot.slane %v3132, 4
  %v3154 = vsel %vm2010, %v3153, %v3152
  %3155 = vrot.lane.b32.xlu0 %v3154, 96
  %v3156 = vpop.permute.xlu0 %3155
  %v3157 = vsel %vm1639, %v3156, 0
  %3159 = vmatpush.msra.mxu0 0.0
  %3160 = vmatpush.msra.mxu0 0.0
  %3161 = vmatpush.msra.mxu0 0.0
  %3162 = vmatpush.msra.mxu0 0.0
  %3163 = vmatpush.msra.mxu0 0.0
  %3164 = vmatpush.msra.mxu0 0.0
  %3165 = vmatpush.msra.mxu0 0.0
  %3166 = vmatpush.msra.mxu0 0.0
  %3167 = vmatpush.msra.mxu0 0.0
  %3168 = vmatpush.msra.mxu0 0.0
  %3169 = vmatpush.msra.mxu0 0.0
  %3170 = vmatpush.msra.mxu0 0.0
  %3171 = vmatpush.msra.mxu0 %v1634
  %3172 = vmatpush.msra.mxu0 %v1633
  %3173 = vmatpush.msra.mxu0 %v1632
  %3174 = vmatpush.msra.mxu0 %v1631
  %3175 = vmatmul.f32.gmra.mxu0 %v3157
  %v3176 = vpop.f32.mrf.mxu0
  %v3177 = vadd.f32 %v1637, %v3176
  %3178 = vdwg.mxu0
  %v3180 = vrot.slane %v3177, 4
  %v3181 = vrot.slane %v3177, 5
  %v3182 = vrot.slane %v3177, 6
  %v3183 = vrot.slane %v3177, 7
  %v3184 = vrot.slane %v3177, 1
  %v3185 = vrot.slane %v3177, 2
  %v3186 = vrot.slane %v3177, 3
  %v3195 = vadd.f32 %v1612, %v3180
  %v3196 = vadd.f32 %v1614, %v3181
  %v3197 = vadd.f32 %v1617, %v3182
  %v3198 = vadd.f32 %v1619, %v3183
  %v3199 = vadd.f32 %v1622, %v3177
  %v3200 = vadd.f32 %v1624, %v3184
  %v3201 = vadd.f32 %v1627, %v3185
  %v3202 = vadd.f32 %v1629, %v3186
  %v3203 = vxor.u32 %v3195, 2147483648
  %v3204 = vxor.u32 %v3196, 2147483648
  %v3205 = vxor.u32 %v3197, 2147483648
  %v3206 = vxor.u32 %v3198, 2147483648
  %v3207 = vxor.u32 %v3199, 2147483648
  %v3208 = vxor.u32 %v3200, 2147483648
  %v3209 = vxor.u32 %v3201, 2147483648
  %v3210 = vxor.u32 %v3202, 2147483648
  %v3211 = vmul.f32 %v3203, 1.442695
  %v3212 = vpow.pop %v3211
  %v3213 = vmul.f32 %v3204, 1.442695
  %v3214 = vpow.pop %v3213
  %v3215 = vmul.f32 %v3205, 1.442695
  %v3216 = vpow.pop %v3215
  %v3217 = vmul.f32 %v3206, 1.442695
  %v3218 = vpow.pop %v3217
  %v3219 = vmul.f32 %v3207, 1.442695
  %v3220 = vpow.pop %v3219
  %v3221 = vmul.f32 %v3208, 1.442695
  %v3222 = vpow.pop %v3221
  %v3223 = vmul.f32 %v3209, 1.442695
  %v3224 = vpow.pop %v3223
  %v3225 = vmul.f32 %v3210, 1.442695
  %v3226 = vpow.pop %v3225
  %v3227 = vadd.f32 %v3212, 1.0
  %v3228 = vadd.f32 %v3214, 1.0
  %v3229 = vadd.f32 %v3216, 1.0
  %v3230 = vadd.f32 %v3218, 1.0
  %v3231 = vadd.f32 %v3220, 1.0
  %v3232 = vadd.f32 %v3222, 1.0
  %v3233 = vadd.f32 %v3224, 1.0
  %v3234 = vadd.f32 %v3226, 1.0
  %v3235 = vrcp.pop %v3227
  %v3236 = vmul.f32 %v3227, %v3235
  %v3237 = vsub.f32 1.0, %v3236
  %v3238 = vmul.f32 %v3235, %v3237
  %v3239 = vadd.f32 %v3235, %v3238
  %vm3240 = vweird.f32 %v3227
  %vm3241 = vweird.f32 %v3235
  %vm3242 = vmor %vm3240, %vm3241
  %v3243 = vsel %vm3242, %v3235, %v3239
  %v3244 = vand.u32 2147483647, %v3227
  %vm3245 = vcmp.eq.f32.partialorder %v3244, 8.507059e+37
  %v3246 = vand.u32 %v3227, 2147483648
  %v3247 = vor.u32 1.1754944e-38, %v3246
  %v3248 = vsel %vm3245, %v3247, %v3243
  %v3249 = vmul.f32 1.0, %v3248
  %v3250 = vrcp.pop %v3228
  %v3251 = vmul.f32 %v3228, %v3250
  %v3252 = vsub.f32 1.0, %v3251
  %v3253 = vmul.f32 %v3250, %v3252
  %v3254 = vadd.f32 %v3250, %v3253
  %vm3255 = vweird.f32 %v3228
  %vm3256 = vweird.f32 %v3250
  %vm3257 = vmor %vm3255, %vm3256
  %v3258 = vsel %vm3257, %v3250, %v3254
  %v3259 = vand.u32 2147483647, %v3228
  %vm3260 = vcmp.eq.f32.partialorder %v3259, 8.507059e+37
  %v3261 = vand.u32 %v3228, 2147483648
  %v3262 = vor.u32 1.1754944e-38, %v3261
  %v3263 = vsel %vm3260, %v3262, %v3258
  %v3264 = vmul.f32 1.0, %v3263
  %v3265 = vrcp.pop %v3229
  %v3266 = vmul.f32 %v3229, %v3265
  %v3267 = vsub.f32 1.0, %v3266
  %v3268 = vmul.f32 %v3265, %v3267
  %v3269 = vadd.f32 %v3265, %v3268
  %vm3270 = vweird.f32 %v3229
  %vm3271 = vweird.f32 %v3265
  %vm3272 = vmor %vm3270, %vm3271
  %v3273 = vsel %vm3272, %v3265, %v3269
  %v3274 = vand.u32 2147483647, %v3229
  %vm3275 = vcmp.eq.f32.partialorder %v3274, 8.507059e+37
  %v3276 = vand.u32 %v3229, 2147483648
  %v3277 = vor.u32 1.1754944e-38, %v3276
  %v3278 = vsel %vm3275, %v3277, %v3273
  %v3279 = vmul.f32 1.0, %v3278
  %v3280 = vrcp.pop %v3230
  %v3281 = vmul.f32 %v3230, %v3280
  %v3282 = vsub.f32 1.0, %v3281
  %v3283 = vmul.f32 %v3280, %v3282
  %v3284 = vadd.f32 %v3280, %v3283
  %vm3285 = vweird.f32 %v3230
  %vm3286 = vweird.f32 %v3280
  %vm3287 = vmor %vm3285, %vm3286
  %v3288 = vsel %vm3287, %v3280, %v3284
  %v3289 = vand.u32 2147483647, %v3230
  %vm3290 = vcmp.eq.f32.partialorder %v3289, 8.507059e+37
  %v3291 = vand.u32 %v3230, 2147483648
  %v3292 = vor.u32 1.1754944e-38, %v3291
  %v3293 = vsel %vm3290, %v3292, %v3288
  %v3294 = vmul.f32 1.0, %v3293
  %v3295 = vrcp.pop %v3231
  %v3296 = vmul.f32 %v3231, %v3295
  %v3297 = vsub.f32 1.0, %v3296
  %v3298 = vmul.f32 %v3295, %v3297
  %v3299 = vadd.f32 %v3295, %v3298
  %vm3300 = vweird.f32 %v3231
  %vm3301 = vweird.f32 %v3295
  %vm3302 = vmor %vm3300, %vm3301
  %v3303 = vsel %vm3302, %v3295, %v3299
  %v3304 = vand.u32 2147483647, %v3231
  %vm3305 = vcmp.eq.f32.partialorder %v3304, 8.507059e+37
  %v3306 = vand.u32 %v3231, 2147483648
  %v3307 = vor.u32 1.1754944e-38, %v3306
  %v3308 = vsel %vm3305, %v3307, %v3303
  %v3309 = vmul.f32 1.0, %v3308
  %v3310 = vrcp.pop %v3232
  %v3311 = vmul.f32 %v3232, %v3310
  %v3312 = vsub.f32 1.0, %v3311
  %v3313 = vmul.f32 %v3310, %v3312
  %v3314 = vadd.f32 %v3310, %v3313
  %vm3315 = vweird.f32 %v3232
  %vm3316 = vweird.f32 %v3310
  %vm3317 = vmor %vm3315, %vm3316
  %v3318 = vsel %vm3317, %v3310, %v3314
  %v3319 = vand.u32 2147483647, %v3232
  %vm3320 = vcmp.eq.f32.partialorder %v3319, 8.507059e+37
  %v3321 = vand.u32 %v3232, 2147483648
  %v3322 = vor.u32 1.1754944e-38, %v3321
  %v3323 = vsel %vm3320, %v3322, %v3318
  %v3324 = vmul.f32 1.0, %v3323
  %v3325 = vrcp.pop %v3233
  %v3326 = vmul.f32 %v3233, %v3325
  %v3327 = vsub.f32 1.0, %v3326
  %v3328 = vmul.f32 %v3325, %v3327
  %v3329 = vadd.f32 %v3325, %v3328
  %vm3330 = vweird.f32 %v3233
  %vm3331 = vweird.f32 %v3325
  %vm3332 = vmor %vm3330, %vm3331
  %v3333 = vsel %vm3332, %v3325, %v3329
  %v3334 = vand.u32 2147483647, %v3233
  %vm3335 = vcmp.eq.f32.partialorder %v3334, 8.507059e+37
  %v3336 = vand.u32 %v3233, 2147483648
  %v3337 = vor.u32 1.1754944e-38, %v3336
  %v3338 = vsel %vm3335, %v3337, %v3333
  %v3339 = vmul.f32 1.0, %v3338
  %v3340 = vrcp.pop %v3234
  %v3341 = vmul.f32 %v3234, %v3340
  %v3342 = vsub.f32 1.0, %v3341
  %v3343 = vmul.f32 %v3340, %v3342
  %v3344 = vadd.f32 %v3340, %v3343
  %vm3345 = vweird.f32 %v3234
  %vm3346 = vweird.f32 %v3340
  %vm3347 = vmor %vm3345, %vm3346
  %v3348 = vsel %vm3347, %v3340, %v3344
  %v3349 = vand.u32 2147483647, %v3234
  %vm3350 = vcmp.eq.f32.partialorder %v3349, 8.507059e+37
  %v3351 = vand.u32 %v3234, 2147483648
  %v3352 = vor.u32 1.1754944e-38, %v3351
  %v3353 = vsel %vm3350, %v3352, %v3348
  %v3354 = vmul.f32 1.0, %v3353
  %3355 = vrot.lane.b32.xlu0 %v3180, 64
  %v3356 = vpop.permute.xlu0 %3355
  %3357 = vrot.lane.b32.xlu0 %v3181, 64
  %v3358 = vpop.permute.xlu0 %3357
  %3359 = vrot.lane.b32.xlu0 %v3182, 64
  %v3360 = vpop.permute.xlu0 %3359
  %3361 = vrot.lane.b32.xlu0 %v3183, 64
  %v3362 = vpop.permute.xlu0 %3361
  %3363 = vrot.lane.b32.xlu0 %v3177, 64
  %v3364 = vpop.permute.xlu0 %3363
  %3365 = vrot.lane.b32.xlu0 %v3184, 64
  %v3366 = vpop.permute.xlu0 %3365
  %3367 = vrot.lane.b32.xlu0 %v3185, 64
  %v3368 = vpop.permute.xlu0 %3367
  %3369 = vrot.lane.b32.xlu0 %v3186, 64
  %v3370 = vpop.permute.xlu0 %3369
  %v3379 = vmul.f32 %v3249, %v3356
  %v3380 = vmul.f32 %v3264, %v3358
  %v3381 = vmul.f32 %v3279, %v3360
  %v3382 = vmul.f32 %v3294, %v3362
  %v3383 = vmul.f32 %v3309, %v3364
  %v3384 = vmul.f32 %v3324, %v3366
  %v3385 = vmul.f32 %v3339, %v3368
  %v3386 = vmul.f32 %v3354, %v3370
  %3395 = vrot.lane.b32.xlu0 %v3379, 64
  %v3396 = vpop.permute.xlu0 %3395
  %3397 = vrot.lane.b32.xlu0 %v3380, 64
  %v3398 = vpop.permute.xlu0 %3397
  %3399 = vrot.lane.b32.xlu0 %v3381, 64
  %v3400 = vpop.permute.xlu0 %3399
  %3401 = vrot.lane.b32.xlu0 %v3382, 64
  %v3402 = vpop.permute.xlu0 %3401
  %3403 = vrot.lane.b32.xlu0 %v3383, 64
  %v3404 = vpop.permute.xlu0 %3403
  %3405 = vrot.lane.b32.xlu0 %v3384, 64
  %v3406 = vpop.permute.xlu0 %3405
  %3407 = vrot.lane.b32.xlu0 %v3385, 64
  %v3408 = vpop.permute.xlu0 %3407
  %3409 = vrot.lane.b32.xlu0 %v3386, 64
  %v3410 = vpop.permute.xlu0 %3409
  %v3419 = vadd.f32 %v1612, %v3396
  %v3420 = vadd.f32 %v1614, %v3398
  %v3421 = vadd.f32 %v1617, %v3400
  %v3422 = vadd.f32 %v1619, %v3402
  %v3423 = vadd.f32 %v1622, %v3404
  %v3424 = vadd.f32 %v1624, %v3406
  %v3425 = vadd.f32 %v1627, %v3408
  %v3426 = vadd.f32 %v1629, %v3410
  %v3427 = vtanh.pop %v3419
  %v3428 = vtanh.pop %v3420
  %v3429 = vtanh.pop %v3421
  %v3430 = vtanh.pop %v3422
  %v3431 = vtanh.pop %v3423
  %v3432 = vtanh.pop %v3424
  %v3433 = vtanh.pop %v3425
  %v3434 = vtanh.pop %v3426
  %v3435 = vsub.f32 1.0, %v3249
  %v3436 = vsub.f32 1.0, %v3264
  %v3437 = vsub.f32 1.0, %v3279
  %v3438 = vsub.f32 1.0, %v3294
  %v3439 = vsub.f32 1.0, %v3309
  %v3440 = vsub.f32 1.0, %v3324
  %v3441 = vsub.f32 1.0, %v3339
  %v3442 = vsub.f32 1.0, %v3354
  %3451 = vrot.lane.b32.xlu0 %v3427, 96
  %v3452 = vpop.permute.xlu0 %3451
  %3453 = vrot.lane.b32.xlu0 %v3428, 96
  %v3454 = vpop.permute.xlu0 %3453
  %3455 = vrot.lane.b32.xlu0 %v3429, 96
  %v3456 = vpop.permute.xlu0 %3455
  %3457 = vrot.lane.b32.xlu0 %v3430, 96
  %v3458 = vpop.permute.xlu0 %3457
  %3459 = vrot.lane.b32.xlu0 %v3431, 96
  %v3460 = vpop.permute.xlu0 %3459
  %3461 = vrot.lane.b32.xlu0 %v3432, 96
  %v3462 = vpop.permute.xlu0 %3461
  %3463 = vrot.lane.b32.xlu0 %v3433, 96
  %v3464 = vpop.permute.xlu0 %3463
  %3465 = vrot.lane.b32.xlu0 %v3434, 96
  %v3466 = vpop.permute.xlu0 %3465
  %v3475 = vmul.f32 %v3435, %v3452
  %v3476 = vmul.f32 %v3436, %v3454
  %v3477 = vmul.f32 %v3437, %v3456
  %v3478 = vmul.f32 %v3438, %v3458
  %v3479 = vmul.f32 %v3439, %v3460
  %v3480 = vmul.f32 %v3440, %v3462
  %v3481 = vmul.f32 %v3441, %v3464
  %v3482 = vmul.f32 %v3442, %v3466
  %v3483 = vrot.slane %v3125, 7
  %v3484 = vrot.slane %v3126, 7
  %v3485 = vrot.slane %v3127, 7
  %v3486 = vrot.slane %v3128, 7
  %v3487 = vrot.slane %v3130, 7
  %v3488 = vrot.slane %v3131, 7
  %v3489 = vrot.slane %v3132, 7
  %v3498 = vmul.f32 %v3249, %v3483
  %v3499 = vmul.f32 %v3264, %v3484
  %v3500 = vmul.f32 %v3279, %v3485
  %v3501 = vmul.f32 %v3294, %v3486
  %v3502 = vmul.f32 %v3309, %v3147
  %v3503 = vmul.f32 %v3324, %v3487
  %v3504 = vmul.f32 %v3339, %v3488
  %v3505 = vmul.f32 %v3354, %v3489
  %v3506 = vadd.f32 %v3475, %v3498
  %v3507 = vadd.f32 %v3476, %v3499
  %v3508 = vadd.f32 %v3477, %v3500
  %v3509 = vadd.f32 %v3478, %v3501
  %v3510 = vadd.f32 %v3479, %v3502
  %v3511 = vadd.f32 %v3480, %v3503
  %v3512 = vadd.f32 %v3481, %v3504
  %v3513 = vadd.f32 %v3482, %v3505
  %v3522 = vrot.slane %v3506, 4
  %v3523 = vrot.slane %v3507, 3
  %v3524 = vsel %vm1992, %v3523, %v3522
  %v3525 = vrot.slane %v3508, 2
  %v3526 = vsel %vm1995, %v3525, %v3524
  %v3527 = vrot.slane %v3509, 1
  %v3528 = vsel %vm1998, %v3527, %v3526
  %v3529 = vsel %vm2001, %v3510, %v3528
  %v3530 = vrot.slane %v3511, 7
  %v3531 = vsel %vm2004, %v3530, %v3529
  %v3532 = vrot.slane %v3512, 6
  %v3533 = vsel %vm2007, %v3532, %v3531
  %v3534 = vrot.slane %v3513, 5
  %v3535 = vsel %vm2010, %v3534, %v3533
  %3536 = vrot.lane.b32.xlu0 %v3535, 96
  %v3537 = vpop.permute.xlu0 %3536
  %v3538 = vsel %vm1639, %v3537, 0
  %3540 = vmatpush.msra.mxu0 0.0
  %3541 = vmatpush.msra.mxu0 0.0
  %3542 = vmatpush.msra.mxu0 0.0
  %3543 = vmatpush.msra.mxu0 0.0
  %3544 = vmatpush.msra.mxu0 0.0
  %3545 = vmatpush.msra.mxu0 0.0
  %3546 = vmatpush.msra.mxu0 0.0
  %3547 = vmatpush.msra.mxu0 0.0
  %3548 = vmatpush.msra.mxu0 0.0
  %3549 = vmatpush.msra.mxu0 0.0
  %3550 = vmatpush.msra.mxu0 0.0
  %3551 = vmatpush.msra.mxu0 0.0
  %3552 = vmatpush.msra.mxu0 %v1634
  %3553 = vmatpush.msra.mxu0 %v1633
  %3554 = vmatpush.msra.mxu0 %v1632
  %3555 = vmatpush.msra.mxu0 %v1631
  %3556 = vmatmul.f32.gmra.mxu0 %v3538
  %v3557 = vpop.f32.mrf.mxu0
  %v3558 = vadd.f32 %v1637, %v3557
  %3559 = vdwg.mxu0
  %v3561 = vrot.slane %v3558, 3
  %v3562 = vrot.slane %v3558, 4
  %v3563 = vrot.slane %v3558, 5
  %v3564 = vrot.slane %v3558, 6
  %v3565 = vrot.slane %v3558, 7
  %v3566 = vrot.slane %v3558, 1
  %v3567 = vrot.slane %v3558, 2
  %v3576 = vadd.f32 %v1612, %v3561
  %v3577 = vadd.f32 %v1614, %v3562
  %v3578 = vadd.f32 %v1617, %v3563
  %v3579 = vadd.f32 %v1619, %v3564
  %v3580 = vadd.f32 %v1622, %v3565
  %v3581 = vadd.f32 %v1624, %v3558
  %v3582 = vadd.f32 %v1627, %v3566
  %v3583 = vadd.f32 %v1629, %v3567
  %v3584 = vxor.u32 %v3576, 2147483648
  %v3585 = vxor.u32 %v3577, 2147483648
  %v3586 = vxor.u32 %v3578, 2147483648
  %v3587 = vxor.u32 %v3579, 2147483648
  %v3588 = vxor.u32 %v3580, 2147483648
  %v3589 = vxor.u32 %v3581, 2147483648
  %v3590 = vxor.u32 %v3582, 2147483648
  %v3591 = vxor.u32 %v3583, 2147483648
  %v3592 = vmul.f32 %v3584, 1.442695
  %v3593 = vpow.pop %v3592
  %v3594 = vmul.f32 %v3585, 1.442695
  %v3595 = vpow.pop %v3594
  %v3596 = vmul.f32 %v3586, 1.442695
  %v3597 = vpow.pop %v3596
  %v3598 = vmul.f32 %v3587, 1.442695
  %v3599 = vpow.pop %v3598
  %v3600 = vmul.f32 %v3588, 1.442695
  %v3601 = vpow.pop %v3600
  %v3602 = vmul.f32 %v3589, 1.442695
  %v3603 = vpow.pop %v3602
  %v3604 = vmul.f32 %v3590, 1.442695
  %v3605 = vpow.pop %v3604
  %v3606 = vmul.f32 %v3591, 1.442695
  %v3607 = vpow.pop %v3606
  %v3608 = vadd.f32 %v3593, 1.0
  %v3609 = vadd.f32 %v3595, 1.0
  %v3610 = vadd.f32 %v3597, 1.0
  %v3611 = vadd.f32 %v3599, 1.0
  %v3612 = vadd.f32 %v3601, 1.0
  %v3613 = vadd.f32 %v3603, 1.0
  %v3614 = vadd.f32 %v3605, 1.0
  %v3615 = vadd.f32 %v3607, 1.0
  %v3616 = vrcp.pop %v3608
  %v3617 = vmul.f32 %v3608, %v3616
  %v3618 = vsub.f32 1.0, %v3617
  %v3619 = vmul.f32 %v3616, %v3618
  %v3620 = vadd.f32 %v3616, %v3619
  %vm3621 = vweird.f32 %v3608
  %vm3622 = vweird.f32 %v3616
  %vm3623 = vmor %vm3621, %vm3622
  %v3624 = vsel %vm3623, %v3616, %v3620
  %v3625 = vand.u32 2147483647, %v3608
  %vm3626 = vcmp.eq.f32.partialorder %v3625, 8.507059e+37
  %v3627 = vand.u32 %v3608, 2147483648
  %v3628 = vor.u32 1.1754944e-38, %v3627
  %v3629 = vsel %vm3626, %v3628, %v3624
  %v3630 = vmul.f32 1.0, %v3629
  %v3631 = vrcp.pop %v3609
  %v3632 = vmul.f32 %v3609, %v3631
  %v3633 = vsub.f32 1.0, %v3632
  %v3634 = vmul.f32 %v3631, %v3633
  %v3635 = vadd.f32 %v3631, %v3634
  %vm3636 = vweird.f32 %v3609
  %vm3637 = vweird.f32 %v3631
  %vm3638 = vmor %vm3636, %vm3637
  %v3639 = vsel %vm3638, %v3631, %v3635
  %v3640 = vand.u32 2147483647, %v3609
  %vm3641 = vcmp.eq.f32.partialorder %v3640, 8.507059e+37
  %v3642 = vand.u32 %v3609, 2147483648
  %v3643 = vor.u32 1.1754944e-38, %v3642
  %v3644 = vsel %vm3641, %v3643, %v3639
  %v3645 = vmul.f32 1.0, %v3644
  %v3646 = vrcp.pop %v3610
  %v3647 = vmul.f32 %v3610, %v3646
  %v3648 = vsub.f32 1.0, %v3647
  %v3649 = vmul.f32 %v3646, %v3648
  %v3650 = vadd.f32 %v3646, %v3649
  %vm3651 = vweird.f32 %v3610
  %vm3652 = vweird.f32 %v3646
  %vm3653 = vmor %vm3651, %vm3652
  %v3654 = vsel %vm3653, %v3646, %v3650
  %v3655 = vand.u32 2147483647, %v3610
  %vm3656 = vcmp.eq.f32.partialorder %v3655, 8.507059e+37
  %v3657 = vand.u32 %v3610, 2147483648
  %v3658 = vor.u32 1.1754944e-38, %v3657
  %v3659 = vsel %vm3656, %v3658, %v3654
  %v3660 = vmul.f32 1.0, %v3659
  %v3661 = vrcp.pop %v3611
  %v3662 = vmul.f32 %v3611, %v3661
  %v3663 = vsub.f32 1.0, %v3662
  %v3664 = vmul.f32 %v3661, %v3663
  %v3665 = vadd.f32 %v3661, %v3664
  %vm3666 = vweird.f32 %v3611
  %vm3667 = vweird.f32 %v3661
  %vm3668 = vmor %vm3666, %vm3667
  %v3669 = vsel %vm3668, %v3661, %v3665
  %v3670 = vand.u32 2147483647, %v3611
  %vm3671 = vcmp.eq.f32.partialorder %v3670, 8.507059e+37
  %v3672 = vand.u32 %v3611, 2147483648
  %v3673 = vor.u32 1.1754944e-38, %v3672
  %v3674 = vsel %vm3671, %v3673, %v3669
  %v3675 = vmul.f32 1.0, %v3674
  %v3676 = vrcp.pop %v3612
  %v3677 = vmul.f32 %v3612, %v3676
  %v3678 = vsub.f32 1.0, %v3677
  %v3679 = vmul.f32 %v3676, %v3678
  %v3680 = vadd.f32 %v3676, %v3679
  %vm3681 = vweird.f32 %v3612
  %vm3682 = vweird.f32 %v3676
  %vm3683 = vmor %vm3681, %vm3682
  %v3684 = vsel %vm3683, %v3676, %v3680
  %v3685 = vand.u32 2147483647, %v3612
  %vm3686 = vcmp.eq.f32.partialorder %v3685, 8.507059e+37
  %v3687 = vand.u32 %v3612, 2147483648
  %v3688 = vor.u32 1.1754944e-38, %v3687
  %v3689 = vsel %vm3686, %v3688, %v3684
  %v3690 = vmul.f32 1.0, %v3689
  %v3691 = vrcp.pop %v3613
  %v3692 = vmul.f32 %v3613, %v3691
  %v3693 = vsub.f32 1.0, %v3692
  %v3694 = vmul.f32 %v3691, %v3693
  %v3695 = vadd.f32 %v3691, %v3694
  %vm3696 = vweird.f32 %v3613
  %vm3697 = vweird.f32 %v3691
  %vm3698 = vmor %vm3696, %vm3697
  %v3699 = vsel %vm3698, %v3691, %v3695
  %v3700 = vand.u32 2147483647, %v3613
  %vm3701 = vcmp.eq.f32.partialorder %v3700, 8.507059e+37
  %v3702 = vand.u32 %v3613, 2147483648
  %v3703 = vor.u32 1.1754944e-38, %v3702
  %v3704 = vsel %vm3701, %v3703, %v3699
  %v3705 = vmul.f32 1.0, %v3704
  %v3706 = vrcp.pop %v3614
  %v3707 = vmul.f32 %v3614, %v3706
  %v3708 = vsub.f32 1.0, %v3707
  %v3709 = vmul.f32 %v3706, %v3708
  %v3710 = vadd.f32 %v3706, %v3709
  %vm3711 = vweird.f32 %v3614
  %vm3712 = vweird.f32 %v3706
  %vm3713 = vmor %vm3711, %vm3712
  %v3714 = vsel %vm3713, %v3706, %v3710
  %v3715 = vand.u32 2147483647, %v3614
  %vm3716 = vcmp.eq.f32.partialorder %v3715, 8.507059e+37
  %v3717 = vand.u32 %v3614, 2147483648
  %v3718 = vor.u32 1.1754944e-38, %v3717
  %v3719 = vsel %vm3716, %v3718, %v3714
  %v3720 = vmul.f32 1.0, %v3719
  %v3721 = vrcp.pop %v3615
  %v3722 = vmul.f32 %v3615, %v3721
  %v3723 = vsub.f32 1.0, %v3722
  %v3724 = vmul.f32 %v3721, %v3723
  %v3725 = vadd.f32 %v3721, %v3724
  %vm3726 = vweird.f32 %v3615
  %vm3727 = vweird.f32 %v3721
  %vm3728 = vmor %vm3726, %vm3727
  %v3729 = vsel %vm3728, %v3721, %v3725
  %v3730 = vand.u32 2147483647, %v3615
  %vm3731 = vcmp.eq.f32.partialorder %v3730, 8.507059e+37
  %v3732 = vand.u32 %v3615, 2147483648
  %v3733 = vor.u32 1.1754944e-38, %v3732
  %v3734 = vsel %vm3731, %v3733, %v3729
  %v3735 = vmul.f32 1.0, %v3734
  %3736 = vrot.lane.b32.xlu0 %v3561, 64
  %v3737 = vpop.permute.xlu0 %3736
  %3738 = vrot.lane.b32.xlu0 %v3562, 64
  %v3739 = vpop.permute.xlu0 %3738
  %3740 = vrot.lane.b32.xlu0 %v3563, 64
  %v3741 = vpop.permute.xlu0 %3740
  %3742 = vrot.lane.b32.xlu0 %v3564, 64
  %v3743 = vpop.permute.xlu0 %3742
  %3744 = vrot.lane.b32.xlu0 %v3565, 64
  %v3745 = vpop.permute.xlu0 %3744
  %3746 = vrot.lane.b32.xlu0 %v3558, 64
  %v3747 = vpop.permute.xlu0 %3746
  %3748 = vrot.lane.b32.xlu0 %v3566, 64
  %v3749 = vpop.permute.xlu0 %3748
  %3750 = vrot.lane.b32.xlu0 %v3567, 64
  %v3751 = vpop.permute.xlu0 %3750
  %v3760 = vmul.f32 %v3630, %v3737
  %v3761 = vmul.f32 %v3645, %v3739
  %v3762 = vmul.f32 %v3660, %v3741
  %v3763 = vmul.f32 %v3675, %v3743
  %v3764 = vmul.f32 %v3690, %v3745
  %v3765 = vmul.f32 %v3705, %v3747
  %v3766 = vmul.f32 %v3720, %v3749
  %v3767 = vmul.f32 %v3735, %v3751
  %3776 = vrot.lane.b32.xlu0 %v3760, 64
  %v3777 = vpop.permute.xlu0 %3776
  %3778 = vrot.lane.b32.xlu0 %v3761, 64
  %v3779 = vpop.permute.xlu0 %3778
  %3780 = vrot.lane.b32.xlu0 %v3762, 64
  %v3781 = vpop.permute.xlu0 %3780
  %3782 = vrot.lane.b32.xlu0 %v3763, 64
  %v3783 = vpop.permute.xlu0 %3782
  %3784 = vrot.lane.b32.xlu0 %v3764, 64
  %v3785 = vpop.permute.xlu0 %3784
  %3786 = vrot.lane.b32.xlu0 %v3765, 64
  %v3787 = vpop.permute.xlu0 %3786
  %3788 = vrot.lane.b32.xlu0 %v3766, 64
  %v3789 = vpop.permute.xlu0 %3788
  %3790 = vrot.lane.b32.xlu0 %v3767, 64
  %v3791 = vpop.permute.xlu0 %3790
  %v3800 = vadd.f32 %v1612, %v3777
  %v3801 = vadd.f32 %v1614, %v3779
  %v3802 = vadd.f32 %v1617, %v3781
  %v3803 = vadd.f32 %v1619, %v3783
  %v3804 = vadd.f32 %v1622, %v3785
  %v3805 = vadd.f32 %v1624, %v3787
  %v3806 = vadd.f32 %v1627, %v3789
  %v3807 = vadd.f32 %v1629, %v3791
  %v3808 = vtanh.pop %v3800
  %v3809 = vtanh.pop %v3801
  %v3810 = vtanh.pop %v3802
  %v3811 = vtanh.pop %v3803
  %v3812 = vtanh.pop %v3804
  %v3813 = vtanh.pop %v3805
  %v3814 = vtanh.pop %v3806
  %v3815 = vtanh.pop %v3807
  %v3816 = vsub.f32 1.0, %v3630
  %v3817 = vsub.f32 1.0, %v3645
  %v3818 = vsub.f32 1.0, %v3660
  %v3819 = vsub.f32 1.0, %v3675
  %v3820 = vsub.f32 1.0, %v3690
  %v3821 = vsub.f32 1.0, %v3705
  %v3822 = vsub.f32 1.0, %v3720
  %v3823 = vsub.f32 1.0, %v3735
  %3832 = vrot.lane.b32.xlu0 %v3808, 96
  %v3833 = vpop.permute.xlu0 %3832
  %3834 = vrot.lane.b32.xlu0 %v3809, 96
  %v3835 = vpop.permute.xlu0 %3834
  %3836 = vrot.lane.b32.xlu0 %v3810, 96
  %v3837 = vpop.permute.xlu0 %3836
  %3838 = vrot.lane.b32.xlu0 %v3811, 96
  %v3839 = vpop.permute.xlu0 %3838
  %3840 = vrot.lane.b32.xlu0 %v3812, 96
  %v3841 = vpop.permute.xlu0 %3840
  %3842 = vrot.lane.b32.xlu0 %v3813, 96
  %v3843 = vpop.permute.xlu0 %3842
  %3844 = vrot.lane.b32.xlu0 %v3814, 96
  %v3845 = vpop.permute.xlu0 %3844
  %3846 = vrot.lane.b32.xlu0 %v3815, 96
  %v3847 = vpop.permute.xlu0 %3846
  %v3856 = vmul.f32 %v3816, %v3833
  %v3857 = vmul.f32 %v3817, %v3835
  %v3858 = vmul.f32 %v3818, %v3837
  %v3859 = vmul.f32 %v3819, %v3839
  %v3860 = vmul.f32 %v3820, %v3841
  %v3861 = vmul.f32 %v3821, %v3843
  %v3862 = vmul.f32 %v3822, %v3845
  %v3863 = vmul.f32 %v3823, %v3847
  %v3864 = vrot.slane %v3506, 7
  %v3865 = vrot.slane %v3507, 7
  %v3866 = vrot.slane %v3508, 7
  %v3867 = vrot.slane %v3509, 7
  %v3868 = vrot.slane %v3510, 7
  %v3869 = vrot.slane %v3512, 7
  %v3870 = vrot.slane %v3513, 7
  %v3879 = vmul.f32 %v3630, %v3864
  %v3880 = vmul.f32 %v3645, %v3865
  %v3881 = vmul.f32 %v3660, %v3866
  %v3882 = vmul.f32 %v3675, %v3867
  %v3883 = vmul.f32 %v3690, %v3868
  %v3884 = vmul.f32 %v3705, %v3530
  %v3885 = vmul.f32 %v3720, %v3869
  %v3886 = vmul.f32 %v3735, %v3870
  %v3887 = vadd.f32 %v3856, %v3879
  %v3888 = vadd.f32 %v3857, %v3880
  %v3889 = vadd.f32 %v3858, %v3881
  %v3890 = vadd.f32 %v3859, %v3882
  %v3891 = vadd.f32 %v3860, %v3883
  %v3892 = vadd.f32 %v3861, %v3884
  %v3893 = vadd.f32 %v3862, %v3885
  %v3894 = vadd.f32 %v3863, %v3886
  %v3903 = vrot.slane %v3887, 5
  %v3904 = vrot.slane %v3888, 4
  %v3905 = vsel %vm1992, %v3904, %v3903
  %v3906 = vrot.slane %v3889, 3
  %v3907 = vsel %vm1995, %v3906, %v3905
  %v3908 = vrot.slane %v3890, 2
  %v3909 = vsel %vm1998, %v3908, %v3907
  %v3910 = vrot.slane %v3891, 1
  %v3911 = vsel %vm2001, %v3910, %v3909
  %v3912 = vsel %vm2004, %v3892, %v3911
  %v3913 = vrot.slane %v3893, 7
  %v3914 = vsel %vm2007, %v3913, %v3912
  %v3915 = vrot.slane %v3894, 6
  %v3916 = vsel %vm2010, %v3915, %v3914
  %3917 = vrot.lane.b32.xlu0 %v3916, 96
  %v3918 = vpop.permute.xlu0 %3917
  %v3919 = vsel %vm1639, %v3918, 0
  %3921 = vmatpush.msra.mxu0 0.0
  %3922 = vmatpush.msra.mxu0 0.0
  %3923 = vmatpush.msra.mxu0 0.0
  %3924 = vmatpush.msra.mxu0 0.0
  %3925 = vmatpush.msra.mxu0 0.0
  %3926 = vmatpush.msra.mxu0 0.0
  %3927 = vmatpush.msra.mxu0 0.0
  %3928 = vmatpush.msra.mxu0 0.0
  %3929 = vmatpush.msra.mxu0 0.0
  %3930 = vmatpush.msra.mxu0 0.0
  %3931 = vmatpush.msra.mxu0 0.0
  %3932 = vmatpush.msra.mxu0 0.0
  %3933 = vmatpush.msra.mxu0 %v1634
  %3934 = vmatpush.msra.mxu0 %v1633
  %3935 = vmatpush.msra.mxu0 %v1632
  %3936 = vmatpush.msra.mxu0 %v1631
  %3937 = vmatmul.f32.gmra.mxu0 %v3919
  %v3938 = vpop.f32.mrf.mxu0
  %v3939 = vadd.f32 %v1637, %v3938
  %3940 = vdwg.mxu0
  %v3942 = vrot.slane %v3939, 2
  %v3943 = vrot.slane %v3939, 3
  %v3944 = vrot.slane %v3939, 4
  %v3945 = vrot.slane %v3939, 5
  %v3946 = vrot.slane %v3939, 6
  %v3947 = vrot.slane %v3939, 7
  %v3948 = vrot.slane %v3939, 1
  %v3957 = vadd.f32 %v1612, %v3942
  %v3958 = vadd.f32 %v1614, %v3943
  %v3959 = vadd.f32 %v1617, %v3944
  %v3960 = vadd.f32 %v1619, %v3945
  %v3961 = vadd.f32 %v1622, %v3946
  %v3962 = vadd.f32 %v1624, %v3947
  %v3963 = vadd.f32 %v1627, %v3939
  %v3964 = vadd.f32 %v1629, %v3948
  %v3965 = vxor.u32 %v3957, 2147483648
  %v3966 = vxor.u32 %v3958, 2147483648
  %v3967 = vxor.u32 %v3959, 2147483648
  %v3968 = vxor.u32 %v3960, 2147483648
  %v3969 = vxor.u32 %v3961, 2147483648
  %v3970 = vxor.u32 %v3962, 2147483648
  %v3971 = vxor.u32 %v3963, 2147483648
  %v3972 = vxor.u32 %v3964, 2147483648
  %v3973 = vmul.f32 %v3965, 1.442695
  %v3974 = vpow.pop %v3973
  %v3975 = vmul.f32 %v3966, 1.442695
  %v3976 = vpow.pop %v3975
  %v3977 = vmul.f32 %v3967, 1.442695
  %v3978 = vpow.pop %v3977
  %v3979 = vmul.f32 %v3968, 1.442695
  %v3980 = vpow.pop %v3979
  %v3981 = vmul.f32 %v3969, 1.442695
  %v3982 = vpow.pop %v3981
  %v3983 = vmul.f32 %v3970, 1.442695
  %v3984 = vpow.pop %v3983
  %v3985 = vmul.f32 %v3971, 1.442695
  %v3986 = vpow.pop %v3985
  %v3987 = vmul.f32 %v3972, 1.442695
  %v3988 = vpow.pop %v3987
  %v3989 = vadd.f32 %v3974, 1.0
  %v3990 = vadd.f32 %v3976, 1.0
  %v3991 = vadd.f32 %v3978, 1.0
  %v3992 = vadd.f32 %v3980, 1.0
  %v3993 = vadd.f32 %v3982, 1.0
  %v3994 = vadd.f32 %v3984, 1.0
  %v3995 = vadd.f32 %v3986, 1.0
  %v3996 = vadd.f32 %v3988, 1.0
  %v3997 = vrcp.pop %v3989
  %v3998 = vmul.f32 %v3989, %v3997
  %v3999 = vsub.f32 1.0, %v3998
  %v4000 = vmul.f32 %v3997, %v3999
  %v4001 = vadd.f32 %v3997, %v4000
  %vm4002 = vweird.f32 %v3989
  %vm4003 = vweird.f32 %v3997
  %vm4004 = vmor %vm4002, %vm4003
  %v4005 = vsel %vm4004, %v3997, %v4001
  %v4006 = vand.u32 2147483647, %v3989
  %vm4007 = vcmp.eq.f32.partialorder %v4006, 8.507059e+37
  %v4008 = vand.u32 %v3989, 2147483648
  %v4009 = vor.u32 1.1754944e-38, %v4008
  %v4010 = vsel %vm4007, %v4009, %v4005
  %v4011 = vmul.f32 1.0, %v4010
  %v4012 = vrcp.pop %v3990
  %v4013 = vmul.f32 %v3990, %v4012
  %v4014 = vsub.f32 1.0, %v4013
  %v4015 = vmul.f32 %v4012, %v4014
  %v4016 = vadd.f32 %v4012, %v4015
  %vm4017 = vweird.f32 %v3990
  %vm4018 = vweird.f32 %v4012
  %vm4019 = vmor %vm4017, %vm4018
  %v4020 = vsel %vm4019, %v4012, %v4016
  %v4021 = vand.u32 2147483647, %v3990
  %vm4022 = vcmp.eq.f32.partialorder %v4021, 8.507059e+37
  %v4023 = vand.u32 %v3990, 2147483648
  %v4024 = vor.u32 1.1754944e-38, %v4023
  %v4025 = vsel %vm4022, %v4024, %v4020
  %v4026 = vmul.f32 1.0, %v4025
  %v4027 = vrcp.pop %v3991
  %v4028 = vmul.f32 %v3991, %v4027
  %v4029 = vsub.f32 1.0, %v4028
  %v4030 = vmul.f32 %v4027, %v4029
  %v4031 = vadd.f32 %v4027, %v4030
  %vm4032 = vweird.f32 %v3991
  %vm4033 = vweird.f32 %v4027
  %vm4034 = vmor %vm4032, %vm4033
  %v4035 = vsel %vm4034, %v4027, %v4031
  %v4036 = vand.u32 2147483647, %v3991
  %vm4037 = vcmp.eq.f32.partialorder %v4036, 8.507059e+37
  %v4038 = vand.u32 %v3991, 2147483648
  %v4039 = vor.u32 1.1754944e-38, %v4038
  %v4040 = vsel %vm4037, %v4039, %v4035
  %v4041 = vmul.f32 1.0, %v4040
  %v4042 = vrcp.pop %v3992
  %v4043 = vmul.f32 %v3992, %v4042
  %v4044 = vsub.f32 1.0, %v4043
  %v4045 = vmul.f32 %v4042, %v4044
  %v4046 = vadd.f32 %v4042, %v4045
  %vm4047 = vweird.f32 %v3992
  %vm4048 = vweird.f32 %v4042
  %vm4049 = vmor %vm4047, %vm4048
  %v4050 = vsel %vm4049, %v4042, %v4046
  %v4051 = vand.u32 2147483647, %v3992
  %vm4052 = vcmp.eq.f32.partialorder %v4051, 8.507059e+37
  %v4053 = vand.u32 %v3992, 2147483648
  %v4054 = vor.u32 1.1754944e-38, %v4053
  %v4055 = vsel %vm4052, %v4054, %v4050
  %v4056 = vmul.f32 1.0, %v4055
  %v4057 = vrcp.pop %v3993
  %v4058 = vmul.f32 %v3993, %v4057
  %v4059 = vsub.f32 1.0, %v4058
  %v4060 = vmul.f32 %v4057, %v4059
  %v4061 = vadd.f32 %v4057, %v4060
  %vm4062 = vweird.f32 %v3993
  %vm4063 = vweird.f32 %v4057
  %vm4064 = vmor %vm4062, %vm4063
  %v4065 = vsel %vm4064, %v4057, %v4061
  %v4066 = vand.u32 2147483647, %v3993
  %vm4067 = vcmp.eq.f32.partialorder %v4066, 8.507059e+37
  %v4068 = vand.u32 %v3993, 2147483648
  %v4069 = vor.u32 1.1754944e-38, %v4068
  %v4070 = vsel %vm4067, %v4069, %v4065
  %v4071 = vmul.f32 1.0, %v4070
  %v4072 = vrcp.pop %v3994
  %v4073 = vmul.f32 %v3994, %v4072
  %v4074 = vsub.f32 1.0, %v4073
  %v4075 = vmul.f32 %v4072, %v4074
  %v4076 = vadd.f32 %v4072, %v4075
  %vm4077 = vweird.f32 %v3994
  %vm4078 = vweird.f32 %v4072
  %vm4079 = vmor %vm4077, %vm4078
  %v4080 = vsel %vm4079, %v4072, %v4076
  %v4081 = vand.u32 2147483647, %v3994
  %vm4082 = vcmp.eq.f32.partialorder %v4081, 8.507059e+37
  %v4083 = vand.u32 %v3994, 2147483648
  %v4084 = vor.u32 1.1754944e-38, %v4083
  %v4085 = vsel %vm4082, %v4084, %v4080
  %v4086 = vmul.f32 1.0, %v4085
  %v4087 = vrcp.pop %v3995
  %v4088 = vmul.f32 %v3995, %v4087
  %v4089 = vsub.f32 1.0, %v4088
  %v4090 = vmul.f32 %v4087, %v4089
  %v4091 = vadd.f32 %v4087, %v4090
  %vm4092 = vweird.f32 %v3995
  %vm4093 = vweird.f32 %v4087
  %vm4094 = vmor %vm4092, %vm4093
  %v4095 = vsel %vm4094, %v4087, %v4091
  %v4096 = vand.u32 2147483647, %v3995
  %vm4097 = vcmp.eq.f32.partialorder %v4096, 8.507059e+37
  %v4098 = vand.u32 %v3995, 2147483648
  %v4099 = vor.u32 1.1754944e-38, %v4098
  %v4100 = vsel %vm4097, %v4099, %v4095
  %v4101 = vmul.f32 1.0, %v4100
  %v4102 = vrcp.pop %v3996
  %v4103 = vmul.f32 %v3996, %v4102
  %v4104 = vsub.f32 1.0, %v4103
  %v4105 = vmul.f32 %v4102, %v4104
  %v4106 = vadd.f32 %v4102, %v4105
  %vm4107 = vweird.f32 %v3996
  %vm4108 = vweird.f32 %v4102
  %vm4109 = vmor %vm4107, %vm4108
  %v4110 = vsel %vm4109, %v4102, %v4106
  %v4111 = vand.u32 2147483647, %v3996
  %vm4112 = vcmp.eq.f32.partialorder %v4111, 8.507059e+37
  %v4113 = vand.u32 %v3996, 2147483648
  %v4114 = vor.u32 1.1754944e-38, %v4113
  %v4115 = vsel %vm4112, %v4114, %v4110
  %v4116 = vmul.f32 1.0, %v4115
  %4117 = vrot.lane.b32.xlu0 %v3942, 64
  %v4118 = vpop.permute.xlu0 %4117
  %4119 = vrot.lane.b32.xlu0 %v3943, 64
  %v4120 = vpop.permute.xlu0 %4119
  %4121 = vrot.lane.b32.xlu0 %v3944, 64
  %v4122 = vpop.permute.xlu0 %4121
  %4123 = vrot.lane.b32.xlu0 %v3945, 64
  %v4124 = vpop.permute.xlu0 %4123
  %4125 = vrot.lane.b32.xlu0 %v3946, 64
  %v4126 = vpop.permute.xlu0 %4125
  %4127 = vrot.lane.b32.xlu0 %v3947, 64
  %v4128 = vpop.permute.xlu0 %4127
  %4129 = vrot.lane.b32.xlu0 %v3939, 64
  %v4130 = vpop.permute.xlu0 %4129
  %4131 = vrot.lane.b32.xlu0 %v3948, 64
  %v4132 = vpop.permute.xlu0 %4131
  %v4141 = vmul.f32 %v4011, %v4118
  %v4142 = vmul.f32 %v4026, %v4120
  %v4143 = vmul.f32 %v4041, %v4122
  %v4144 = vmul.f32 %v4056, %v4124
  %v4145 = vmul.f32 %v4071, %v4126
  %v4146 = vmul.f32 %v4086, %v4128
  %v4147 = vmul.f32 %v4101, %v4130
  %v4148 = vmul.f32 %v4116, %v4132
  %4157 = vrot.lane.b32.xlu0 %v4141, 64
  %v4158 = vpop.permute.xlu0 %4157
  %4159 = vrot.lane.b32.xlu0 %v4142, 64
  %v4160 = vpop.permute.xlu0 %4159
  %4161 = vrot.lane.b32.xlu0 %v4143, 64
  %v4162 = vpop.permute.xlu0 %4161
  %4163 = vrot.lane.b32.xlu0 %v4144, 64
  %v4164 = vpop.permute.xlu0 %4163
  %4165 = vrot.lane.b32.xlu0 %v4145, 64
  %v4166 = vpop.permute.xlu0 %4165
  %4167 = vrot.lane.b32.xlu0 %v4146, 64
  %v4168 = vpop.permute.xlu0 %4167
  %4169 = vrot.lane.b32.xlu0 %v4147, 64
  %v4170 = vpop.permute.xlu0 %4169
  %4171 = vrot.lane.b32.xlu0 %v4148, 64
  %v4172 = vpop.permute.xlu0 %4171
  %v4181 = vadd.f32 %v1612, %v4158
  %v4182 = vadd.f32 %v1614, %v4160
  %v4183 = vadd.f32 %v1617, %v4162
  %v4184 = vadd.f32 %v1619, %v4164
  %v4185 = vadd.f32 %v1622, %v4166
  %v4186 = vadd.f32 %v1624, %v4168
  %v4187 = vadd.f32 %v1627, %v4170
  %v4188 = vadd.f32 %v1629, %v4172
  %v4189 = vtanh.pop %v4181
  %v4190 = vtanh.pop %v4182
  %v4191 = vtanh.pop %v4183
  %v4192 = vtanh.pop %v4184
  %v4193 = vtanh.pop %v4185
  %v4194 = vtanh.pop %v4186
  %v4195 = vtanh.pop %v4187
  %v4196 = vtanh.pop %v4188
  %v4197 = vsub.f32 1.0, %v4011
  %v4198 = vsub.f32 1.0, %v4026
  %v4199 = vsub.f32 1.0, %v4041
  %v4200 = vsub.f32 1.0, %v4056
  %v4201 = vsub.f32 1.0, %v4071
  %v4202 = vsub.f32 1.0, %v4086
  %v4203 = vsub.f32 1.0, %v4101
  %v4204 = vsub.f32 1.0, %v4116
  %4213 = vrot.lane.b32.xlu0 %v4189, 96
  %v4214 = vpop.permute.xlu0 %4213
  %4215 = vrot.lane.b32.xlu0 %v4190, 96
  %v4216 = vpop.permute.xlu0 %4215
  %4217 = vrot.lane.b32.xlu0 %v4191, 96
  %v4218 = vpop.permute.xlu0 %4217
  %4219 = vrot.lane.b32.xlu0 %v4192, 96
  %v4220 = vpop.permute.xlu0 %4219
  %4221 = vrot.lane.b32.xlu0 %v4193, 96
  %v4222 = vpop.permute.xlu0 %4221
  %4223 = vrot.lane.b32.xlu0 %v4194, 96
  %v4224 = vpop.permute.xlu0 %4223
  %4225 = vrot.lane.b32.xlu0 %v4195, 96
  %v4226 = vpop.permute.xlu0 %4225
  %4227 = vrot.lane.b32.xlu0 %v4196, 96
  %v4228 = vpop.permute.xlu0 %4227
  %v4237 = vmul.f32 %v4197, %v4214
  %v4238 = vmul.f32 %v4198, %v4216
  %v4239 = vmul.f32 %v4199, %v4218
  %v4240 = vmul.f32 %v4200, %v4220
  %v4241 = vmul.f32 %v4201, %v4222
  %v4242 = vmul.f32 %v4202, %v4224
  %v4243 = vmul.f32 %v4203, %v4226
  %v4244 = vmul.f32 %v4204, %v4228
  %v4245 = vrot.slane %v3887, 7
  %v4246 = vrot.slane %v3888, 7
  %v4247 = vrot.slane %v3889, 7
  %v4248 = vrot.slane %v3890, 7
  %v4249 = vrot.slane %v3891, 7
  %v4250 = vrot.slane %v3892, 7
  %v4251 = vrot.slane %v3894, 7
  %v4260 = vmul.f32 %v4011, %v4245
  %v4261 = vmul.f32 %v4026, %v4246
  %v4262 = vmul.f32 %v4041, %v4247
  %v4263 = vmul.f32 %v4056, %v4248
  %v4264 = vmul.f32 %v4071, %v4249
  %v4265 = vmul.f32 %v4086, %v4250
  %v4266 = vmul.f32 %v4101, %v3913
  %v4267 = vmul.f32 %v4116, %v4251
  %v4268 = vadd.f32 %v4237, %v4260
  %v4269 = vadd.f32 %v4238, %v4261
  %v4270 = vadd.f32 %v4239, %v4262
  %v4271 = vadd.f32 %v4240, %v4263
  %v4272 = vadd.f32 %v4241, %v4264
  %v4273 = vadd.f32 %v4242, %v4265
  %v4274 = vadd.f32 %v4243, %v4266
  %v4275 = vadd.f32 %v4244, %v4267
  %v4284 = vrot.slane %v4268, 6
  %v4285 = vrot.slane %v4269, 5
  %v4286 = vsel %vm1992, %v4285, %v4284
  %v4287 = vrot.slane %v4270, 4
  %v4288 = vsel %vm1995, %v4287, %v4286
  %v4289 = vrot.slane %v4271, 3
  %v4290 = vsel %vm1998, %v4289, %v4288
  %v4291 = vrot.slane %v4272, 2
  %v4292 = vsel %vm2001, %v4291, %v4290
  %v4293 = vrot.slane %v4273, 1
  %v4294 = vsel %vm2004, %v4293, %v4292
  %v4295 = vsel %vm2007, %v4274, %v4294
  %v4296 = vrot.slane %v4275, 7
  %v4297 = vsel %vm2010, %v4296, %v4295
  %4298 = vrot.lane.b32.xlu0 %v4297, 96
  %v4299 = vpop.permute.xlu0 %4298
  %v4300 = vsel %vm1639, %v4299, 0
  %4302 = vmatpush.msra.mxu0 0.0
  %4303 = vmatpush.msra.mxu0 0.0
  %4304 = vmatpush.msra.mxu0 0.0
  %4305 = vmatpush.msra.mxu0 0.0
  %4306 = vmatpush.msra.mxu0 0.0
  %4307 = vmatpush.msra.mxu0 0.0
  %4308 = vmatpush.msra.mxu0 0.0
  %4309 = vmatpush.msra.mxu0 0.0
  %4310 = vmatpush.msra.mxu0 0.0
  %4311 = vmatpush.msra.mxu0 0.0
  %4312 = vmatpush.msra.mxu0 0.0
  %4313 = vmatpush.msra.mxu0 0.0
  %4314 = vmatpush.msra.mxu0 %v1634
  %4315 = vmatpush.msra.mxu0 %v1633
  %4316 = vmatpush.msra.mxu0 %v1632
  %4317 = vmatpush.msra.mxu0 %v1631
  %4318 = vmatmul.f32.gmra.mxu0 %v4300
  %v4319 = vpop.f32.mrf.mxu0
  %v4320 = vadd.f32 %v1637, %v4319
  %4321 = vdwg.mxu0
  %v4323 = vrot.slane %v4320, 1
  %v4324 = vrot.slane %v4320, 2
  %v4325 = vrot.slane %v4320, 3
  %v4326 = vrot.slane %v4320, 4
  %v4327 = vrot.slane %v4320, 5
  %v4328 = vrot.slane %v4320, 6
  %v4329 = vrot.slane %v4320, 7
  %v4338 = vadd.f32 %v1612, %v4323
  %v4339 = vadd.f32 %v1614, %v4324
  %v4340 = vadd.f32 %v1617, %v4325
  %v4341 = vadd.f32 %v1619, %v4326
  %v4342 = vadd.f32 %v1622, %v4327
  %v4343 = vadd.f32 %v1624, %v4328
  %v4344 = vadd.f32 %v1627, %v4329
  %v4345 = vadd.f32 %v1629, %v4320
  %v4346 = vxor.u32 %v4338, 2147483648
  %v4347 = vxor.u32 %v4339, 2147483648
  %v4348 = vxor.u32 %v4340, 2147483648
  %v4349 = vxor.u32 %v4341, 2147483648
  %v4350 = vxor.u32 %v4342, 2147483648
  %v4351 = vxor.u32 %v4343, 2147483648
  %v4352 = vxor.u32 %v4344, 2147483648
  %v4353 = vxor.u32 %v4345, 2147483648
  %v4354 = vmul.f32 %v4346, 1.442695
  %v4355 = vpow.pop %v4354
  %v4356 = vmul.f32 %v4347, 1.442695
  %v4357 = vpow.pop %v4356
  %v4358 = vmul.f32 %v4348, 1.442695
  %v4359 = vpow.pop %v4358
  %v4360 = vmul.f32 %v4349, 1.442695
  %v4361 = vpow.pop %v4360
  %v4362 = vmul.f32 %v4350, 1.442695
  %v4363 = vpow.pop %v4362
  %v4364 = vmul.f32 %v4351, 1.442695
  %v4365 = vpow.pop %v4364
  %v4366 = vmul.f32 %v4352, 1.442695
  %v4367 = vpow.pop %v4366
  %v4368 = vmul.f32 %v4353, 1.442695
  %v4369 = vpow.pop %v4368
  %v4370 = vadd.f32 %v4355, 1.0
  %v4371 = vadd.f32 %v4357, 1.0
  %v4372 = vadd.f32 %v4359, 1.0
  %v4373 = vadd.f32 %v4361, 1.0
  %v4374 = vadd.f32 %v4363, 1.0
  %v4375 = vadd.f32 %v4365, 1.0
  %v4376 = vadd.f32 %v4367, 1.0
  %v4377 = vadd.f32 %v4369, 1.0
  %v4378 = vrcp.pop %v4370
  %v4379 = vmul.f32 %v4370, %v4378
  %v4380 = vsub.f32 1.0, %v4379
  %v4381 = vmul.f32 %v4378, %v4380
  %v4382 = vadd.f32 %v4378, %v4381
  %vm4383 = vweird.f32 %v4370
  %vm4384 = vweird.f32 %v4378
  %vm4385 = vmor %vm4383, %vm4384
  %v4386 = vsel %vm4385, %v4378, %v4382
  %v4387 = vand.u32 2147483647, %v4370
  %vm4388 = vcmp.eq.f32.partialorder %v4387, 8.507059e+37
  %v4389 = vand.u32 %v4370, 2147483648
  %v4390 = vor.u32 1.1754944e-38, %v4389
  %v4391 = vsel %vm4388, %v4390, %v4386
  %v4392 = vmul.f32 1.0, %v4391
  %v4393 = vrcp.pop %v4371
  %v4394 = vmul.f32 %v4371, %v4393
  %v4395 = vsub.f32 1.0, %v4394
  %v4396 = vmul.f32 %v4393, %v4395
  %v4397 = vadd.f32 %v4393, %v4396
  %vm4398 = vweird.f32 %v4371
  %vm4399 = vweird.f32 %v4393
  %vm4400 = vmor %vm4398, %vm4399
  %v4401 = vsel %vm4400, %v4393, %v4397
  %v4402 = vand.u32 2147483647, %v4371
  %vm4403 = vcmp.eq.f32.partialorder %v4402, 8.507059e+37
  %v4404 = vand.u32 %v4371, 2147483648
  %v4405 = vor.u32 1.1754944e-38, %v4404
  %v4406 = vsel %vm4403, %v4405, %v4401
  %v4407 = vmul.f32 1.0, %v4406
  %v4408 = vrcp.pop %v4372
  %v4409 = vmul.f32 %v4372, %v4408
  %v4410 = vsub.f32 1.0, %v4409
  %v4411 = vmul.f32 %v4408, %v4410
  %v4412 = vadd.f32 %v4408, %v4411
  %vm4413 = vweird.f32 %v4372
  %vm4414 = vweird.f32 %v4408
  %vm4415 = vmor %vm4413, %vm4414
  %v4416 = vsel %vm4415, %v4408, %v4412
  %v4417 = vand.u32 2147483647, %v4372
  %vm4418 = vcmp.eq.f32.partialorder %v4417, 8.507059e+37
  %v4419 = vand.u32 %v4372, 2147483648
  %v4420 = vor.u32 1.1754944e-38, %v4419
  %v4421 = vsel %vm4418, %v4420, %v4416
  %v4422 = vmul.f32 1.0, %v4421
  %v4423 = vrcp.pop %v4373
  %v4424 = vmul.f32 %v4373, %v4423
  %v4425 = vsub.f32 1.0, %v4424
  %v4426 = vmul.f32 %v4423, %v4425
  %v4427 = vadd.f32 %v4423, %v4426
  %vm4428 = vweird.f32 %v4373
  %vm4429 = vweird.f32 %v4423
  %vm4430 = vmor %vm4428, %vm4429
  %v4431 = vsel %vm4430, %v4423, %v4427
  %v4432 = vand.u32 2147483647, %v4373
  %vm4433 = vcmp.eq.f32.partialorder %v4432, 8.507059e+37
  %v4434 = vand.u32 %v4373, 2147483648
  %v4435 = vor.u32 1.1754944e-38, %v4434
  %v4436 = vsel %vm4433, %v4435, %v4431
  %v4437 = vmul.f32 1.0, %v4436
  %v4438 = vrcp.pop %v4374
  %v4439 = vmul.f32 %v4374, %v4438
  %v4440 = vsub.f32 1.0, %v4439
  %v4441 = vmul.f32 %v4438, %v4440
  %v4442 = vadd.f32 %v4438, %v4441
  %vm4443 = vweird.f32 %v4374
  %vm4444 = vweird.f32 %v4438
  %vm4445 = vmor %vm4443, %vm4444
  %v4446 = vsel %vm4445, %v4438, %v4442
  %v4447 = vand.u32 2147483647, %v4374
  %vm4448 = vcmp.eq.f32.partialorder %v4447, 8.507059e+37
  %v4449 = vand.u32 %v4374, 2147483648
  %v4450 = vor.u32 1.1754944e-38, %v4449
  %v4451 = vsel %vm4448, %v4450, %v4446
  %v4452 = vmul.f32 1.0, %v4451
  %v4453 = vrcp.pop %v4375
  %v4454 = vmul.f32 %v4375, %v4453
  %v4455 = vsub.f32 1.0, %v4454
  %v4456 = vmul.f32 %v4453, %v4455
  %v4457 = vadd.f32 %v4453, %v4456
  %vm4458 = vweird.f32 %v4375
  %vm4459 = vweird.f32 %v4453
  %vm4460 = vmor %vm4458, %vm4459
  %v4461 = vsel %vm4460, %v4453, %v4457
  %v4462 = vand.u32 2147483647, %v4375
  %vm4463 = vcmp.eq.f32.partialorder %v4462, 8.507059e+37
  %v4464 = vand.u32 %v4375, 2147483648
  %v4465 = vor.u32 1.1754944e-38, %v4464
  %v4466 = vsel %vm4463, %v4465, %v4461
  %v4467 = vmul.f32 1.0, %v4466
  %v4468 = vrcp.pop %v4376
  %v4469 = vmul.f32 %v4376, %v4468
  %v4470 = vsub.f32 1.0, %v4469
  %v4471 = vmul.f32 %v4468, %v4470
  %v4472 = vadd.f32 %v4468, %v4471
  %vm4473 = vweird.f32 %v4376
  %vm4474 = vweird.f32 %v4468
  %vm4475 = vmor %vm4473, %vm4474
  %v4476 = vsel %vm4475, %v4468, %v4472
  %v4477 = vand.u32 2147483647, %v4376
  %vm4478 = vcmp.eq.f32.partialorder %v4477, 8.507059e+37
  %v4479 = vand.u32 %v4376, 2147483648
  %v4480 = vor.u32 1.1754944e-38, %v4479
  %v4481 = vsel %vm4478, %v4480, %v4476
  %v4482 = vmul.f32 1.0, %v4481
  %v4483 = vrcp.pop %v4377
  %v4484 = vmul.f32 %v4377, %v4483
  %v4485 = vsub.f32 1.0, %v4484
  %v4486 = vmul.f32 %v4483, %v4485
  %v4487 = vadd.f32 %v4483, %v4486
  %vm4488 = vweird.f32 %v4377
  %vm4489 = vweird.f32 %v4483
  %vm4490 = vmor %vm4488, %vm4489
  %v4491 = vsel %vm4490, %v4483, %v4487
  %v4492 = vand.u32 2147483647, %v4377
  %vm4493 = vcmp.eq.f32.partialorder %v4492, 8.507059e+37
  %v4494 = vand.u32 %v4377, 2147483648
  %v4495 = vor.u32 1.1754944e-38, %v4494
  %v4496 = vsel %vm4493, %v4495, %v4491
  %v4497 = vmul.f32 1.0, %v4496
  %4498 = vrot.lane.b32.xlu0 %v4323, 64
  %v4499 = vpop.permute.xlu0 %4498
  %4500 = vrot.lane.b32.xlu0 %v4324, 64
  %v4501 = vpop.permute.xlu0 %4500
  %4502 = vrot.lane.b32.xlu0 %v4325, 64
  %v4503 = vpop.permute.xlu0 %4502
  %4504 = vrot.lane.b32.xlu0 %v4326, 64
  %v4505 = vpop.permute.xlu0 %4504
  %4506 = vrot.lane.b32.xlu0 %v4327, 64
  %v4507 = vpop.permute.xlu0 %4506
  %4508 = vrot.lane.b32.xlu0 %v4328, 64
  %v4509 = vpop.permute.xlu0 %4508
  %4510 = vrot.lane.b32.xlu0 %v4329, 64
  %v4511 = vpop.permute.xlu0 %4510
  %4512 = vrot.lane.b32.xlu0 %v4320, 64
  %v4513 = vpop.permute.xlu0 %4512
  %v4522 = vmul.f32 %v4392, %v4499
  %v4523 = vmul.f32 %v4407, %v4501
  %v4524 = vmul.f32 %v4422, %v4503
  %v4525 = vmul.f32 %v4437, %v4505
  %v4526 = vmul.f32 %v4452, %v4507
  %v4527 = vmul.f32 %v4467, %v4509
  %v4528 = vmul.f32 %v4482, %v4511
  %v4529 = vmul.f32 %v4497, %v4513
  %4538 = vrot.lane.b32.xlu0 %v4522, 64
  %v4539 = vpop.permute.xlu0 %4538
  %4540 = vrot.lane.b32.xlu0 %v4523, 64
  %v4541 = vpop.permute.xlu0 %4540
  %4542 = vrot.lane.b32.xlu0 %v4524, 64
  %v4543 = vpop.permute.xlu0 %4542
  %4544 = vrot.lane.b32.xlu0 %v4525, 64
  %v4545 = vpop.permute.xlu0 %4544
  %4546 = vrot.lane.b32.xlu0 %v4526, 64
  %v4547 = vpop.permute.xlu0 %4546
  %4548 = vrot.lane.b32.xlu0 %v4527, 64
  %v4549 = vpop.permute.xlu0 %4548
  %4550 = vrot.lane.b32.xlu0 %v4528, 64
  %v4551 = vpop.permute.xlu0 %4550
  %4552 = vrot.lane.b32.xlu0 %v4529, 64
  %v4553 = vpop.permute.xlu0 %4552
  %v4562 = vadd.f32 %v1612, %v4539
  %v4563 = vadd.f32 %v1614, %v4541
  %v4564 = vadd.f32 %v1617, %v4543
  %v4565 = vadd.f32 %v1619, %v4545
  %v4566 = vadd.f32 %v1622, %v4547
  %v4567 = vadd.f32 %v1624, %v4549
  %v4568 = vadd.f32 %v1627, %v4551
  %v4569 = vadd.f32 %v1629, %v4553
  %v4570 = vtanh.pop %v4562
  %v4571 = vtanh.pop %v4563
  %v4572 = vtanh.pop %v4564
  %v4573 = vtanh.pop %v4565
  %v4574 = vtanh.pop %v4566
  %v4575 = vtanh.pop %v4567
  %v4576 = vtanh.pop %v4568
  %v4577 = vtanh.pop %v4569
  %v4578 = vsub.f32 1.0, %v4392
  %v4579 = vsub.f32 1.0, %v4407
  %v4580 = vsub.f32 1.0, %v4422
  %v4581 = vsub.f32 1.0, %v4437
  %v4582 = vsub.f32 1.0, %v4452
  %v4583 = vsub.f32 1.0, %v4467
  %v4584 = vsub.f32 1.0, %v4482
  %v4585 = vsub.f32 1.0, %v4497
  %4594 = vrot.lane.b32.xlu0 %v4570, 96
  %v4595 = vpop.permute.xlu0 %4594
  %4596 = vrot.lane.b32.xlu0 %v4571, 96
  %v4597 = vpop.permute.xlu0 %4596
  %4598 = vrot.lane.b32.xlu0 %v4572, 96
  %v4599 = vpop.permute.xlu0 %4598
  %4600 = vrot.lane.b32.xlu0 %v4573, 96
  %v4601 = vpop.permute.xlu0 %4600
  %4602 = vrot.lane.b32.xlu0 %v4574, 96
  %v4603 = vpop.permute.xlu0 %4602
  %4604 = vrot.lane.b32.xlu0 %v4575, 96
  %v4605 = vpop.permute.xlu0 %4604
  %4606 = vrot.lane.b32.xlu0 %v4576, 96
  %v4607 = vpop.permute.xlu0 %4606
  %4608 = vrot.lane.b32.xlu0 %v4577, 96
  %v4609 = vpop.permute.xlu0 %4608
  %v4618 = vmul.f32 %v4578, %v4595
  %v4619 = vmul.f32 %v4579, %v4597
  %v4620 = vmul.f32 %v4580, %v4599
  %v4621 = vmul.f32 %v4581, %v4601
  %v4622 = vmul.f32 %v4582, %v4603
  %v4623 = vmul.f32 %v4583, %v4605
  %v4624 = vmul.f32 %v4584, %v4607
  %v4625 = vmul.f32 %v4585, %v4609
  %v4626 = vrot.slane %v4268, 7
  %v4627 = vrot.slane %v4269, 7
  %v4628 = vrot.slane %v4270, 7
  %v4629 = vrot.slane %v4271, 7
  %v4630 = vrot.slane %v4272, 7
  %v4631 = vrot.slane %v4273, 7
  %v4632 = vrot.slane %v4274, 7
  %v4641 = vmul.f32 %v4392, %v4626
  %v4642 = vmul.f32 %v4407, %v4627
  %v4643 = vmul.f32 %v4422, %v4628
  %v4644 = vmul.f32 %v4437, %v4629
  %v4645 = vmul.f32 %v4452, %v4630
  %v4646 = vmul.f32 %v4467, %v4631
  %v4647 = vmul.f32 %v4482, %v4632
  %v4648 = vmul.f32 %v4497, %v4296
  %v4649 = vadd.f32 %v4618, %v4641
  %v4650 = vadd.f32 %v4619, %v4642
  %v4651 = vadd.f32 %v4620, %v4643
  %v4652 = vadd.f32 %v4621, %v4644
  %v4653 = vadd.f32 %v4622, %v4645
  %v4654 = vadd.f32 %v4623, %v4646
  %v4655 = vadd.f32 %v4624, %v4647
  %v4656 = vadd.f32 %v4625, %v4648
  %v4657 = vld [vmem:[%s11] sm:$0x1]
  %v4659 = vperm.slane %v4657, 0
  %4660 = vrot.lane.b32.xlu0 %v4659, 32
  %v4661 = vpop.permute.xlu0 %4660
  %v4663 = vmul.f32 %v4649, %v4661
  %v4664 = vmul.f32 %v4650, %v4661
  %v4665 = vmul.f32 %v4651, %v4661
  %v4666 = vmul.f32 %v4652, %v4661
  %v4667 = vmul.f32 %v4653, %v4661
  %v4668 = vmul.f32 %v4654, %v4661
  %v4669 = vmul.f32 %v4655, %v4661
  %v4670 = vmul.f32 %v4656, %v4661
  %v4679 = vrot.slane %v4664, 7
  %v4680 = vrot.slane %v4665, 6
  %v4681 = vsel %vm1992, %v4680, %v4679
  %v4682 = vrot.slane %v4666, 5
  %v4683 = vsel %vm1995, %v4682, %v4681
  %v4684 = vrot.slane %v4667, 4
  %v4685 = vsel %vm1998, %v4684, %v4683
  %v4686 = vrot.slane %v4668, 3
  %v4687 = vsel %vm2001, %v4686, %v4685
  %v4688 = vrot.slane %v4669, 2
  %v4689 = vsel %vm2004, %v4688, %v4687
  %v4690 = vrot.slane %v4670, 1
  %v4691 = vsel %vm2007, %v4690, %v4689
  %4692 = vrot.lane.b32.xlu0 %v4663, 96
  %v4693 = vpop.permute.xlu0 %4692
  %4694 = vrot.lane.b32.xlu0 %v4691, 96
  %v4695 = vpop.permute.xlu0 %4694
  %vm4698 = vcmask 261127
  %v4699 = vsel %vm4698, %v4693, 0.0
  %4700 = vadd.xlane.f32.xlu0 %v4699
  %v4701 = vpop.xlane.xlu0 %4700
  %vm4702 = vcmask 260096
  %v4703 = vsel %vm4702, %v4695, 0.0
  %4704 = vadd.xlane.f32.xlu0 %v4703
  %v4705 = vpop.xlane.xlu0 %4704
  %v4706 = vld [vmem:[#allocation2] sm:$0x1]
  %v4708 = vperm.slane %v4706, 0
  %v4710 = vadd.f32 %v4701, %v4708
  %v4711 = vadd.f32 %v4705, %v4708
  %vm4712 = vcmask 7175
  %4713 = vst.msk [vmem:[%s13 - $0x7] sm:$0x80] %vm4712, %v4710
  %vm4714 = vcmask 6144
  %4715 = vst.msk [vmem:[%s13 + $0x1] sm:$0x7f] %vm4714, %v4711
  // Predicated region
  $region54: #{cross_attention_gru_forward.1} parent=0 // pred_check
    _
  $region55: #{cross_attention_gru_forward.1} parent=0 // pred_check_branch
    %4717 = sbr.rel (0) target = $region57
  $region56: #{cross_attention_gru_forward.1} parent=0 // pred_region
    _
  $region57: #{cross_attention_gru_forward.1} parent=0 // pred_fallthru
    _
  // Predicated region
  $region58: #{cross_attention_gru_forward.1} parent=0 // pred_check
    _
  $region59: #{cross_attention_gru_forward.1} parent=0 // pred_check_branch
    %4719 = sbr.rel (0) target = $region61
  $region60: #{cross_attention_gru_forward.1} parent=0 // pred_region
    _
  $region61: #{cross_attention_gru_forward.1} parent=0 // pred_fallthru
    _

</llo_original>
